<compile_context>
chip_gen: v5e
topology: v5e:2x2
jax: 0.10.0
libtpu: 0.0.40
codegen_flags: <defaults>
</compile_context>

<pallas_src>
import jax
import jax.numpy as jnp
import numpy as np
from jax.experimental import pallas as pl
from jax.experimental.pallas import tpu as pltpu


# ----------------------------- Pallas kernels -----------------------------

def _conv_stack_kernel(x_ref, c1_ref, c1b_ref, sl_ref, sr_ref, c2_ref, c2b_ref,
                       f_ref):
    """conv1 + ReLU + 2x2 maxpool + conv2 + ReLU for ONE sample.

    Layouts (all 2-D, W always on the lane axis):
      x         : (28, 28)                        [H, W]
      conv1 out : (24, 240)  columns = c1*24 + w  [H, C1*W]
      pooled    : (12, 120)  columns = c1*12 + w  [H, C1*W]
      conv2 out : (10, 200)  columns = c2*10 + w  [H, C2*W]
    """
    x = x_ref[0]                                              # (28, 28)

    # conv1 as 5 banded MXU matmuls over the W axis (one per kernel row ki).
    acc1 = jnp.dot(x[0:24, :], c1_ref[0], preferred_element_type=jnp.float32)
    for ki in range(1, 5):
        acc1 = acc1 + jnp.dot(x[ki:ki + 24, :], c1_ref[ki],
                              preferred_element_type=jnp.float32)
    y1 = jnp.maximum(acc1 + c1b_ref[...], 0.0)                # (24, 240)

    # 2x2 max-pool: pairwise maxima + exact 0/1 selection matmuls.
    mh = jnp.maximum(y1[0:23, :], y1[1:24, :])                # (23, 240)
    mhw = jnp.maximum(mh[:, 0:239], mh[:, 1:240])             # (23, 239)
    pooled = jnp.dot(
        jnp.dot(sl_ref[...], mhw, preferred_element_type=jnp.float32),
        sr_ref[...], preferred_element_type=jnp.float32)      # (12, 120)

    # conv2 as 3 banded MXU matmuls over the (C1, W) lane axis.
    acc2 = jnp.dot(pooled[0:10, :], c2_ref[0],
                   preferred_element_type=jnp.float32)
    for ki in range(1, 3):
        acc2 = acc2 + jnp.dot(pooled[ki:ki + 10, :], c2_ref[ki],
                              preferred_element_type=jnp.float32)
    y2 = jnp.maximum(acc2 + c2b_ref[...], 0.0)                # (10, 200)

    f_ref[0] = y2


def _fc_stack_kernel(f_ref, w1_ref, b1_ref, w2_ref, b2_ref, o_ref):
    """fc1 + ReLU + fc2 + log_softmax for one batch tile."""
    h = jnp.maximum(
        jnp.dot(f_ref[...], w1_ref[...], preferred_element_type=jnp.float32)
        + b1_ref[...], 0.0)                                   # (tm, 500)
    z = (jnp.dot(h, w2_ref[...], preferred_element_type=jnp.float32)
         + b2_ref[...])                                       # (tm, 10)
    m = jnp.max(z, axis=-1, keepdims=True)
    lse = jnp.log(jnp.sum(jnp.exp(z - m), axis=-1, keepdims=True)) + m
    o_ref[...] = z - lse


# --------------------------- pallas_call wrappers ---------------------------

def conv_stack(x2, p):
    """x2: (N, 28, 28) -> features (N, 10, 200) (cols = c2*10 + w)."""
    N = x2.shape[0]
    flops_per = 2 * (5 * 24 * 28 * 240 + 12 * 23 * 239 + 12 * 239 * 120
                     + 3 * 10 * 120 * 200)
    weight_bytes = 4 * int(p["conv1_band"].size + p["conv1_bias"].size
                           + p["pool_sl"].size + p["pool_sr"].size
                           + p["conv2_band"].size + p["conv2_bias"].size)
    return pl.pallas_call(
        _conv_stack_kernel,
        out_shape=jax.ShapeDtypeStruct((N, 10, 200), jnp.float32),
        grid=(N,),
        in_specs=[
            pl.BlockSpec((1, 28, 28), lambda b: (b, 0, 0)),      # sample
            pl.BlockSpec((5, 28, 240), lambda b: (0, 0, 0)),     # conv1 band
            pl.BlockSpec((1, 240), lambda b: (0, 0)),            # conv1 bias
            pl.BlockSpec((12, 23), lambda b: (0, 0)),            # pool row sel
            pl.BlockSpec((239, 120), lambda b: (0, 0)),          # pool col sel
            pl.BlockSpec((3, 120, 200), lambda b: (0, 0, 0)),    # conv2 band
            pl.BlockSpec((1, 200), lambda b: (0, 0)),            # conv2 bias
        ],
        out_specs=pl.BlockSpec((1, 10, 200), lambda b: (b, 0, 0)),
        compiler_params=pltpu.CompilerParams(
            dimension_semantics=("parallel",)),
        cost_estimate=pl.CostEstimate(
            flops=N * flops_per,
            transcendentals=0,
            bytes_accessed=N * (28 * 28 + 10 * 200) * 4 + weight_bytes),
    )(x2, p["conv1_band"], p["conv1_bias"], p["pool_sl"], p["pool_sr"],
      p["conv2_band"], p["conv2_bias"])


def fc_stack(feats, p):
    """feats: (N, 2000) -> log-probs (N, 10)."""
    N, K = feats.shape
    H = p["fc1_w"].shape[1]     # 500
    C = p["fc2_w"].shape[1]     # 10
    # Batch-tile the M dimension when it is large; small batches use one tile.
    # (For large N not divisible by 128 one would pad the batch; not needed here.)
    tile_m = 128 if N % 128 == 0 else N
    return pl.pallas_call(
        _fc_stack_kernel,
        out_shape=jax.ShapeDtypeStruct((N, C), jnp.float32),
        grid=(N // tile_m,),
        in_specs=[
            pl.BlockSpec((tile_m, K), lambda m: (m, 0)),
            pl.BlockSpec((K, H), lambda m: (0, 0)),   # fetched once, reused
            pl.BlockSpec((1, H), lambda m: (0, 0)),
            pl.BlockSpec((H, C), lambda m: (0, 0)),
            pl.BlockSpec((1, C), lambda m: (0, 0)),
        ],
        out_specs=pl.BlockSpec((tile_m, C), lambda m: (m, 0)),
        compiler_params=pltpu.CompilerParams(
            dimension_semantics=("parallel",)),
        cost_estimate=pl.CostEstimate(
            flops=2 * N * K * H + 2 * N * H * C,
            transcendentals=N * (C + 1),
            bytes_accessed=(N * K + K * H + H * C + N * C) * 4),
    )(feats, p["fc1_w"], p["fc1_b"], p["fc2_w"], p["fc2_b"])


def convnet_forward(x, p):
    """x: (N, 1, 28, 28) float32 -> (N, 10) log-probs."""
    N = x.shape[0]
    x2 = x.reshape(N, 28, 28)                       # drop C=1 (free)
    feats = conv_stack(x2, p).reshape(N, 2000)      # free row-major reshape
    return fc_stack(feats, p)


# ------------------- one-time weight repacking (at init) -------------------

def prepare_params(params):
    """Repack PyTorch-convention weights into kernel-ready layouts, once."""
    w1 = np.asarray(params["conv1_w"], np.float32)   # (10, 1, 5, 5)
    b1 = np.asarray(params["conv1_b"], np.float32)   # (10,)
    w2 = np.asarray(params["conv2_w"], np.float32)   # (20, 10, 3, 3)
    b2 = np.asarray(params["conv2_b"], np.float32)   # (20,)
    fw1 = np.asarray(params["fc1_w"], np.float32)    # (500, 2000)
    fb1 = np.asarray(params["fc1_b"], np.float32)    # (500,)
    fw2 = np.asarray(params["fc2_w"], np.float32)    # (10, 500)
    fb2 = np.asarray(params["fc2_b"], np.float32)    # (10,)

    # conv1 banded weights: y1[h, c*24+wo] += x[h+ki, wo+kj] * w1[c,0,ki,kj]
    c1_band = np.zeros((5, 28, 10 * 24), np.float32)
    for ki in range(5):
        for c in range(10):
            for wo in range(24):
                for kj in range(5):
                    c1_band[ki, wo + kj, c * 24 + wo] = w1[c, 0, ki, kj]
    c1_bias = np.repeat(b1, 24)[None, :]             # (1, 240)

    # Exact 0/1 selection matrices for the 2x2 max-pool down-sampling step.
    sl = np.zeros((12, 23), np.float32)
    sl[np.arange(12), 2 * np.arange(12)] = 1.0
    sr = np.zeros((239, 120), np.float32)
    for c in range(10):
        for wo in range(12):
            sr[c * 24 + 2 * wo, c * 12 + wo] = 1.0

    # conv2 banded weights:
    # y2[h, co*10+wo] += pooled[h+ki, ci*12+wo+kj] * w2[co,ci,ki,kj]
    c2_band = np.zeros((3, 10 * 12, 20 * 10), np.float32)
    for ki in range(3):
        for co in range(20):
            for ci in range(10):
                for wo in range(10):
                    for kj in range(3):
                        c2_band[ki, ci * 12 + wo + kj, co * 10 + wo] = \
                            w2[co, ci, ki, kj]
    c2_bias = np.repeat(b2, 10)[None, :]             # (1, 200)

    # fc1: fold the PyTorch NCHW flatten (j = co*100 + ho*10 + wo) into a
    # one-time row permutation matching the conv kernel's (ho, co*10+wo)
    # feature layout (so no activation transpose is ever needed).
    fc1_w = (fw1.T.reshape(20, 10, 10, 500)
             .transpose(1, 0, 2, 3).reshape(2000, 500))

    return {
        "conv1_band": jnp.asarray(c1_band),
        "conv1_bias": jnp.asarray(c1_bias),
        "pool_sl": jnp.asarray(sl),
        "pool_sr": jnp.asarray(sr),
        "conv2_band": jnp.asarray(c2_band),
        "conv2_bias": jnp.asarray(c2_bias),
        "fc1_w": jnp.asarray(fc1_w),
        "fc1_b": jnp.asarray(fb1)[None, :],
        "fc2_w": jnp.asarray(fw2.T.copy()),
        "fc2_b": jnp.asarray(fb2)[None, :],
    }


# ------------------------------ reference (JAX) ------------------------------

def reference_forward(x, params):
    dn = ("NCHW", "OIHW", "NCHW")
    y = jax.lax.conv_general_dilated(x, params["conv1_w"], (1, 1), "VALID",
                                     dimension_numbers=dn)
    y = y + params["conv1_b"][None, :, None, None]
    y = jax.nn.relu(y)
    y = jax.lax.reduce_window(y, -jnp.inf, jax.lax.max,
                              (1, 1, 2, 2), (1, 1, 2, 2), "VALID")
    y = jax.lax.conv_general_dilated(y, params["conv2_w"], (1, 1), "VALID",
                                     dimension_numbers=dn)
    y = y + params["conv2_b"][None, :, None, None]
    y = jax.nn.relu(y)
    y = y.reshape(x.shape[0], -1)
    y = jax.nn.relu(y @ params["fc1_w"].T + params["fc1_b"])
    y = y @ params["fc2_w"].T + params["fc2_b"]
    return jax.nn.log_softmax(y, axis=1)


# ---------------------------------- main ----------------------------------

def init_params(key):
    ks = jax.random.split(key, 8)
    s = 0.05
    return {
        "conv1_w": s * jax.random.normal(ks[0], (10, 1, 5, 5), jnp.float32),
        "conv1_b": s * jax.random.normal(ks[1], (10,), jnp.float32),
        "conv2_w": s * jax.random.normal(ks[2], (20, 10, 3, 3), jnp.float32),
        "conv2_b": s * jax.random.normal(ks[3], (20,), jnp.float32),
        "fc1_w": s * jax.random.normal(ks[4], (500, 2000), jnp.float32),
        "fc1_b": s * jax.random.normal(ks[5], (500,), jnp.float32),
        "fc2_w": s * jax.random.normal(ks[6], (10, 500), jnp.float32),
        "fc2_b": s * jax.random.normal(ks[7], (10,), jnp.float32),
    }


if __name__ == "__main__":
    key = jax.random.PRNGKey(0)
    k_x, k_p = jax.random.split(key)
    x = jax.random.normal(k_x, (2, 1, 28, 28), jnp.float32)
    params = init_params(k_p)

    packed = prepare_params(params)          # one-time weight repack

    fwd = jax.jit(convnet_forward)
    out = jax.block_until_ready(fwd(x, packed))

    ref = jax.block_until_ready(reference_forward(x, params))
    np.testing.assert_allclose(np.asarray(out), np.asarray(ref),
                               rtol=1e-4, atol=2e-4)
    assert out.shape == (2, 10) and out.dtype == jnp.float32

    print("KERNEL_OK")
</pallas_src>

<mosaic_0001>
module attributes {stable_mosaic.version = 11 : i64} {
  func.func @_conv_stack_kernel(%arg0: i32, %arg1: memref<1x28x28xf32, #tpu.memory_space<vmem>>, %arg2: memref<5x28x240xf32, #tpu.memory_space<vmem>>, %arg3: memref<1x240xf32, #tpu.memory_space<vmem>>, %arg4: memref<12x23xf32, #tpu.memory_space<vmem>>, %arg5: memref<239x120xf32, #tpu.memory_space<vmem>>, %arg6: memref<3x120x200xf32, #tpu.memory_space<vmem>>, %arg7: memref<1x200xf32, #tpu.memory_space<vmem>>, %arg8: memref<1x10x200xf32, #tpu.memory_space<vmem>>) attributes {dimension_semantics = [#tpu.dimension_semantics<parallel>], iteration_bounds = array<i64: 2>, scalar_prefetch = 0 : i64, scratch_operands = 0 : i64, tpu.core_type = #tpu.core_type<tc>, window_params = [{transform_indices = @transform_0, window_bounds = array<i64: 1, 28, 28>}, {pipeline_mode = #tpu.pipeline_mode<synchronous>, transform_indices = @transform_1, window_bounds = array<i64: 5, 28, 240>}, {pipeline_mode = #tpu.pipeline_mode<synchronous>, transform_indices = @transform_2, window_bounds = array<i64: 1, 240>}, {pipeline_mode = #tpu.pipeline_mode<synchronous>, transform_indices = @transform_3, window_bounds = array<i64: 12, 23>}, {pipeline_mode = #tpu.pipeline_mode<synchronous>, transform_indices = @transform_4, window_bounds = array<i64: 239, 120>}, {pipeline_mode = #tpu.pipeline_mode<synchronous>, transform_indices = @transform_5, window_bounds = array<i64: 3, 120, 200>}, {pipeline_mode = #tpu.pipeline_mode<synchronous>, transform_indices = @transform_6, window_bounds = array<i64: 1, 200>}, {transform_indices = @transform_7, window_bounds = array<i64: 1, 10, 200>}]} {
    %c0 = arith.constant 0 : index
    %c0_0 = arith.constant 0 : index
    %c0_1 = arith.constant 0 : index
    %0 = vector.load %arg1[%c0, %c0_0, %c0_1] : memref<1x28x28xf32, #tpu.memory_space<vmem>>, vector<1x28x28xf32>
    %1 = vector.shape_cast %0 : vector<1x28x28xf32> to vector<28x28xf32>
    %2 = vector.extract_strided_slice %1 {offsets = [0, 0], sizes = [24, 28], strides = [1, 1]} : vector<28x28xf32> to vector<24x28xf32>
    %c0_2 = arith.constant 0 : index
    %c0_3 = arith.constant 0 : index
    %c0_4 = arith.constant 0 : index
    %3 = vector.load %arg2[%c0_2, %c0_3, %c0_4] : memref<5x28x240xf32, #tpu.memory_space<vmem>>, vector<1x28x240xf32>
    %4 = vector.shape_cast %3 : vector<1x28x240xf32> to vector<28x240xf32>
    %cst = arith.constant dense<0.000000e+00> : vector<24x240xf32>
    %5 = tpu.matmul %2, %4, %cst {dimension_numbers = #tpu.dot_dimension_numbers<[1], [0], [0], [1], [0, 0, 1, 1], [], []>} : vector<24x28xf32>, vector<28x240xf32>, vector<24x240xf32> -> vector<24x240xf32>
    %6 = vector.extract_strided_slice %1 {offsets = [1, 0], sizes = [24, 28], strides = [1, 1]} : vector<28x28xf32> to vector<24x28xf32>
    %c1 = arith.constant 1 : index
    %c0_5 = arith.constant 0 : index
    %c0_6 = arith.constant 0 : index
    %7 = vector.load %arg2[%c1, %c0_5, %c0_6] : memref<5x28x240xf32, #tpu.memory_space<vmem>>, vector<1x28x240xf32>
    %8 = vector.shape_cast %7 : vector<1x28x240xf32> to vector<28x240xf32>
    %cst_7 = arith.constant dense<0.000000e+00> : vector<24x240xf32>
    %9 = tpu.matmul %6, %8, %cst_7 {dimension_numbers = #tpu.dot_dimension_numbers<[1], [0], [0], [1], [0, 0, 1, 1], [], []>} : vector<24x28xf32>, vector<28x240xf32>, vector<24x240xf32> -> vector<24x240xf32>
    %10 = arith.addf %5, %9 : vector<24x240xf32>
    %11 = vector.extract_strided_slice %1 {offsets = [2, 0], sizes = [24, 28], strides = [1, 1]} : vector<28x28xf32> to vector<24x28xf32>
    %c2 = arith.constant 2 : index
    %c0_8 = arith.constant 0 : index
    %c0_9 = arith.constant 0 : index
    %12 = vector.load %arg2[%c2, %c0_8, %c0_9] : memref<5x28x240xf32, #tpu.memory_space<vmem>>, vector<1x28x240xf32>
    %13 = vector.shape_cast %12 : vector<1x28x240xf32> to vector<28x240xf32>
    %cst_10 = arith.constant dense<0.000000e+00> : vector<24x240xf32>
    %14 = tpu.matmul %11, %13, %cst_10 {dimension_numbers = #tpu.dot_dimension_numbers<[1], [0], [0], [1], [0, 0, 1, 1], [], []>} : vector<24x28xf32>, vector<28x240xf32>, vector<24x240xf32> -> vector<24x240xf32>
    %15 = arith.addf %10, %14 : vector<24x240xf32>
    %16 = vector.extract_strided_slice %1 {offsets = [3, 0], sizes = [24, 28], strides = [1, 1]} : vector<28x28xf32> to vector<24x28xf32>
    %c3 = arith.constant 3 : index
    %c0_11 = arith.constant 0 : index
    %c0_12 = arith.constant 0 : index
    %17 = vector.load %arg2[%c3, %c0_11, %c0_12] : memref<5x28x240xf32, #tpu.memory_space<vmem>>, vector<1x28x240xf32>
    %18 = vector.shape_cast %17 : vector<1x28x240xf32> to vector<28x240xf32>
    %cst_13 = arith.constant dense<0.000000e+00> : vector<24x240xf32>
    %19 = tpu.matmul %16, %18, %cst_13 {dimension_numbers = #tpu.dot_dimension_numbers<[1], [0], [0], [1], [0, 0, 1, 1], [], []>} : vector<24x28xf32>, vector<28x240xf32>, vector<24x240xf32> -> vector<24x240xf32>
    %20 = arith.addf %15, %19 : vector<24x240xf32>
    %21 = vector.extract_strided_slice %1 {offsets = [4, 0], sizes = [24, 28], strides = [1, 1]} : vector<28x28xf32> to vector<24x28xf32>
    %c4 = arith.constant 4 : index
    %c0_14 = arith.constant 0 : index
    %c0_15 = arith.constant 0 : index
    %22 = vector.load %arg2[%c4, %c0_14, %c0_15] : memref<5x28x240xf32, #tpu.memory_space<vmem>>, vector<1x28x240xf32>
    %23 = vector.shape_cast %22 : vector<1x28x240xf32> to vector<28x240xf32>
    %cst_16 = arith.constant dense<0.000000e+00> : vector<24x240xf32>
    %24 = tpu.matmul %21, %23, %cst_16 {dimension_numbers = #tpu.dot_dimension_numbers<[1], [0], [0], [1], [0, 0, 1, 1], [], []>} : vector<24x28xf32>, vector<28x240xf32>, vector<24x240xf32> -> vector<24x240xf32>
    %25 = arith.addf %20, %24 : vector<24x240xf32>
    %c0_17 = arith.constant 0 : index
    %c0_18 = arith.constant 0 : index
    %26 = vector.load %arg3[%c0_17, %c0_18] : memref<1x240xf32, #tpu.memory_space<vmem>>, vector<1x240xf32>
    %27 = vector.broadcast %26 : vector<1x240xf32> to vector<24x240xf32>
    %28 = arith.addf %25, %27 : vector<24x240xf32>
    %cst_19 = arith.constant 0.000000e+00 : f32
    %29 = vector.broadcast %cst_19 : f32 to vector<24x240xf32>
    %30 = arith.maximumf %28, %29 : vector<24x240xf32>
    %31 = vector.extract_strided_slice %30 {offsets = [0, 0], sizes = [23, 240], strides = [1, 1]} : vector<24x240xf32> to vector<23x240xf32>
    %32 = vector.extract_strided_slice %30 {offsets = [1, 0], sizes = [23, 240], strides = [1, 1]} : vector<24x240xf32> to vector<23x240xf32>
    %33 = arith.maximumf %31, %32 : vector<23x240xf32>
    %34 = vector.extract_strided_slice %33 {offsets = [0, 0], sizes = [23, 239], strides = [1, 1]} : vector<23x240xf32> to vector<23x239xf32>
    %35 = vector.extract_strided_slice %33 {offsets = [0, 1], sizes = [23, 239], strides = [1, 1]} : vector<23x240xf32> to vector<23x239xf32>
    %36 = arith.maximumf %34, %35 : vector<23x239xf32>
    %c0_20 = arith.constant 0 : index
    %c0_21 = arith.constant 0 : index
    %37 = vector.load %arg4[%c0_20, %c0_21] : memref<12x23xf32, #tpu.memory_space<vmem>>, vector<12x23xf32>
    %cst_22 = arith.constant dense<0.000000e+00> : vector<12x239xf32>
    %38 = tpu.matmul %37, %36, %cst_22 {dimension_numbers = #tpu.dot_dimension_numbers<[1], [0], [0], [1], [0, 0, 1, 1], [], []>} : vector<12x23xf32>, vector<23x239xf32>, vector<12x239xf32> -> vector<12x239xf32>
    %c0_23 = arith.constant 0 : index
    %c0_24 = arith.constant 0 : index
    %39 = vector.load %arg5[%c0_23, %c0_24] : memref<239x120xf32, #tpu.memory_space<vmem>>, vector<239x120xf32>
    %cst_25 = arith.constant dense<0.000000e+00> : vector<12x120xf32>
    %40 = tpu.matmul %38, %39, %cst_25 {dimension_numbers = #tpu.dot_dimension_numbers<[1], [0], [0], [1], [0, 0, 1, 1], [], []>} : vector<12x239xf32>, vector<239x120xf32>, vector<12x120xf32> -> vector<12x120xf32>
    %41 = vector.extract_strided_slice %40 {offsets = [0, 0], sizes = [10, 120], strides = [1, 1]} : vector<12x120xf32> to vector<10x120xf32>
    %c0_26 = arith.constant 0 : index
    %c0_27 = arith.constant 0 : index
    %c0_28 = arith.constant 0 : index
    %42 = vector.load %arg6[%c0_26, %c0_27, %c0_28] : memref<3x120x200xf32, #tpu.memory_space<vmem>>, vector<1x120x200xf32>
    %43 = vector.shape_cast %42 : vector<1x120x200xf32> to vector<120x200xf32>
    %cst_29 = arith.constant dense<0.000000e+00> : vector<10x200xf32>
    %44 = tpu.matmul %41, %43, %cst_29 {dimension_numbers = #tpu.dot_dimension_numbers<[1], [0], [0], [1], [0, 0, 1, 1], [], []>} : vector<10x120xf32>, vector<120x200xf32>, vector<10x200xf32> -> vector<10x200xf32>
    %45 = vector.extract_strided_slice %40 {offsets = [1, 0], sizes = [10, 120], strides = [1, 1]} : vector<12x120xf32> to vector<10x120xf32>
    %c1_30 = arith.constant 1 : index
    %c0_31 = arith.constant 0 : index
    %c0_32 = arith.constant 0 : index
    %46 = vector.load %arg6[%c1_30, %c0_31, %c0_32] : memref<3x120x200xf32, #tpu.memory_space<vmem>>, vector<1x120x200xf32>
    %47 = vector.shape_cast %46 : vector<1x120x200xf32> to vector<120x200xf32>
    %cst_33 = arith.constant dense<0.000000e+00> : vector<10x200xf32>
    %48 = tpu.matmul %45, %47, %cst_33 {dimension_numbers = #tpu.dot_dimension_numbers<[1], [0], [0], [1], [0, 0, 1, 1], [], []>} : vector<10x120xf32>, vector<120x200xf32>, vector<10x200xf32> -> vector<10x200xf32>
    %49 = arith.addf %44, %48 : vector<10x200xf32>
    %50 = vector.extract_strided_slice %40 {offsets = [2, 0], sizes = [10, 120], strides = [1, 1]} : vector<12x120xf32> to vector<10x120xf32>
    %c2_34 = arith.constant 2 : index
    %c0_35 = arith.constant 0 : index
    %c0_36 = arith.constant 0 : index
    %51 = vector.load %arg6[%c2_34, %c0_35, %c0_36] : memref<3x120x200xf32, #tpu.memory_space<vmem>>, vector<1x120x200xf32>
    %52 = vector.shape_cast %51 : vector<1x120x200xf32> to vector<120x200xf32>
    %cst_37 = arith.constant dense<0.000000e+00> : vector<10x200xf32>
    %53 = tpu.matmul %50, %52, %cst_37 {dimension_numbers = #tpu.dot_dimension_numbers<[1], [0], [0], [1], [0, 0, 1, 1], [], []>} : vector<10x120xf32>, vector<120x200xf32>, vector<10x200xf32> -> vector<10x200xf32>
    %54 = arith.addf %49, %53 : vector<10x200xf32>
    %c0_38 = arith.constant 0 : index
    %c0_39 = arith.constant 0 : index
    %55 = vector.load %arg7[%c0_38, %c0_39] : memref<1x200xf32, #tpu.memory_space<vmem>>, vector<1x200xf32>
    %56 = vector.broadcast %55 : vector<1x200xf32> to vector<10x200xf32>
    %57 = arith.addf %54, %56 : vector<10x200xf32>
    %cst_40 = arith.constant 0.000000e+00 : f32
    %58 = vector.broadcast %cst_40 : f32 to vector<10x200xf32>
    %59 = arith.maximumf %57, %58 : vector<10x200xf32>
    %c0_41 = arith.constant 0 : index
    %c0_42 = arith.constant 0 : index
    %c0_43 = arith.constant 0 : index
    %60 = vector.load %arg8[%c0_41, %c0_42, %c0_43] : memref<1x10x200xf32, #tpu.memory_space<vmem>>, vector<1x10x200xf32>
    %61 = vector.shape_cast %60 : vector<1x10x200xf32> to vector<10x200xf32>
    %62 = vector.shape_cast %59 : vector<10x200xf32> to vector<1x10x200xf32>
    tpu.vector_store %arg8[%c0_41, %c0_42, %c0_43], %62 {strides = array<i32>} : memref<1x10x200xf32, #tpu.memory_space<vmem>>, vector<1x10x200xf32>,
    return
  }
  func.func @transform_0(%arg0: i32) -> (i32, i32, i32) {
    %c0_i32 = arith.constant 0 : i32
    %c0_i32_0 = arith.constant 0 : i32
    %c0_i32_1 = arith.constant 0 : i32
    return %arg0, %c0_i32, %c0_i32_0 : i32, i32, i32
  }
  func.func @transform_1(%arg0: i32) -> (i32, i32, i32) {
    %c0_i32 = arith.constant 0 : i32
    %c0_i32_0 = arith.constant 0 : i32
    %c0_i32_1 = arith.constant 0 : i32
    %c0_i32_2 = arith.constant 0 : i32
    return %c0_i32, %c0_i32_0, %c0_i32_1 : i32, i32, i32
  }
  func.func @transform_2(%arg0: i32) -> (i32, i32) {
    %c0_i32 = arith.constant 0 : i32
    %c0_i32_0 = arith.constant 0 : i32
    %c0_i32_1 = arith.constant 0 : i32
    return %c0_i32, %c0_i32_0 : i32, i32
  }
  func.func @transform_3(%arg0: i32) -> (i32, i32) {
    %c0_i32 = arith.constant 0 : i32
    %c0_i32_0 = arith.constant 0 : i32
    %c0_i32_1 = arith.constant 0 : i32
    return %c0_i32, %c0_i32_0 : i32, i32
  }
  func.func @transform_4(%arg0: i32) -> (i32, i32) {
    %c0_i32 = arith.constant 0 : i32
    %c0_i32_0 = arith.constant 0 : i32
    %c0_i32_1 = arith.constant 0 : i32
    return %c0_i32, %c0_i32_0 : i32, i32
  }
  func.func @transform_5(%arg0: i32) -> (i32, i32, i32) {
    %c0_i32 = arith.constant 0 : i32
    %c0_i32_0 = arith.constant 0 : i32
    %c0_i32_1 = arith.constant 0 : i32
    %c0_i32_2 = arith.constant 0 : i32
    return %c0_i32, %c0_i32_0, %c0_i32_1 : i32, i32, i32
  }
  func.func @transform_6(%arg0: i32) -> (i32, i32) {
    %c0_i32 = arith.constant 0 : i32
    %c0_i32_0 = arith.constant 0 : i32
    %c0_i32_1 = arith.constant 0 : i32
    return %c0_i32, %c0_i32_0 : i32, i32
  }
  func.func @transform_7(%arg0: i32) -> (i32, i32, i32) {
    %c0_i32 = arith.constant 0 : i32
    %c0_i32_0 = arith.constant 0 : i32
    %c0_i32_1 = arith.constant 0 : i32
    return %arg0, %c0_i32, %c0_i32_0 : i32, i32, i32
  }
}

module attributes {stable_mosaic.version = 11 : i64} {
  func.func @_fc_stack_kernel(%arg0: i32, %arg1: memref<2x2000xf32, #tpu.memory_space<vmem>>, %arg2: memref<2000x500xf32, #tpu.memory_space<vmem>>, %arg3: memref<1x500xf32, #tpu.memory_space<vmem>>, %arg4: memref<500x10xf32, #tpu.memory_space<vmem>>, %arg5: memref<1x10xf32, #tpu.memory_space<vmem>>, %arg6: memref<2x10xf32, #tpu.memory_space<vmem>>) attributes {dimension_semantics = [#tpu.dimension_semantics<parallel>], iteration_bounds = array<i64: 1>, scalar_prefetch = 0 : i64, scratch_operands = 0 : i64, tpu.core_type = #tpu.core_type<tc>, window_params = [{transform_indices = @transform_0, window_bounds = array<i64: 2, 2000>}, {pipeline_mode = #tpu.pipeline_mode<synchronous>, transform_indices = @transform_1, window_bounds = array<i64: 2000, 500>}, {pipeline_mode = #tpu.pipeline_mode<synchronous>, transform_indices = @transform_2, window_bounds = array<i64: 1, 500>}, {pipeline_mode = #tpu.pipeline_mode<synchronous>, transform_indices = @transform_3, window_bounds = array<i64: 500, 10>}, {pipeline_mode = #tpu.pipeline_mode<synchronous>, transform_indices = @transform_4, window_bounds = array<i64: 1, 10>}, {transform_indices = @transform_5, window_bounds = array<i64: 2, 10>}]} {
    %c0 = arith.constant 0 : index
    %c0_0 = arith.constant 0 : index
    %0 = vector.load %arg1[%c0, %c0_0] : memref<2x2000xf32, #tpu.memory_space<vmem>>, vector<2x2000xf32>
    %c0_1 = arith.constant 0 : index
    %c0_2 = arith.constant 0 : index
    %1 = vector.load %arg2[%c0_1, %c0_2] : memref<2000x500xf32, #tpu.memory_space<vmem>>, vector<2000x500xf32>
    %cst = arith.constant dense<0.000000e+00> : vector<2x500xf32>
    %2 = tpu.matmul %0, %1, %cst {dimension_numbers = #tpu.dot_dimension_numbers<[1], [0], [0], [1], [0, 0, 1, 1], [], []>} : vector<2x2000xf32>, vector<2000x500xf32>, vector<2x500xf32> -> vector<2x500xf32>
    %c0_3 = arith.constant 0 : index
    %c0_4 = arith.constant 0 : index
    %3 = vector.load %arg3[%c0_3, %c0_4] : memref<1x500xf32, #tpu.memory_space<vmem>>, vector<1x500xf32>
    %4 = vector.broadcast %3 : vector<1x500xf32> to vector<2x500xf32>
    %5 = arith.addf %2, %4 : vector<2x500xf32>
    %cst_5 = arith.constant 0.000000e+00 : f32
    %6 = vector.broadcast %cst_5 : f32 to vector<2x500xf32>
    %7 = arith.maximumf %5, %6 : vector<2x500xf32>
    %c0_6 = arith.constant 0 : index
    %c0_7 = arith.constant 0 : index
    %8 = vector.load %arg4[%c0_6, %c0_7] : memref<500x10xf32, #tpu.memory_space<vmem>>, vector<500x10xf32>
    %cst_8 = arith.constant dense<0.000000e+00> : vector<2x10xf32>
    %9 = tpu.matmul %7, %8, %cst_8 {dimension_numbers = #tpu.dot_dimension_numbers<[1], [0], [0], [1], [0, 0, 1, 1], [], []>} : vector<2x500xf32>, vector<500x10xf32>, vector<2x10xf32> -> vector<2x10xf32>
    %c0_9 = arith.constant 0 : index
    %c0_10 = arith.constant 0 : index
    %10 = vector.load %arg5[%c0_9, %c0_10] : memref<1x10xf32, #tpu.memory_space<vmem>>, vector<1x10xf32>
    %11 = vector.broadcast %10 : vector<1x10xf32> to vector<2x10xf32>
    %12 = arith.addf %9, %11 : vector<2x10xf32>
    %cst_11 = arith.constant dense<0xFF800000> : vector<2xf32>
    %13 = vector.multi_reduction <maximumf>, %12, %cst_11 [1] : vector<2x10xf32> to vector<2xf32>
    %14 = vector.shape_cast %13 : vector<2xf32> to vector<2x1xf32>
    %15 = vector.broadcast %14 : vector<2x1xf32> to vector<2x10xf32>
    %16 = arith.subf %12, %15 : vector<2x10xf32>
    %17 = math.exp %16 : vector<2x10xf32>
    %cst_12 = arith.constant dense<0.000000e+00> : vector<2xf32>
    %18 = vector.multi_reduction <add>, %17, %cst_12 [1] : vector<2x10xf32> to vector<2xf32>
    %19 = vector.shape_cast %18 : vector<2xf32> to vector<2x1xf32>
    %20 = math.log %19 : vector<2x1xf32>
    %21 = arith.addf %20, %14 : vector<2x1xf32>
    %22 = vector.broadcast %21 : vector<2x1xf32> to vector<2x10xf32>
    %23 = arith.subf %12, %22 : vector<2x10xf32>
    %c0_13 = arith.constant 0 : index
    %c0_14 = arith.constant 0 : index
    %24 = vector.load %arg6[%c0_13, %c0_14] : memref<2x10xf32, #tpu.memory_space<vmem>>, vector<2x10xf32>
    tpu.vector_store %arg6[%c0_13, %c0_14], %23 {strides = array<i32>} : memref<2x10xf32, #tpu.memory_space<vmem>>, vector<2x10xf32>,
    return
  }
  func.func @transform_0(%arg0: i32) -> (i32, i32) {
    %c0_i32 = arith.constant 0 : i32
    %c0_i32_0 = arith.constant 0 : i32
    return %arg0, %c0_i32 : i32, i32
  }
  func.func @transform_1(%arg0: i32) -> (i32, i32) {
    %c0_i32 = arith.constant 0 : i32
    %c0_i32_0 = arith.constant 0 : i32
    %c0_i32_1 = arith.constant 0 : i32
    return %c0_i32, %c0_i32_0 : i32, i32
  }
  func.func @transform_2(%arg0: i32) -> (i32, i32) {
    %c0_i32 = arith.constant 0 : i32
    %c0_i32_0 = arith.constant 0 : i32
    %c0_i32_1 = arith.constant 0 : i32
    return %c0_i32, %c0_i32_0 : i32, i32
  }
  func.func @transform_3(%arg0: i32) -> (i32, i32) {
    %c0_i32 = arith.constant 0 : i32
    %c0_i32_0 = arith.constant 0 : i32
    %c0_i32_1 = arith.constant 0 : i32
    return %c0_i32, %c0_i32_0 : i32, i32
  }
  func.func @transform_4(%arg0: i32) -> (i32, i32) {
    %c0_i32 = arith.constant 0 : i32
    %c0_i32_0 = arith.constant 0 : i32
    %c0_i32_1 = arith.constant 0 : i32
    return %c0_i32, %c0_i32_0 : i32, i32
  }
  func.func @transform_5(%arg0: i32) -> (i32, i32) {
    %c0_i32 = arith.constant 0 : i32
    %c0_i32_0 = arith.constant 0 : i32
    return %arg0, %c0_i32 : i32, i32
  }
}

</mosaic_0001>

<llo_original>
// kernel: convnet_forward.2
$region0: #{convnet_forward.2}
  #allocation0 [shape = 'u32[]', space=smem, size = 0x4, offset = 0x4, fixed_abs, tag = 'smem constant byte address 0x4 - core index']
  #allocation1 [shape = 'u32[72,128]{1,0:T(1,128)}', space=vmem, size = 0x9000, scoped, tag = 'internal scratch']
  %s0 = inlined_call_operand.vmem [shape: f32[2,28,28], index: 0, kind: input, shape index: {}]
  %s1 = inlined_call_operand.hbm [shape: f32[5,28,240], index: 1, kind: input, shape index: {}]
  %s2 = inlined_call_operand.hbm [shape: f32[1,240], index: 2, kind: input, shape index: {}]
  %s3 = inlined_call_operand.hbm [shape: f32[12,23], index: 3, kind: input, shape index: {}]
  %s4 = inlined_call_operand.hbm [shape: f32[239,120], index: 4, kind: input, shape index: {}]
  %s5 = inlined_call_operand.vmem [shape: f32[3,120,200], index: 5, kind: input, shape index: {}]
  %s6 = inlined_call_operand.hbm [shape: f32[1,200], index: 6, kind: input, shape index: {}]
  %s7 = inlined_call_operand.vmem [shape: f32[2,10,200], index: 7, kind: output, shape index: {}]
  %s8 = sld [smem:[#allocation0]]
  $region81: #{convnet_forward.2} parent=0
    _
  %s10 = ssub.s32 1, %s8
  %s11 = scalar_select 0, %s10, %s8
  $region1: #{convnet_forward.2} parent=0
    #allocation2 [shape = 'u8[163840]{0}', space=vmem, size = 0x28000, scoped, tag = 'input window, operand 1, single buffered']
    #allocation3 [shape = 's32[2]{0}', space=sflag, size = 0x8, scoped, tag = 'scoped memory for convnet_forward.2']
    #allocation4 [shape = 'u8[1024]{0}', space=vmem, size = 0x400, scoped, tag = 'input window, operand 2, single buffered']
    #allocation5 [shape = 's32[1]{0}', space=sflag, size = 0x4, scoped, tag = 'scoped memory for convnet_forward.2']
    #allocation6 [shape = 'u8[8192]{0}', space=vmem, size = 0x2000, scoped, tag = 'input window, operand 3, single buffered']
    #allocation7 [shape = 'u8[122880]{0}', space=vmem, size = 0x1e000, scoped, tag = 'input window, operand 4, single buffered']
    #allocation8 [shape = 's32[1]{0}', space=sflag, size = 0x4, scoped, tag = 'scoped memory for convnet_forward.2']
    #allocation9 [shape = 'u8[1024]{0}', space=vmem, size = 0x400, scoped, tag = 'input window, operand 6, single buffered']
    %12 = vsyncpa [#allocation3], 0
    %13 = vsyncpa [#allocation5], 0
    %14 = vsyncpa [#allocation8], 0
    loop: start=0, step=1, limit=4
    $region2: #{convnet_forward.2} parent=1 // loop_pre_header
      _
    $region3: #{convnet_forward.2} parent=1 // loop_header
      %s16 = sphi 0, %s20
      %p17 = scmp.ge.s32.totalorder %s16, 4
      %s26 = sphi 0, %s28
      %s29 = sphi 0, %s26
      %s30 = sphi 0, %s29
      %s46 = sphi 0, %s30
      %s50 = sphi 0, %s50
      %s52 = sphi 0, %s50
      %s53 = sphi 0, %s52
      %s67 = sphi 0, %s53
      %s71 = sphi 0, %s71
      %s73 = sphi 0, %s71
      %s74 = sphi 0, %s73
      %s88 = sphi 0, %s74
      %s92 = sphi 0, %s92
      %s94 = sphi 0, %s92
      %s95 = sphi 0, %s94
      %s109 = sphi 0, %s95
      %s113 = sphi 0, %s113
      %s115 = sphi 0, %s113
      %s116 = sphi 0, %s115
      %s130 = sphi 0, %s116
      %s134 = sphi 0, %s134
      %s136 = sphi 0, %s134
      %s137 = sphi 0, %s136
      %s151 = sphi 0, %s137
      %s155 = sphi 0, %s155
      %s157 = sphi 0, %s155
      %s158 = sphi 0, %s157
      %s172 = sphi 0, %s158
      %s178 = sphi 0, %s180
      %s181 = sphi 0, %s178
      %s182 = sphi 0, %s181
      %s198 = sphi 0, %s182
    $region4: #{convnet_forward.2} parent=1 // loop_header_branch
      %19 = sbr.rel (%p17) target = $region8
    $region5: #{convnet_forward.2} parent=1 // loop_body
      %s21 = ssub.s32 %s16, 1
      %s22 = ssub.s32 %s16, 2
      %s23 = sadd.s32 %s16, 1
      %s24 = ssub.s32 %s16, %s23
      %p25 = scmp.eq.s32.totalorder %s24, 0
      %s27 = sadd.s32 %s26, 1
      %s28 = scalar_select %p25, %s26, %s27
      %p31 = pneg %p25
      %p32 = scmp.eq.s32.totalorder %s16, 1
      %p33 = por %p31, %p32
      %p34 = scmp.ne.s32.totalorder %s26, %s29
      %p35 = scmp.eq.s32.totalorder %s16, 0
      %p36 = por %p34, %p35
      %p37 = scmp.ne.s32.totalorder %s26, %s29
      %p38 = scmp.eq.s32.totalorder %s21, 1
      %p39 = por %p37, %p38
      %p40 = scmp.ne.s32.totalorder %s29, %s30
      %p41 = scmp.eq.s32.totalorder %s21, 0
      %p42 = por %p40, %p41
      %p43 = scmp.ne.s32.totalorder %s29, %s30
      %p44 = scmp.eq.s32.totalorder %s22, 1
      %p45 = por %p43, %p44
      %p47 = scmp.ne.s32.totalorder %s30, %s46
      %p48 = scmp.eq.s32.totalorder %s22, 0
      %p49 = por %p47, %p48
      %s51 = sadd.s32 %s50, 1
      %p54 = scmp.eq.s32.totalorder %s16, 1
      %p55 = scmp.ne.s32.totalorder %s50, %s52
      %p56 = scmp.eq.s32.totalorder %s16, 0
      %p57 = por %p55, %p56
      %p58 = scmp.ne.s32.totalorder %s50, %s52
      %p59 = scmp.eq.s32.totalorder %s21, 1
      %p60 = por %p58, %p59
      %p61 = scmp.ne.s32.totalorder %s52, %s53
      %p62 = scmp.eq.s32.totalorder %s21, 0
      %p63 = por %p61, %p62
      %p64 = scmp.ne.s32.totalorder %s52, %s53
      %p65 = scmp.eq.s32.totalorder %s22, 1
      %p66 = por %p64, %p65
      %p68 = scmp.ne.s32.totalorder %s53, %s67
      %p69 = scmp.eq.s32.totalorder %s22, 0
      %p70 = por %p68, %p69
      %s72 = sadd.s32 %s71, 1
      %p75 = scmp.eq.s32.totalorder %s16, 1
      %p76 = scmp.ne.s32.totalorder %s71, %s73
      %p77 = scmp.eq.s32.totalorder %s16, 0
      %p78 = por %p76, %p77
      %p79 = scmp.ne.s32.totalorder %s71, %s73
      %p80 = scmp.eq.s32.totalorder %s21, 1
      %p81 = por %p79, %p80
      %p82 = scmp.ne.s32.totalorder %s73, %s74
      %p83 = scmp.eq.s32.totalorder %s21, 0
      %p84 = por %p82, %p83
      %p85 = scmp.ne.s32.totalorder %s73, %s74
      %p86 = scmp.eq.s32.totalorder %s22, 1
      %p87 = por %p85, %p86
      %p89 = scmp.ne.s32.totalorder %s74, %s88
      %p90 = scmp.eq.s32.totalorder %s22, 0
      %p91 = por %p89, %p90
      %s93 = sadd.s32 %s92, 1
      %p96 = scmp.eq.s32.totalorder %s16, 1
      %p97 = scmp.ne.s32.totalorder %s92, %s94
      %p98 = scmp.eq.s32.totalorder %s16, 0
      %p99 = por %p97, %p98
      %p100 = scmp.ne.s32.totalorder %s92, %s94
      %p101 = scmp.eq.s32.totalorder %s21, 1
      %p102 = por %p100, %p101
      %p103 = scmp.ne.s32.totalorder %s94, %s95
      %p104 = scmp.eq.s32.totalorder %s21, 0
      %p105 = por %p103, %p104
      %p106 = scmp.ne.s32.totalorder %s94, %s95
      %p107 = scmp.eq.s32.totalorder %s22, 1
      %p108 = por %p106, %p107
      %p110 = scmp.ne.s32.totalorder %s95, %s109
      %p111 = scmp.eq.s32.totalorder %s22, 0
      %p112 = por %p110, %p111
      %s114 = sadd.s32 %s113, 1
      %p117 = scmp.eq.s32.totalorder %s16, 1
      %p118 = scmp.ne.s32.totalorder %s113, %s115
      %p119 = scmp.eq.s32.totalorder %s16, 0
      %p120 = por %p118, %p119
      %p121 = scmp.ne.s32.totalorder %s113, %s115
      %p122 = scmp.eq.s32.totalorder %s21, 1
      %p123 = por %p121, %p122
      %p124 = scmp.ne.s32.totalorder %s115, %s116
      %p125 = scmp.eq.s32.totalorder %s21, 0
      %p126 = por %p124, %p125
      %p127 = scmp.ne.s32.totalorder %s115, %s116
      %p128 = scmp.eq.s32.totalorder %s22, 1
      %p129 = por %p127, %p128
      %p131 = scmp.ne.s32.totalorder %s116, %s130
      %p132 = scmp.eq.s32.totalorder %s22, 0
      %p133 = por %p131, %p132
      %s135 = sadd.s32 %s134, 1
      %p138 = scmp.eq.s32.totalorder %s16, 1
      %p139 = scmp.ne.s32.totalorder %s134, %s136
      %p140 = scmp.eq.s32.totalorder %s16, 0
      %p141 = por %p139, %p140
      %p142 = scmp.ne.s32.totalorder %s134, %s136
      %p143 = scmp.eq.s32.totalorder %s21, 1
      %p144 = por %p142, %p143
      %p145 = scmp.ne.s32.totalorder %s136, %s137
      %p146 = scmp.eq.s32.totalorder %s21, 0
      %p147 = por %p145, %p146
      %p148 = scmp.ne.s32.totalorder %s136, %s137
      %p149 = scmp.eq.s32.totalorder %s22, 1
      %p150 = por %p148, %p149
      %p152 = scmp.ne.s32.totalorder %s137, %s151
      %p153 = scmp.eq.s32.totalorder %s22, 0
      %p154 = por %p152, %p153
      %s156 = sadd.s32 %s155, 1
      %p159 = scmp.eq.s32.totalorder %s16, 1
      %p160 = scmp.ne.s32.totalorder %s155, %s157
      %p161 = scmp.eq.s32.totalorder %s16, 0
      %p162 = por %p160, %p161
      %p163 = scmp.ne.s32.totalorder %s155, %s157
      %p164 = scmp.eq.s32.totalorder %s21, 1
      %p165 = por %p163, %p164
      %p166 = scmp.ne.s32.totalorder %s157, %s158
      %p167 = scmp.eq.s32.totalorder %s21, 0
      %p168 = por %p166, %p167
      %p169 = scmp.ne.s32.totalorder %s157, %s158
      %p170 = scmp.eq.s32.totalorder %s22, 1
      %p171 = por %p169, %p170
      %p173 = scmp.ne.s32.totalorder %s158, %s172
      %p174 = scmp.eq.s32.totalorder %s22, 0
      %p175 = por %p173, %p174
      %s176 = ssub.s32 %s16, %s23
      %p177 = scmp.eq.s32.totalorder %s176, 0
      %s179 = sadd.s32 %s178, 1
      %s180 = scalar_select %p177, %s178, %s179
      %p183 = pneg %p177
      %p184 = scmp.eq.s32.totalorder %s16, 1
      %p185 = por %p183, %p184
      %p186 = scmp.ne.s32.totalorder %s178, %s181
      %p187 = scmp.eq.s32.totalorder %s16, 0
      %p188 = por %p186, %p187
      %p189 = scmp.ne.s32.totalorder %s178, %s181
      %p190 = scmp.eq.s32.totalorder %s21, 1
      %p191 = por %p189, %p190
      %p192 = scmp.ne.s32.totalorder %s181, %s182
      %p193 = scmp.eq.s32.totalorder %s21, 0
      %p194 = por %p192, %p193
      %p195 = scmp.ne.s32.totalorder %s181, %s182
      %p196 = scmp.eq.s32.totalorder %s22, 1
      %p197 = por %p195, %p196
      %p199 = scmp.ne.s32.totalorder %s182, %s198
      %p200 = scmp.eq.s32.totalorder %s22, 0
      %p201 = por %p199, %p200
      %p202 = scmp.le.s32.totalorder 1, %s16
      %p203 = scmp.lt.s32.totalorder %s16, 3
      %p204 = pnand %p202, %p203
      %p205 = pneg %p204
      // Predicated region
      $region9: #{convnet_forward.2} parent=5 // pred_check
        _
      $region10: #{convnet_forward.2} parent=5 // pred_check_branch
        %207 = sbr.rel (%p204) target = $region12
      $region11: #{convnet_forward.2} parent=5 // pred_region
        %s208 = ssub.s32 %s16, 1
        // Predicated region
        $region13: #{convnet_forward.2} parent=11 // pred_check
          %p209 = pneg %p63
        $region14: #{convnet_forward.2} parent=11 // pred_check_branch
          %211 = sbr.rel (%p209) target = $region16
        $region15: #{convnet_forward.2} parent=11 // pred_region
          %213 = vsyncadd [#allocation3], 0
          %s214 = sshll.u32 %s1, 4
          %s215 = int_to_ptr.hbm [resolvable:$true] %s214
          %s216 = sshll.u32 [#allocation2], 4
          %s217 = int_to_ptr.vmem [resolvable:$true] %s216
          %222 = dma.hbm_to_vmem [thread:$0]  %s215, 5120, %s217, [#allocation3], 256, 256, 16
        $region16: #{convnet_forward.2} parent=11 // pred_fallthru
          _
        // Predicated region
        $region17: #{convnet_forward.2} parent=11 // pred_check
          %p223 = pneg %p84
        $region18: #{convnet_forward.2} parent=11 // pred_check_branch
          %225 = sbr.rel (%p223) target = $region20
        $region19: #{convnet_forward.2} parent=11 // pred_region
          %227 = vsyncadd [#allocation5], 0
          %s229 = sshll.u32 %s2, 4
          %s230 = int_to_ptr.hbm [resolvable:$true] %s229
          %s231 = sshll.u32 [#allocation4], 4
          %s232 = int_to_ptr.vmem [resolvable:$true] %s231
          %234 = dma.hbm_to_vmem [thread:$0]  %s230, 32, %s232, [#allocation5]
        $region20: #{convnet_forward.2} parent=11 // pred_fallthru
          _
        // Predicated region
        $region21: #{convnet_forward.2} parent=11 // pred_check
          %p235 = pneg %p105
        $region22: #{convnet_forward.2} parent=11 // pred_check_branch
          %237 = sbr.rel (%p235) target = $region24
        $region23: #{convnet_forward.2} parent=11 // pred_region
          %239 = vsyncadd [#allocation5], 0
          %s240 = sshll.u32 %s3, 4
          %s241 = int_to_ptr.hbm [resolvable:$true] %s240
          %s242 = sshll.u32 [#allocation6], 4
          %s243 = int_to_ptr.vmem [resolvable:$true] %s242
          %248 = dma.hbm_to_vmem [thread:$0]  %s241, 256, %s243, [#allocation5], 128, 128, 8
        $region24: #{convnet_forward.2} parent=11 // pred_fallthru
          _
        // Predicated region
        $region25: #{convnet_forward.2} parent=11 // pred_check
          %p249 = pneg %p126
        $region26: #{convnet_forward.2} parent=11 // pred_check_branch
          %251 = sbr.rel (%p249) target = $region28
        $region27: #{convnet_forward.2} parent=11 // pred_region
          %253 = vsyncadd [#allocation8], 0
          %s254 = sshll.u32 %s4, 4
          %s255 = int_to_ptr.hbm [resolvable:$true] %s254
          %s256 = sshll.u32 [#allocation7], 4
          %s257 = int_to_ptr.vmem [resolvable:$true] %s256
          %262 = dma.hbm_to_vmem [thread:$0]  %s255, 3840, %s257, [#allocation8], 128, 128, 8
        $region28: #{convnet_forward.2} parent=11 // pred_fallthru
          _
        // Predicated region
        $region29: #{convnet_forward.2} parent=11 // pred_check
          %p263 = pneg %p147
        $region30: #{convnet_forward.2} parent=11 // pred_check_branch
          %265 = sbr.rel (%p263) target = $region32
        $region31: #{convnet_forward.2} parent=11 // pred_region
          _
        $region32: #{convnet_forward.2} parent=11 // pred_fallthru
          _
        // Predicated region
        $region33: #{convnet_forward.2} parent=11 // pred_check
          %p266 = pneg %p168
        $region34: #{convnet_forward.2} parent=11 // pred_check_branch
          %268 = sbr.rel (%p266) target = $region36
        $region35: #{convnet_forward.2} parent=11 // pred_region
          %270 = vsyncadd [#allocation8], 0
          %s272 = sshll.u32 %s6, 4
          %s273 = int_to_ptr.hbm [resolvable:$true] %s272
          %s274 = sshll.u32 [#allocation9], 4
          %s275 = int_to_ptr.vmem [resolvable:$true] %s274
          %277 = dma.hbm_to_vmem [thread:$0]  %s273, 32, %s275, [#allocation8]
        $region36: #{convnet_forward.2} parent=11 // pred_fallthru
          _
      $region12: #{convnet_forward.2} parent=5 // pred_fallthru
        _
      %p278 = scmp.lt.s32.totalorder %s16, 2
      // Predicated region
      $region37: #{convnet_forward.2} parent=5 // pred_check
        %p279 = pneg %p278
      $region38: #{convnet_forward.2} parent=5 // pred_check_branch
        %281 = sbr.rel (%p279) target = $region40
      $region39: #{convnet_forward.2} parent=5 // pred_region
        // Predicated region
        $region41: #{convnet_forward.2} parent=39 // pred_check
          %p282 = pneg %p36
        $region42: #{convnet_forward.2} parent=39 // pred_check_branch
          %284 = sbr.rel (%p282) target = $region44
        $region43: #{convnet_forward.2} parent=39 // pred_region
          %p285 = scmp.lt.s32.totalorder %s16, 1
          %s286 = scalar_select %p285, %s16, 1
          %s287 = smul.addr %s286, 4
          %s288 = smul.addr %s287, 8
          %s289 = scalar_lea.vmem %s0, %s288
        $region44: #{convnet_forward.2} parent=39 // pred_fallthru
          _
      $region40: #{convnet_forward.2} parent=5 // pred_fallthru
        _
      %p290 = scmp.le.s32.totalorder 1, %s16
      %p291 = scmp.lt.s32.totalorder %s16, 3
      %p292 = pnand %p290, %p291
      %p293 = pneg %p292
      // Predicated region
      $region45: #{convnet_forward.2} parent=5 // pred_check
        _
      $region46: #{convnet_forward.2} parent=5 // pred_check_branch
        %295 = sbr.rel (%p292) target = $region48
      $region47: #{convnet_forward.2} parent=5 // pred_region
        %s296 = ssub.s32 %s16, 1
        // Predicated region
        $region49: #{convnet_forward.2} parent=47 // pred_check
          %p297 = pneg %p63
        $region50: #{convnet_forward.2} parent=47 // pred_check_branch
          %299 = sbr.rel (%p297) target = $region52
        $region51: #{convnet_forward.2} parent=47 // pred_region
          %301 = dma.done [#allocation3], 5120
        $region52: #{convnet_forward.2} parent=47 // pred_fallthru
          _
        // Predicated region
        $region53: #{convnet_forward.2} parent=47 // pred_check
          %p302 = pneg %p84
        $region54: #{convnet_forward.2} parent=47 // pred_check_branch
          %304 = sbr.rel (%p302) target = $region56
        $region55: #{convnet_forward.2} parent=47 // pred_region
          %306 = dma.done [#allocation5], 32
        $region56: #{convnet_forward.2} parent=47 // pred_fallthru
          _
        // Predicated region
        $region57: #{convnet_forward.2} parent=47 // pred_check
          %p307 = pneg %p105
        $region58: #{convnet_forward.2} parent=47 // pred_check_branch
          %309 = sbr.rel (%p307) target = $region60
        $region59: #{convnet_forward.2} parent=47 // pred_region
          %311 = dma.done [#allocation5], 256
        $region60: #{convnet_forward.2} parent=47 // pred_fallthru
          _
        // Predicated region
        $region61: #{convnet_forward.2} parent=47 // pred_check
          %p312 = pneg %p126
        $region62: #{convnet_forward.2} parent=47 // pred_check_branch
          %314 = sbr.rel (%p312) target = $region64
        $region63: #{convnet_forward.2} parent=47 // pred_region
          %316 = dma.done [#allocation8], 3840
        $region64: #{convnet_forward.2} parent=47 // pred_fallthru
          _
        // Predicated region
        $region65: #{convnet_forward.2} parent=47 // pred_check
          %p317 = pneg %p168
        $region66: #{convnet_forward.2} parent=47 // pred_check_branch
          %319 = sbr.rel (%p317) target = $region68
        $region67: #{convnet_forward.2} parent=47 // pred_region
          %321 = dma.done [#allocation8], 32
        $region68: #{convnet_forward.2} parent=47 // pred_fallthru
          _
        %p322 = scmp.lt.s32.totalorder %s21, 1
        %s323 = scalar_select %p322, %s21, 1
        %s324 = smul.addr %s323, 4
        %s325 = smul.addr %s324, 8
        %s326 = scalar_lea.vmem %s0, %s325
        %p327 = pneg %p42
        %p328 = pneg %p39
        %p329 = pneg %p63
        %p330 = pneg %p60
        %p331 = pneg %p84
        %p332 = pneg %p81
        %p333 = pneg %p105
        %p334 = pneg %p102
        %p335 = pneg %p126
        %p336 = pneg %p123
        %p337 = pneg %p147
        %p338 = pneg %p144
        %p339 = pneg %p168
        %p340 = pneg %p165
        %p341 = pneg %p194
        %p342 = pneg %p191
        %p343 = scmp.lt.s32.totalorder %s21, 1
        %s344 = scalar_select %p343, %s21, 1
        %s345 = smul.addr %s344, 4
        %s346 = smul.addr %s345, 8
        %s347 = scalar_lea.vmem %s7, %s346
        %p348 = scmp.lt.s32.totalorder %s21, 1
        %s349 = scalar_select %p348, %s21, 1
        %s350 = smul.addr %s349, 4
        %s351 = smul.addr %s350, 8
        %s352 = scalar_lea.vmem %s0, %s351
        %p353 = scmp.lt.s32.totalorder %s21, 1
        %s354 = scalar_select %p353, %s21, 1
        %s355 = smul.addr %s354, 4
        %s356 = smul.addr %s355, 8
        %s357 = scalar_lea.vmem %s7, %s356
        %v358 = vld [vmem:[%s352] sm:$0xff]
        %v359 = vld [vmem:[%s352 + $0x8] sm:$0xff]
        %v360 = vld [vmem:[%s352 + $0x10] sm:$0xff]
        %v361 = vld [vmem:[%s352 + $0x18] sm:$0xf]
        %v362 = vld [vmem:[#allocation2] sm:$0xff]
        %v363 = vld [vmem:[#allocation2 + $0x8] sm:$0xff]
        %v364 = vld [vmem:[#allocation2 + $0x10] sm:$0xff]
        %v365 = vld [vmem:[#allocation2 + $0x18] sm:$0xff]
        %v366 = vld [vmem:[#allocation2 + $0x20] sm:$0xff]
        %v367 = vld [vmem:[#allocation2 + $0x28] sm:$0xff]
        %v368 = vld [vmem:[#allocation2 + $0x30] sm:$0xf]
        %v369 = vld [vmem:[#allocation2 + $0x38] sm:$0xf]
        %s370 = scalar_lea.vmem [#allocation2], 64
        %v371 = vld [vmem:[%s370] sm:$0xff]
        %v372 = vld [vmem:[%s370 + $0x8] sm:$0xff]
        %v373 = vld [vmem:[%s370 + $0x10] sm:$0xff]
        %v374 = vld [vmem:[%s370 + $0x18] sm:$0xff]
        %v375 = vld [vmem:[%s370 + $0x20] sm:$0xff]
        %v376 = vld [vmem:[%s370 + $0x28] sm:$0xff]
        %v377 = vld [vmem:[%s370 + $0x30] sm:$0xf]
        %v378 = vld [vmem:[%s370 + $0x38] sm:$0xf]
        %vm383 = vcmask 1046528
        %v384 = vrot.slane %v358, 1
        %v385 = vrot.slane %v359, 1
        %v386 = vsel %vm383, %v384, %v385
        %v387 = vrot.slane %v360, 1
        %v388 = vsel %vm383, %v385, %v387
        %v389 = vrot.slane %v361, 1
        %v390 = vsel %vm383, %v387, %v389
        %vm391 = vcmask 228352
        %v392 = vsel %vm391, %v386, 0
        %v394 = vsel %vm391, %v388, 0
        %v396 = vsel %vm391, %v390, 0
        %vm398 = vcmask 1043456
        %v400 = vsel %vm398, %v377, 0
        %v403 = vsel %vm398, %v378, 0
        %405 = vmatpush.msra.mxu0 0.0
        %406 = vmatpush.msra.mxu0 0.0
        %407 = vmatpush.msra.mxu0 0.0
        %408 = vmatpush.msra.mxu0 0.0
        %409 = vmatpush.msra.mxu0 0.0
        %410 = vmatpush.msra.mxu0 0.0
        %411 = vmatpush.msra.mxu0 0.0
        %412 = vmatpush.msra.mxu0 0.0
        %413 = vmatpush.msra.mxu0 0.0
        %414 = vmatpush.msra.mxu0 0.0
        %415 = vmatpush.msra.mxu0 0.0
        %416 = vmatpush.msra.mxu0 0.0
        %417 = vmatpush.msra.mxu0 %v400
        %418 = vmatpush.msra.mxu0 %v375
        %419 = vmatpush.msra.mxu0 %v373
        %420 = vmatpush.msra.mxu0 %v371
        %421 = vmatmul.f32.gmra.mxu0 %v392
        %v422 = vpop.f32.mrf.mxu0
        %v423 = vadd.f32 0.0, %v422
        %424 = vmatmul.f32.gmra.mxu0 %v394
        %v425 = vpop.f32.mrf.mxu0
        %v426 = vadd.f32 0.0, %v425
        %427 = vmatmul.f32.gmra.mxu0 %v396
        %v428 = vpop.f32.mrf.mxu0
        %v429 = vadd.f32 0.0, %v428
        %430 = vdwg.mxu0
        %431 = vmatpush.msra.mxu0 0.0
        %432 = vmatpush.msra.mxu0 0.0
        %433 = vmatpush.msra.mxu0 0.0
        %434 = vmatpush.msra.mxu0 0.0
        %435 = vmatpush.msra.mxu0 0.0
        %436 = vmatpush.msra.mxu0 0.0
        %437 = vmatpush.msra.mxu0 0.0
        %438 = vmatpush.msra.mxu0 0.0
        %439 = vmatpush.msra.mxu0 0.0
        %440 = vmatpush.msra.mxu0 0.0
        %441 = vmatpush.msra.mxu0 0.0
        %442 = vmatpush.msra.mxu0 0.0
        %443 = vmatpush.msra.mxu0 %v403
        %444 = vmatpush.msra.mxu0 %v376
        %445 = vmatpush.msra.mxu0 %v374
        %446 = vmatpush.msra.mxu0 %v372
        %447 = vmatmul.f32.gmra.mxu0 %v392
        %v448 = vpop.f32.mrf.mxu0
        %v449 = vadd.f32 0.0, %v448
        %450 = vmatmul.f32.gmra.mxu0 %v394
        %v451 = vpop.f32.mrf.mxu0
        %v452 = vadd.f32 0.0, %v451
        %453 = vmatmul.f32.gmra.mxu0 %v396
        %v454 = vpop.f32.mrf.mxu0
        %v455 = vadd.f32 0.0, %v454
        %456 = vdwg.mxu0
        %v457 = vsel %vm391, %v358, 0
        %v459 = vsel %vm391, %v359, 0
        %v461 = vsel %vm391, %v360, 0
        %v464 = vsel %vm398, %v368, 0
        %v467 = vsel %vm398, %v369, 0
        %469 = vmatpush.msra.mxu0 0.0
        %470 = vmatpush.msra.mxu0 0.0
        %471 = vmatpush.msra.mxu0 0.0
        %472 = vmatpush.msra.mxu0 0.0
        %473 = vmatpush.msra.mxu0 0.0
        %474 = vmatpush.msra.mxu0 0.0
        %475 = vmatpush.msra.mxu0 0.0
        %476 = vmatpush.msra.mxu0 0.0
        %477 = vmatpush.msra.mxu0 0.0
        %478 = vmatpush.msra.mxu0 0.0
        %479 = vmatpush.msra.mxu0 0.0
        %480 = vmatpush.msra.mxu0 0.0
        %481 = vmatpush.msra.mxu0 %v464
        %482 = vmatpush.msra.mxu0 %v366
        %483 = vmatpush.msra.mxu0 %v364
        %484 = vmatpush.msra.mxu0 %v362
        %485 = vmatmul.f32.gmra.mxu0 %v457
        %v486 = vpop.f32.mrf.mxu0
        %v487 = vadd.f32 %v423, %v486
        %488 = vmatmul.f32.gmra.mxu0 %v459
        %v489 = vpop.f32.mrf.mxu0
        %v490 = vadd.f32 %v426, %v489
        %491 = vmatmul.f32.gmra.mxu0 %v461
        %v492 = vpop.f32.mrf.mxu0
        %v493 = vadd.f32 %v429, %v492
        %494 = vdwg.mxu0
        %495 = vmatpush.msra.mxu0 0.0
        %496 = vmatpush.msra.mxu0 0.0
        %497 = vmatpush.msra.mxu0 0.0
        %498 = vmatpush.msra.mxu0 0.0
        %499 = vmatpush.msra.mxu0 0.0
        %500 = vmatpush.msra.mxu0 0.0
        %501 = vmatpush.msra.mxu0 0.0
        %502 = vmatpush.msra.mxu0 0.0
        %503 = vmatpush.msra.mxu0 0.0
        %504 = vmatpush.msra.mxu0 0.0
        %505 = vmatpush.msra.mxu0 0.0
        %506 = vmatpush.msra.mxu0 0.0
        %507 = vmatpush.msra.mxu0 %v467
        %508 = vmatpush.msra.mxu0 %v367
        %509 = vmatpush.msra.mxu0 %v365
        %510 = vmatpush.msra.mxu0 %v363
        %511 = vmatmul.f32.gmra.mxu0 %v457
        %v512 = vpop.f32.mrf.mxu0
        %v513 = vadd.f32 %v449, %v512
        %514 = vmatmul.f32.gmra.mxu0 %v459
        %v515 = vpop.f32.mrf.mxu0
        %v516 = vadd.f32 %v452, %v515
        %517 = vmatmul.f32.gmra.mxu0 %v461
        %v518 = vpop.f32.mrf.mxu0
        %v519 = vadd.f32 %v455, %v518
        %520 = vdwg.mxu0
        %s521 = scalar_lea.vmem [#allocation2], 128
        %v522 = vld [vmem:[%s521] sm:$0xff]
        %v523 = vld [vmem:[%s521 + $0x8] sm:$0xff]
        %v524 = vld [vmem:[%s521 + $0x10] sm:$0xff]
        %v525 = vld [vmem:[%s521 + $0x18] sm:$0xff]
        %v526 = vld [vmem:[%s521 + $0x20] sm:$0xff]
        %v527 = vld [vmem:[%s521 + $0x28] sm:$0xff]
        %v528 = vld [vmem:[%s521 + $0x30] sm:$0xf]
        %v529 = vld [vmem:[%s521 + $0x38] sm:$0xf]
        %vm530 = vcmask 1045504
        %v531 = vrot.slane %v358, 2
        %v532 = vrot.slane %v359, 2
        %v533 = vsel %vm530, %v531, %v532
        %v534 = vrot.slane %v360, 2
        %v535 = vsel %vm530, %v532, %v534
        %v536 = vrot.slane %v361, 2
        %v537 = vsel %vm530, %v534, %v536
        %v538 = vsel %vm391, %v533, 0
        %v540 = vsel %vm391, %v535, 0
        %v542 = vsel %vm391, %v537, 0
        %v545 = vsel %vm398, %v528, 0
        %v548 = vsel %vm398, %v529, 0
        %550 = vmatpush.msra.mxu0 0.0
        %551 = vmatpush.msra.mxu0 0.0
        %552 = vmatpush.msra.mxu0 0.0
        %553 = vmatpush.msra.mxu0 0.0
        %554 = vmatpush.msra.mxu0 0.0
        %555 = vmatpush.msra.mxu0 0.0
        %556 = vmatpush.msra.mxu0 0.0
        %557 = vmatpush.msra.mxu0 0.0
        %558 = vmatpush.msra.mxu0 0.0
        %559 = vmatpush.msra.mxu0 0.0
        %560 = vmatpush.msra.mxu0 0.0
        %561 = vmatpush.msra.mxu0 0.0
        %562 = vmatpush.msra.mxu0 %v545
        %563 = vmatpush.msra.mxu0 %v526
        %564 = vmatpush.msra.mxu0 %v524
        %565 = vmatpush.msra.mxu0 %v522
        %566 = vmatmul.f32.gmra.mxu0 %v538
        %v567 = vpop.f32.mrf.mxu0
        %v568 = vadd.f32 0.0, %v567
        %569 = vmatmul.f32.gmra.mxu0 %v540
        %v570 = vpop.f32.mrf.mxu0
        %v571 = vadd.f32 0.0, %v570
        %572 = vmatmul.f32.gmra.mxu0 %v542
        %v573 = vpop.f32.mrf.mxu0
        %v574 = vadd.f32 0.0, %v573
        %575 = vdwg.mxu0
        %576 = vmatpush.msra.mxu0 0.0
        %577 = vmatpush.msra.mxu0 0.0
        %578 = vmatpush.msra.mxu0 0.0
        %579 = vmatpush.msra.mxu0 0.0
        %580 = vmatpush.msra.mxu0 0.0
        %581 = vmatpush.msra.mxu0 0.0
        %582 = vmatpush.msra.mxu0 0.0
        %583 = vmatpush.msra.mxu0 0.0
        %584 = vmatpush.msra.mxu0 0.0
        %585 = vmatpush.msra.mxu0 0.0
        %586 = vmatpush.msra.mxu0 0.0
        %587 = vmatpush.msra.mxu0 0.0
        %588 = vmatpush.msra.mxu0 %v548
        %589 = vmatpush.msra.mxu0 %v527
        %590 = vmatpush.msra.mxu0 %v525
        %591 = vmatpush.msra.mxu0 %v523
        %592 = vmatmul.f32.gmra.mxu0 %v538
        %v593 = vpop.f32.mrf.mxu0
        %v594 = vadd.f32 0.0, %v593
        %595 = vmatmul.f32.gmra.mxu0 %v540
        %v596 = vpop.f32.mrf.mxu0
        %v597 = vadd.f32 0.0, %v596
        %598 = vmatmul.f32.gmra.mxu0 %v542
        %v599 = vpop.f32.mrf.mxu0
        %v600 = vadd.f32 0.0, %v599
        %601 = vdwg.mxu0
        %v602 = vadd.f32 %v487, %v568
        %v603 = vadd.f32 %v513, %v594
        %v604 = vadd.f32 %v490, %v571
        %v605 = vadd.f32 %v516, %v597
        %v606 = vadd.f32 %v493, %v574
        %v607 = vadd.f32 %v519, %v600
        %s608 = scalar_lea.vmem [#allocation2], 192
        %v609 = vld [vmem:[%s608] sm:$0xff]
        %v610 = vld [vmem:[%s608 + $0x8] sm:$0xff]
        %v611 = vld [vmem:[%s608 + $0x10] sm:$0xff]
        %v612 = vld [vmem:[%s608 + $0x18] sm:$0xff]
        %v613 = vld [vmem:[%s608 + $0x20] sm:$0xff]
        %v614 = vld [vmem:[%s608 + $0x28] sm:$0xff]
        %v615 = vld [vmem:[%s608 + $0x30] sm:$0xf]
        %v616 = vld [vmem:[%s608 + $0x38] sm:$0xf]
        %vm617 = vcmask 1044480
        %v618 = vrot.slane %v358, 3
        %v619 = vrot.slane %v359, 3
        %v620 = vsel %vm617, %v618, %v619
        %v621 = vrot.slane %v360, 3
        %v622 = vsel %vm617, %v619, %v621
        %v623 = vrot.slane %v361, 3
        %v624 = vsel %vm617, %v621, %v623
        %v625 = vsel %vm391, %v620, 0
        %v627 = vsel %vm391, %v622, 0
        %v629 = vsel %vm391, %v624, 0
        %v632 = vsel %vm398, %v615, 0
        %v635 = vsel %vm398, %v616, 0
        %637 = vmatpush.msra.mxu0 0.0
        %638 = vmatpush.msra.mxu0 0.0
        %639 = vmatpush.msra.mxu0 0.0
        %640 = vmatpush.msra.mxu0 0.0
        %641 = vmatpush.msra.mxu0 0.0
        %642 = vmatpush.msra.mxu0 0.0
        %643 = vmatpush.msra.mxu0 0.0
        %644 = vmatpush.msra.mxu0 0.0
        %645 = vmatpush.msra.mxu0 0.0
        %646 = vmatpush.msra.mxu0 0.0
        %647 = vmatpush.msra.mxu0 0.0
        %648 = vmatpush.msra.mxu0 0.0
        %649 = vmatpush.msra.mxu0 %v632
        %650 = vmatpush.msra.mxu0 %v613
        %651 = vmatpush.msra.mxu0 %v611
        %652 = vmatpush.msra.mxu0 %v609
        %653 = vmatmul.f32.gmra.mxu0 %v625
        %v654 = vpop.f32.mrf.mxu0
        %v655 = vadd.f32 0.0, %v654
        %656 = vmatmul.f32.gmra.mxu0 %v627
        %v657 = vpop.f32.mrf.mxu0
        %v658 = vadd.f32 0.0, %v657
        %659 = vmatmul.f32.gmra.mxu0 %v629
        %v660 = vpop.f32.mrf.mxu0
        %v661 = vadd.f32 0.0, %v660
        %662 = vdwg.mxu0
        %663 = vmatpush.msra.mxu0 0.0
        %664 = vmatpush.msra.mxu0 0.0
        %665 = vmatpush.msra.mxu0 0.0
        %666 = vmatpush.msra.mxu0 0.0
        %667 = vmatpush.msra.mxu0 0.0
        %668 = vmatpush.msra.mxu0 0.0
        %669 = vmatpush.msra.mxu0 0.0
        %670 = vmatpush.msra.mxu0 0.0
        %671 = vmatpush.msra.mxu0 0.0
        %672 = vmatpush.msra.mxu0 0.0
        %673 = vmatpush.msra.mxu0 0.0
        %674 = vmatpush.msra.mxu0 0.0
        %675 = vmatpush.msra.mxu0 %v635
        %676 = vmatpush.msra.mxu0 %v614
        %677 = vmatpush.msra.mxu0 %v612
        %678 = vmatpush.msra.mxu0 %v610
        %679 = vmatmul.f32.gmra.mxu0 %v625
        %v680 = vpop.f32.mrf.mxu0
        %v681 = vadd.f32 0.0, %v680
        %682 = vmatmul.f32.gmra.mxu0 %v627
        %v683 = vpop.f32.mrf.mxu0
        %v684 = vadd.f32 0.0, %v683
        %685 = vmatmul.f32.gmra.mxu0 %v629
        %v686 = vpop.f32.mrf.mxu0
        %v687 = vadd.f32 0.0, %v686
        %688 = vdwg.mxu0
        %v689 = vadd.f32 %v602, %v655
        %v690 = vadd.f32 %v603, %v681
        %v691 = vadd.f32 %v604, %v658
        %v692 = vadd.f32 %v605, %v684
        %v693 = vadd.f32 %v606, %v661
        %v694 = vadd.f32 %v607, %v687
        %s695 = scalar_lea.vmem [#allocation2], 256
        %v696 = vld [vmem:[%s695] sm:$0xff]
        %v697 = vld [vmem:[%s695 + $0x8] sm:$0xff]
        %v698 = vld [vmem:[%s695 + $0x10] sm:$0xff]
        %v699 = vld [vmem:[%s695 + $0x18] sm:$0xff]
        %v700 = vld [vmem:[%s695 + $0x20] sm:$0xff]
        %v701 = vld [vmem:[%s695 + $0x28] sm:$0xff]
        %v702 = vld [vmem:[%s695 + $0x30] sm:$0xf]
        %v703 = vld [vmem:[%s695 + $0x38] sm:$0xf]
        %v704 = vrot.slane %v358, 4
        %v705 = vrot.slane %v359, 4
        %v706 = vsel %vm398, %v704, %v705
        %v707 = vrot.slane %v360, 4
        %v708 = vsel %vm398, %v705, %v707
        %v709 = vrot.slane %v361, 4
        %v710 = vsel %vm398, %v707, %v709
        %v711 = vsel %vm391, %v706, 0
        %v713 = vsel %vm391, %v708, 0
        %v715 = vsel %vm391, %v710, 0
        %v718 = vsel %vm398, %v702, 0
        %v721 = vsel %vm398, %v703, 0
        %723 = vmatpush.msra.mxu0 0.0
        %724 = vmatpush.msra.mxu0 0.0
        %725 = vmatpush.msra.mxu0 0.0
        %726 = vmatpush.msra.mxu0 0.0
        %727 = vmatpush.msra.mxu0 0.0
        %728 = vmatpush.msra.mxu0 0.0
        %729 = vmatpush.msra.mxu0 0.0
        %730 = vmatpush.msra.mxu0 0.0
        %731 = vmatpush.msra.mxu0 0.0
        %732 = vmatpush.msra.mxu0 0.0
        %733 = vmatpush.msra.mxu0 0.0
        %734 = vmatpush.msra.mxu0 0.0
        %735 = vmatpush.msra.mxu0 %v718
        %736 = vmatpush.msra.mxu0 %v700
        %737 = vmatpush.msra.mxu0 %v698
        %738 = vmatpush.msra.mxu0 %v696
        %739 = vmatmul.f32.gmra.mxu0 %v711
        %v740 = vpop.f32.mrf.mxu0
        %v741 = vadd.f32 0.0, %v740
        %742 = vmatmul.f32.gmra.mxu0 %v713
        %v743 = vpop.f32.mrf.mxu0
        %v744 = vadd.f32 0.0, %v743
        %745 = vmatmul.f32.gmra.mxu0 %v715
        %v746 = vpop.f32.mrf.mxu0
        %v747 = vadd.f32 0.0, %v746
        %748 = vdwg.mxu0
        %749 = vmatpush.msra.mxu0 0.0
        %750 = vmatpush.msra.mxu0 0.0
        %751 = vmatpush.msra.mxu0 0.0
        %752 = vmatpush.msra.mxu0 0.0
        %753 = vmatpush.msra.mxu0 0.0
        %754 = vmatpush.msra.mxu0 0.0
        %755 = vmatpush.msra.mxu0 0.0
        %756 = vmatpush.msra.mxu0 0.0
        %757 = vmatpush.msra.mxu0 0.0
        %758 = vmatpush.msra.mxu0 0.0
        %759 = vmatpush.msra.mxu0 0.0
        %760 = vmatpush.msra.mxu0 0.0
        %761 = vmatpush.msra.mxu0 %v721
        %762 = vmatpush.msra.mxu0 %v701
        %763 = vmatpush.msra.mxu0 %v699
        %764 = vmatpush.msra.mxu0 %v697
        %765 = vmatmul.f32.gmra.mxu0 %v711
        %v766 = vpop.f32.mrf.mxu0
        %v767 = vadd.f32 0.0, %v766
        %768 = vmatmul.f32.gmra.mxu0 %v713
        %v769 = vpop.f32.mrf.mxu0
        %v770 = vadd.f32 0.0, %v769
        %771 = vmatmul.f32.gmra.mxu0 %v715
        %v772 = vpop.f32.mrf.mxu0
        %v773 = vadd.f32 0.0, %v772
        %774 = vdwg.mxu0
        %v775 = vadd.f32 %v689, %v741
        %v776 = vadd.f32 %v690, %v767
        %v777 = vadd.f32 %v691, %v744
        %v778 = vadd.f32 %v692, %v770
        %v779 = vadd.f32 %v693, %v747
        %v780 = vadd.f32 %v694, %v773
        %v781 = vld [vmem:[#allocation4] sm:$0x3]
        %v783 = vperm.slane %v781, 0
        %v784 = vperm.slane %v781, 1
        %v787 = vadd.f32 %v775, %v783
        %v788 = vadd.f32 %v776, %v784
        %v789 = vadd.f32 %v777, %v783
        %v790 = vadd.f32 %v778, %v784
        %v791 = vadd.f32 %v779, %v783
        %v792 = vadd.f32 %v780, %v784
        %v793 = vmax.f32 %v787, 0.0
        %v794 = vmax.f32 %v788, 0.0
        %v795 = vmax.f32 %v789, 0.0
        %v796 = vmax.f32 %v790, 0.0
        %v797 = vmax.f32 %v791, 0.0
        %v798 = vmax.f32 %v792, 0.0
        %v805 = vrot.slane %v793, 1
        %v806 = vrot.slane %v795, 1
        %v807 = vsel %vm383, %v805, %v806
        %v808 = vrot.slane %v794, 1
        %v809 = vrot.slane %v796, 1
        %v810 = vsel %vm383, %v808, %v809
        %v811 = vrot.slane %v797, 1
        %v812 = vsel %vm383, %v806, %v811
        %v813 = vrot.slane %v798, 1
        %v814 = vsel %vm383, %v809, %v813
        %v821 = vmax.f32 %v793, %v807
        %v822 = vmax.f32 %v794, %v810
        %v823 = vmax.f32 %v795, %v812
        %v824 = vmax.f32 %v796, %v814
        %v825 = vmax.f32 %v797, %v811
        %v826 = vmax.f32 %v798, %v813
        %833 = vrot.lane.b32.xlu0 %v821, 127
        %v834 = vpop.permute.xlu0 %833
        %835 = vrot.lane.b32.xlu0 %v822, 127
        %v836 = vpop.permute.xlu0 %835
        %837 = vrot.lane.b32.xlu0 %v823, 127
        %v838 = vpop.permute.xlu0 %837
        %839 = vrot.lane.b32.xlu0 %v824, 127
        %v840 = vpop.permute.xlu0 %839
        %841 = vrot.lane.b32.xlu0 %v825, 127
        %v842 = vpop.permute.xlu0 %841
        %843 = vrot.lane.b32.xlu0 %v826, 127
        %v844 = vpop.permute.xlu0 %843
        %vm845 = vcmask 1039360
        %v846 = vsel %vm845, %v834, %v836
        %v847 = vsel %vm845, %v838, %v840
        %v848 = vsel %vm845, %v842, %v844
        %v855 = vmax.f32 %v821, %v846
        %v856 = vmax.f32 %v822, %v836
        %v857 = vmax.f32 %v823, %v847
        %v858 = vmax.f32 %v824, %v840
        %v859 = vmax.f32 %v825, %v848
        %v860 = vmax.f32 %v826, %v844
        %v861 = vld [vmem:[#allocation6] sm:$0xff]
        %v862 = vld [vmem:[#allocation6 + $0x8] sm:$0xf]
        %vm863 = vcmask 187392
        %v865 = vsel %vm863, %v861, 0
        %v868 = vsel %vm863, %v862, 0
        %v871 = vsel %vm383, %v859, 0
        %v874 = vsel %vm383, %v860, 0
        %876 = vmatpush.msra.mxu0 0.0
        %877 = vmatpush.msra.mxu0 0.0
        %878 = vmatpush.msra.mxu0 0.0
        %879 = vmatpush.msra.mxu0 0.0
        %880 = vmatpush.msra.mxu0 0.0
        %881 = vmatpush.msra.mxu0 0.0
        %882 = vmatpush.msra.mxu0 0.0
        %883 = vmatpush.msra.mxu0 0.0
        %884 = vmatpush.msra.mxu0 0.0
        %885 = vmatpush.msra.mxu0 0.0
        %886 = vmatpush.msra.mxu0 0.0
        %887 = vmatpush.msra.mxu0 0.0
        %888 = vmatpush.msra.mxu0 0.0
        %889 = vmatpush.msra.mxu0 %v871
        %890 = vmatpush.msra.mxu0 %v857
        %891 = vmatpush.msra.mxu0 %v855
        %892 = vmatmul.f32.gmra.mxu0 %v865
        %v893 = vpop.f32.mrf.mxu0
        %v894 = vadd.f32 0.0, %v893
        %895 = vmatmul.f32.gmra.mxu0 %v868
        %v896 = vpop.f32.mrf.mxu0
        %v897 = vadd.f32 0.0, %v896
        %898 = vdwg.mxu0
        %899 = vmatpush.msra.mxu0 0.0
        %900 = vmatpush.msra.mxu0 0.0
        %901 = vmatpush.msra.mxu0 0.0
        %902 = vmatpush.msra.mxu0 0.0
        %903 = vmatpush.msra.mxu0 0.0
        %904 = vmatpush.msra.mxu0 0.0
        %905 = vmatpush.msra.mxu0 0.0
        %906 = vmatpush.msra.mxu0 0.0
        %907 = vmatpush.msra.mxu0 0.0
        %908 = vmatpush.msra.mxu0 0.0
        %909 = vmatpush.msra.mxu0 0.0
        %910 = vmatpush.msra.mxu0 0.0
        %911 = vmatpush.msra.mxu0 0.0
        %912 = vmatpush.msra.mxu0 %v874
        %913 = vmatpush.msra.mxu0 %v858
        %914 = vmatpush.msra.mxu0 %v856
        %915 = vmatmul.f32.gmra.mxu0 %v865
        %v916 = vpop.f32.mrf.mxu0
        %v917 = vadd.f32 0.0, %v916
        %918 = vmatmul.f32.gmra.mxu0 %v868
        %v919 = vpop.f32.mrf.mxu0
        %v920 = vadd.f32 0.0, %v919
        %921 = vdwg.mxu0
        %v922 = vld [vmem:[#allocation7] sm:$0xff]
        %v923 = vld [vmem:[#allocation7 + $0x8] sm:$0xff]
        %v924 = vld [vmem:[#allocation7 + $0x10] sm:$0xff]
        %v925 = vld [vmem:[#allocation7 + $0x18] sm:$0xff]
        %v926 = vld [vmem:[#allocation7 + $0x20] sm:$0xff]
        %v927 = vld [vmem:[#allocation7 + $0x28] sm:$0xff]
        %v928 = vld [vmem:[#allocation7 + $0x30] sm:$0xff]
        %v929 = vld [vmem:[#allocation7 + $0x38] sm:$0xff]
        %v930 = vld [vmem:[#allocation7 + $0x40] sm:$0xff]
        %v931 = vld [vmem:[#allocation7 + $0x48] sm:$0xff]
        %v932 = vld [vmem:[#allocation7 + $0x50] sm:$0xff]
        %v933 = vld [vmem:[#allocation7 + $0x58] sm:$0xff]
        %v934 = vld [vmem:[#allocation7 + $0x60] sm:$0xff]
        %v935 = vld [vmem:[#allocation7 + $0x68] sm:$0xff]
        %v936 = vld [vmem:[#allocation7 + $0x70] sm:$0xff]
        %v937 = vld [vmem:[#allocation7 + $0x78] sm:$0xff]
        %v938 = vld [vmem:[#allocation7 + $0x80] sm:$0xff]
        %v939 = vld [vmem:[#allocation7 + $0x88] sm:$0xff]
        %v940 = vld [vmem:[#allocation7 + $0x90] sm:$0xff]
        %v941 = vld [vmem:[#allocation7 + $0x98] sm:$0xff]
        %v942 = vld [vmem:[#allocation7 + $0xa0] sm:$0xff]
        %v943 = vld [vmem:[#allocation7 + $0xa8] sm:$0xff]
        %v944 = vld [vmem:[#allocation7 + $0xb0] sm:$0xff]
        %v945 = vld [vmem:[#allocation7 + $0xb8] sm:$0xff]
        %v946 = vld [vmem:[#allocation7 + $0xc0] sm:$0xff]
        %v947 = vld [vmem:[#allocation7 + $0xc8] sm:$0xff]
        %v948 = vld [vmem:[#allocation7 + $0xd0] sm:$0xff]
        %v949 = vld [vmem:[#allocation7 + $0xd8] sm:$0xff]
        %v950 = vld [vmem:[#allocation7 + $0xe0] sm:$0xff]
        %v951 = vld [vmem:[#allocation7 + $0xe8] sm:$0x7f]
        %vm952 = vcmask 908288
        %v954 = vsel %vm952, %v917, 0
        %v957 = vsel %vm952, %v920, 0
        %v960 = vsel %vm383, %v951, 0
        %962 = vmatpush.msra.mxu0 %v937
        %963 = vmatpush.msra.mxu0 %v936
        %964 = vmatpush.msra.mxu0 %v935
        %965 = vmatpush.msra.mxu0 %v934
        %966 = vmatpush.msra.mxu0 %v933
        %967 = vmatpush.msra.mxu0 %v932
        %968 = vmatpush.msra.mxu0 %v931
        %969 = vmatpush.msra.mxu0 %v930
        %970 = vmatpush.msra.mxu0 %v929
        %971 = vmatpush.msra.mxu0 %v928
        %972 = vmatpush.msra.mxu0 %v927
        %973 = vmatpush.msra.mxu0 %v926
        %974 = vmatpush.msra.mxu0 %v925
        %975 = vmatpush.msra.mxu0 %v924
        %976 = vmatpush.msra.mxu0 %v923
        %977 = vmatpush.msra.mxu0 %v922
        %978 = vmatmul.f32.gmra.mxu0 %v894
        %v979 = vpop.f32.mrf.mxu0
        %v980 = vadd.f32 0.0, %v979
        %981 = vmatmul.f32.gmra.mxu0 %v897
        %v982 = vpop.f32.mrf.mxu0
        %v983 = vadd.f32 0.0, %v982
        %984 = vdwg.mxu0
        %985 = vmatpush.msra.mxu0 0.0
        %986 = vmatpush.msra.mxu0 0.0
        %987 = vmatpush.msra.mxu0 %v960
        %988 = vmatpush.msra.mxu0 %v950
        %989 = vmatpush.msra.mxu0 %v949
        %990 = vmatpush.msra.mxu0 %v948
        %991 = vmatpush.msra.mxu0 %v947
        %992 = vmatpush.msra.mxu0 %v946
        %993 = vmatpush.msra.mxu0 %v945
        %994 = vmatpush.msra.mxu0 %v944
        %995 = vmatpush.msra.mxu0 %v943
        %996 = vmatpush.msra.mxu0 %v942
        %997 = vmatpush.msra.mxu0 %v941
        %998 = vmatpush.msra.mxu0 %v940
        %999 = vmatpush.msra.mxu0 %v939
        %1000 = vmatpush.msra.mxu0 %v938
        %1001 = vmatmul.f32.gmra.mxu0 %v954
        %v1002 = vpop.f32.mrf.mxu0
        %v1003 = vadd.f32 %v980, %v1002
        %1004 = vmatmul.f32.gmra.mxu0 %v957
        %v1005 = vpop.f32.mrf.mxu0
        %v1006 = vadd.f32 %v983, %v1005
        %1007 = vdwg.mxu0
        %v1008 = vld [vmem:[%s5] sm:$0xff]
        %v1009 = vld [vmem:[%s5 + $0x8] sm:$0xff]
        %v1010 = vld [vmem:[%s5 + $0x10] sm:$0xff]
        %v1011 = vld [vmem:[%s5 + $0x18] sm:$0xff]
        %v1012 = vld [vmem:[%s5 + $0x20] sm:$0xff]
        %v1013 = vld [vmem:[%s5 + $0x28] sm:$0xff]
        %v1014 = vld [vmem:[%s5 + $0x30] sm:$0xff]
        %v1015 = vld [vmem:[%s5 + $0x38] sm:$0xff]
        %v1016 = vld [vmem:[%s5 + $0x40] sm:$0xff]
        %v1017 = vld [vmem:[%s5 + $0x48] sm:$0xff]
        %v1018 = vld [vmem:[%s5 + $0x50] sm:$0xff]
        %v1019 = vld [vmem:[%s5 + $0x58] sm:$0xff]
        %v1020 = vld [vmem:[%s5 + $0x60] sm:$0xff]
        %v1021 = vld [vmem:[%s5 + $0x68] sm:$0xff]
        %v1022 = vld [vmem:[%s5 + $0x70] sm:$0xff]
        %v1023 = vld [vmem:[%s5 + $0x78] sm:$0xff]
        %v1024 = vld [vmem:[%s5 + $0x80] sm:$0xff]
        %v1025 = vld [vmem:[%s5 + $0x88] sm:$0xff]
        %v1026 = vld [vmem:[%s5 + $0x90] sm:$0xff]
        %v1027 = vld [vmem:[%s5 + $0x98] sm:$0xff]
        %v1028 = vld [vmem:[%s5 + $0xa0] sm:$0xff]
        %v1029 = vld [vmem:[%s5 + $0xa8] sm:$0xff]
        %v1030 = vld [vmem:[%s5 + $0xb0] sm:$0xff]
        %v1031 = vld [vmem:[%s5 + $0xb8] sm:$0xff]
        %v1032 = vld [vmem:[%s5 + $0xc0] sm:$0xff]
        %v1033 = vld [vmem:[%s5 + $0xc8] sm:$0xff]
        %v1034 = vld [vmem:[%s5 + $0xd0] sm:$0xff]
        %v1035 = vld [vmem:[%s5 + $0xd8] sm:$0xff]
        %v1036 = vld [vmem:[%s5 + $0xe0] sm:$0xff]
        %v1037 = vld [vmem:[%s5 + $0xe8] sm:$0xff]
        %s1038 = scalar_lea.vmem %s5, 240
        %v1039 = vld [vmem:[%s1038] sm:$0xff]
        %v1040 = vld [vmem:[%s1038 + $0x8] sm:$0xff]
        %v1041 = vld [vmem:[%s1038 + $0x10] sm:$0xff]
        %v1042 = vld [vmem:[%s1038 + $0x18] sm:$0xff]
        %v1043 = vld [vmem:[%s1038 + $0x20] sm:$0xff]
        %v1044 = vld [vmem:[%s1038 + $0x28] sm:$0xff]
        %v1045 = vld [vmem:[%s1038 + $0x30] sm:$0xff]
        %v1046 = vld [vmem:[%s1038 + $0x38] sm:$0xff]
        %v1047 = vld [vmem:[%s1038 + $0x40] sm:$0xff]
        %v1048 = vld [vmem:[%s1038 + $0x48] sm:$0xff]
        %v1049 = vld [vmem:[%s1038 + $0x50] sm:$0xff]
        %v1050 = vld [vmem:[%s1038 + $0x58] sm:$0xff]
        %v1051 = vld [vmem:[%s1038 + $0x60] sm:$0xff]
        %v1052 = vld [vmem:[%s1038 + $0x68] sm:$0xff]
        %v1053 = vld [vmem:[%s1038 + $0x70] sm:$0xff]
        %v1054 = vld [vmem:[%s1038 + $0x78] sm:$0xff]
        %v1055 = vld [vmem:[%s1038 + $0x80] sm:$0xff]
        %v1056 = vld [vmem:[%s1038 + $0x88] sm:$0xff]
        %v1057 = vld [vmem:[%s1038 + $0x90] sm:$0xff]
        %v1058 = vld [vmem:[%s1038 + $0x98] sm:$0xff]
        %v1059 = vld [vmem:[%s1038 + $0xa0] sm:$0xff]
        %v1060 = vld [vmem:[%s1038 + $0xa8] sm:$0xff]
        %v1061 = vld [vmem:[%s1038 + $0xb0] sm:$0xff]
        %v1062 = vld [vmem:[%s1038 + $0xb8] sm:$0xff]
        %v1063 = vld [vmem:[%s1038 + $0xc0] sm:$0xff]
        %v1064 = vld [vmem:[%s1038 + $0xc8] sm:$0xff]
        %v1065 = vld [vmem:[%s1038 + $0xd0] sm:$0xff]
        %v1066 = vld [vmem:[%s1038 + $0xd8] sm:$0xff]
        %v1067 = vld [vmem:[%s1038 + $0xe0] sm:$0xff]
        %v1068 = vld [vmem:[%s1038 + $0xe8] sm:$0xff]
        %v1071 = vrot.slane %v1003, 1
        %v1072 = vrot.slane %v1006, 1
        %v1073 = vsel %vm383, %v1071, %v1072
        %vm1074 = vcmask 982016
        %v1075 = vsel %vm1074, %v1073, 0
        %v1077 = vsel %vm1074, %v1072, 0
        %1079 = vmatpush.msra.mxu0 0.0
        %1080 = vmatpush.msra.mxu0 %v1067
        %1081 = vmatpush.msra.mxu0 %v1065
        %1082 = vmatpush.msra.mxu0 %v1063
        %1083 = vmatpush.msra.mxu0 %v1061
        %1084 = vmatpush.msra.mxu0 %v1059
        %1085 = vmatpush.msra.mxu0 %v1057
        %1086 = vmatpush.msra.mxu0 %v1055
        %1087 = vmatpush.msra.mxu0 %v1053
        %1088 = vmatpush.msra.mxu0 %v1051
        %1089 = vmatpush.msra.mxu0 %v1049
        %1090 = vmatpush.msra.mxu0 %v1047
        %1091 = vmatpush.msra.mxu0 %v1045
        %1092 = vmatpush.msra.mxu0 %v1043
        %1093 = vmatpush.msra.mxu0 %v1041
        %1094 = vmatpush.msra.mxu0 %v1039
        %1095 = vmatmul.f32.gmra.mxu0 %v1075
        %v1096 = vpop.f32.mrf.mxu0
        %v1097 = vadd.f32 0.0, %v1096
        %1098 = vmatmul.f32.gmra.mxu0 %v1077
        %v1099 = vpop.f32.mrf.mxu0
        %v1100 = vadd.f32 0.0, %v1099
        %1101 = vdwg.mxu0
        %1102 = vmatpush.msra.mxu0 0.0
        %1103 = vmatpush.msra.mxu0 %v1068
        %1104 = vmatpush.msra.mxu0 %v1066
        %1105 = vmatpush.msra.mxu0 %v1064
        %1106 = vmatpush.msra.mxu0 %v1062
        %1107 = vmatpush.msra.mxu0 %v1060
        %1108 = vmatpush.msra.mxu0 %v1058
        %1109 = vmatpush.msra.mxu0 %v1056
        %1110 = vmatpush.msra.mxu0 %v1054
        %1111 = vmatpush.msra.mxu0 %v1052
        %1112 = vmatpush.msra.mxu0 %v1050
        %1113 = vmatpush.msra.mxu0 %v1048
        %1114 = vmatpush.msra.mxu0 %v1046
        %1115 = vmatpush.msra.mxu0 %v1044
        %1116 = vmatpush.msra.mxu0 %v1042
        %1117 = vmatpush.msra.mxu0 %v1040
        %1118 = vmatmul.f32.gmra.mxu0 %v1075
        %v1119 = vpop.f32.mrf.mxu0
        %v1120 = vadd.f32 0.0, %v1119
        %1121 = vmatmul.f32.gmra.mxu0 %v1077
        %v1122 = vpop.f32.mrf.mxu0
        %v1123 = vadd.f32 0.0, %v1122
        %1124 = vdwg.mxu0
        %v1125 = vsel %vm1074, %v1003, 0
        %v1127 = vsel %vm1074, %v1006, 0
        %1129 = vmatpush.msra.mxu0 0.0
        %1130 = vmatpush.msra.mxu0 %v1036
        %1131 = vmatpush.msra.mxu0 %v1034
        %1132 = vmatpush.msra.mxu0 %v1032
        %1133 = vmatpush.msra.mxu0 %v1030
        %1134 = vmatpush.msra.mxu0 %v1028
        %1135 = vmatpush.msra.mxu0 %v1026
        %1136 = vmatpush.msra.mxu0 %v1024
        %1137 = vmatpush.msra.mxu0 %v1022
        %1138 = vmatpush.msra.mxu0 %v1020
        %1139 = vmatpush.msra.mxu0 %v1018
        %1140 = vmatpush.msra.mxu0 %v1016
        %1141 = vmatpush.msra.mxu0 %v1014
        %1142 = vmatpush.msra.mxu0 %v1012
        %1143 = vmatpush.msra.mxu0 %v1010
        %1144 = vmatpush.msra.mxu0 %v1008
        %1145 = vmatmul.f32.gmra.mxu0 %v1125
        %v1146 = vpop.f32.mrf.mxu0
        %v1147 = vadd.f32 %v1097, %v1146
        %1148 = vmatmul.f32.gmra.mxu0 %v1127
        %v1149 = vpop.f32.mrf.mxu0
        %v1150 = vadd.f32 %v1100, %v1149
        %1151 = vdwg.mxu0
        %1152 = vmatpush.msra.mxu0 0.0
        %1153 = vmatpush.msra.mxu0 %v1037
        %1154 = vmatpush.msra.mxu0 %v1035
        %1155 = vmatpush.msra.mxu0 %v1033
        %1156 = vmatpush.msra.mxu0 %v1031
        %1157 = vmatpush.msra.mxu0 %v1029
        %1158 = vmatpush.msra.mxu0 %v1027
        %1159 = vmatpush.msra.mxu0 %v1025
        %1160 = vmatpush.msra.mxu0 %v1023
        %1161 = vmatpush.msra.mxu0 %v1021
        %1162 = vmatpush.msra.mxu0 %v1019
        %1163 = vmatpush.msra.mxu0 %v1017
        %1164 = vmatpush.msra.mxu0 %v1015
        %1165 = vmatpush.msra.mxu0 %v1013
        %1166 = vmatpush.msra.mxu0 %v1011
        %1167 = vmatpush.msra.mxu0 %v1009
        %1168 = vmatmul.f32.gmra.mxu0 %v1125
        %v1169 = vpop.f32.mrf.mxu0
        %v1170 = vadd.f32 %v1120, %v1169
        %1171 = vmatmul.f32.gmra.mxu0 %v1127
        %v1172 = vpop.f32.mrf.mxu0
        %v1173 = vadd.f32 %v1123, %v1172
        %1174 = vdwg.mxu0
        %s1175 = scalar_lea.vmem %s5, 480
        %v1176 = vld [vmem:[%s1175] sm:$0xff]
        %v1177 = vld [vmem:[%s1175 + $0x8] sm:$0xff]
        %v1178 = vld [vmem:[%s1175 + $0x10] sm:$0xff]
        %v1179 = vld [vmem:[%s1175 + $0x18] sm:$0xff]
        %v1180 = vld [vmem:[%s1175 + $0x20] sm:$0xff]
        %v1181 = vld [vmem:[%s1175 + $0x28] sm:$0xff]
        %v1182 = vld [vmem:[%s1175 + $0x30] sm:$0xff]
        %v1183 = vld [vmem:[%s1175 + $0x38] sm:$0xff]
        %v1184 = vld [vmem:[%s1175 + $0x40] sm:$0xff]
        %v1185 = vld [vmem:[%s1175 + $0x48] sm:$0xff]
        %v1186 = vld [vmem:[%s1175 + $0x50] sm:$0xff]
        %v1187 = vld [vmem:[%s1175 + $0x58] sm:$0xff]
        %v1188 = vld [vmem:[%s1175 + $0x60] sm:$0xff]
        %v1189 = vld [vmem:[%s1175 + $0x68] sm:$0xff]
        %v1190 = vld [vmem:[%s1175 + $0x70] sm:$0xff]
        %v1191 = vld [vmem:[%s1175 + $0x78] sm:$0xff]
        %v1192 = vld [vmem:[%s1175 + $0x80] sm:$0xff]
        %v1193 = vld [vmem:[%s1175 + $0x88] sm:$0xff]
        %v1194 = vld [vmem:[%s1175 + $0x90] sm:$0xff]
        %v1195 = vld [vmem:[%s1175 + $0x98] sm:$0xff]
        %v1196 = vld [vmem:[%s1175 + $0xa0] sm:$0xff]
        %v1197 = vld [vmem:[%s1175 + $0xa8] sm:$0xff]
        %v1198 = vld [vmem:[%s1175 + $0xb0] sm:$0xff]
        %v1199 = vld [vmem:[%s1175 + $0xb8] sm:$0xff]
        %v1200 = vld [vmem:[%s1175 + $0xc0] sm:$0xff]
        %v1201 = vld [vmem:[%s1175 + $0xc8] sm:$0xff]
        %v1202 = vld [vmem:[%s1175 + $0xd0] sm:$0xff]
        %v1203 = vld [vmem:[%s1175 + $0xd8] sm:$0xff]
        %v1204 = vld [vmem:[%s1175 + $0xe0] sm:$0xff]
        %v1205 = vld [vmem:[%s1175 + $0xe8] sm:$0xff]
        %v1206 = vrot.slane %v1003, 2
        %v1207 = vrot.slane %v1006, 2
        %v1208 = vsel %vm530, %v1206, %v1207
        %v1209 = vsel %vm1074, %v1208, 0
        %v1211 = vsel %vm1074, %v1207, 0
        %1213 = vmatpush.msra.mxu0 0.0
        %1214 = vmatpush.msra.mxu0 %v1204
        %1215 = vmatpush.msra.mxu0 %v1202
        %1216 = vmatpush.msra.mxu0 %v1200
        %1217 = vmatpush.msra.mxu0 %v1198
        %1218 = vmatpush.msra.mxu0 %v1196
        %1219 = vmatpush.msra.mxu0 %v1194
        %1220 = vmatpush.msra.mxu0 %v1192
        %1221 = vmatpush.msra.mxu0 %v1190
        %1222 = vmatpush.msra.mxu0 %v1188
        %1223 = vmatpush.msra.mxu0 %v1186
        %1224 = vmatpush.msra.mxu0 %v1184
        %1225 = vmatpush.msra.mxu0 %v1182
        %1226 = vmatpush.msra.mxu0 %v1180
        %1227 = vmatpush.msra.mxu0 %v1178
        %1228 = vmatpush.msra.mxu0 %v1176
        %1229 = vmatmul.f32.gmra.mxu0 %v1209
        %v1230 = vpop.f32.mrf.mxu0
        %v1231 = vadd.f32 0.0, %v1230
        %1232 = vmatmul.f32.gmra.mxu0 %v1211
        %v1233 = vpop.f32.mrf.mxu0
        %v1234 = vadd.f32 0.0, %v1233
        %1235 = vdwg.mxu0
        %1236 = vmatpush.msra.mxu0 0.0
        %1237 = vmatpush.msra.mxu0 %v1205
        %1238 = vmatpush.msra.mxu0 %v1203
        %1239 = vmatpush.msra.mxu0 %v1201
        %1240 = vmatpush.msra.mxu0 %v1199
        %1241 = vmatpush.msra.mxu0 %v1197
        %1242 = vmatpush.msra.mxu0 %v1195
        %1243 = vmatpush.msra.mxu0 %v1193
        %1244 = vmatpush.msra.mxu0 %v1191
        %1245 = vmatpush.msra.mxu0 %v1189
        %1246 = vmatpush.msra.mxu0 %v1187
        %1247 = vmatpush.msra.mxu0 %v1185
        %1248 = vmatpush.msra.mxu0 %v1183
        %1249 = vmatpush.msra.mxu0 %v1181
        %1250 = vmatpush.msra.mxu0 %v1179
        %1251 = vmatpush.msra.mxu0 %v1177
        %1252 = vmatmul.f32.gmra.mxu0 %v1209
        %v1253 = vpop.f32.mrf.mxu0
        %v1254 = vadd.f32 0.0, %v1253
        %1255 = vmatmul.f32.gmra.mxu0 %v1211
        %v1256 = vpop.f32.mrf.mxu0
        %v1257 = vadd.f32 0.0, %v1256
        %1258 = vdwg.mxu0
        %v1259 = vadd.f32 %v1147, %v1231
        %v1260 = vadd.f32 %v1170, %v1254
        %v1261 = vadd.f32 %v1150, %v1234
        %v1262 = vadd.f32 %v1173, %v1257
        %v1263 = vld [vmem:[#allocation9] sm:$0x3]
        %v1265 = vperm.slane %v1263, 0
        %v1266 = vperm.slane %v1263, 1
        %v1269 = vadd.f32 %v1259, %v1265
        %v1270 = vadd.f32 %v1260, %v1266
        %v1271 = vadd.f32 %v1261, %v1265
        %v1272 = vadd.f32 %v1262, %v1266
        %v1273 = vmax.f32 %v1269, 0.0
        %v1274 = vmax.f32 %v1270, 0.0
        %v1275 = vmax.f32 %v1271, 0.0
        %v1276 = vmax.f32 %v1272, 0.0
        %1277 = vst [vmem:[%s357] sm:$0xff] %v1273
        %vm1278 = vcmask 588800
        %1279 = vst.msk [vmem:[%s357 + $0x8] sm:$0xff] %vm1278, %v1274
        %1280 = vst [vmem:[%s357 + $0x10] sm:$0x3] %v1275
        %vm1281 = vcmask 582656
        %1282 = vst.msk [vmem:[%s357 + $0x18] sm:$0x3] %vm1281, %v1276
        %p1283 = scmp.lt.s32.totalorder %s21, 1
        %s1284 = scalar_select %p1283, %s21, 1
        %s1285 = smul.addr %s1284, 4
        %s1286 = smul.addr %s1285, 8
        %s1287 = scalar_lea.vmem %s7, %s1286
        // Predicated region
        $region69: #{convnet_forward.2} parent=47 // pred_check
          %p1288 = pneg %p191
        $region70: #{convnet_forward.2} parent=47 // pred_check_branch
          %1290 = sbr.rel (%p1288) target = $region72
        $region71: #{convnet_forward.2} parent=47 // pred_region
          _
        $region72: #{convnet_forward.2} parent=47 // pred_fallthru
          _
      $region48: #{convnet_forward.2} parent=5 // pred_fallthru
        _
      %p1291 = scmp.le.s32.totalorder 2, %s16
      // Predicated region
      $region73: #{convnet_forward.2} parent=5 // pred_check
        %p1292 = pneg %p1291
      $region74: #{convnet_forward.2} parent=5 // pred_check_branch
        %1294 = sbr.rel (%p1292) target = $region76
      $region75: #{convnet_forward.2} parent=5 // pred_region
        %s1295 = ssub.s32 %s16, 2
        // Predicated region
        $region77: #{convnet_forward.2} parent=75 // pred_check
          %p1296 = pneg %p197
        $region78: #{convnet_forward.2} parent=75 // pred_check_branch
          %1298 = sbr.rel (%p1296) target = $region80
        $region79: #{convnet_forward.2} parent=75 // pred_region
          %p1299 = scmp.lt.s32.totalorder %s22, 1
          %s1300 = scalar_select %p1299, %s22, 1
          %s1301 = smul.addr %s1300, 4
          %s1302 = smul.addr %s1301, 8
          %s1303 = scalar_lea.vmem %s7, %s1302
        $region80: #{convnet_forward.2} parent=75 // pred_fallthru
          _
      $region76: #{convnet_forward.2} parent=5 // pred_fallthru
        _
    $region6: #{convnet_forward.2} parent=1 // loop_footer
      %s20 = sadd.s32 1, %s16
    $region7: #{convnet_forward.2} parent=1 // loop_footer_branch
      %15 = sbr.rel target = $region3
    $region8: #{convnet_forward.2} parent=1 // loop_exit
      _
    %1304 = vsyncpa [#allocation3], 1
    %s1305 = scalar_lea.sflag [#allocation3], 1
    %1306 = vsyncpa %s1305, 1
    %1307 = vsyncpa [#allocation5], 1
    %1308 = vsyncpa [#allocation8], 1

// kernel: convnet_forward.3
$region0: #{convnet_forward.3}
  #allocation0 [shape = 'u32[]', space=smem, size = 0x4, offset = 0x4, fixed_abs, tag = 'smem constant byte address 0x4 - core index']
  #allocation1 [shape = 'u32[72,128]{1,0:T(1,128)}', space=vmem, size = 0x9000, scoped, tag = 'internal scratch']
  %s0 = inlined_call_operand.vmem [shape: f32[2,2000], index: 0, kind: input, shape index: {}]
  %s1 = inlined_call_operand.hbm [shape: f32[2000,500], index: 1, kind: input, shape index: {}]
  %s2 = inlined_call_operand.hbm [shape: f32[1,500], index: 2, kind: input, shape index: {}]
  %s3 = inlined_call_operand.vmem [shape: f32[500,10], index: 3, kind: input, shape index: {}]
  %s4 = inlined_call_operand.hbm [shape: f32[1,10], index: 4, kind: input, shape index: {}]
  %s5 = inlined_call_operand.hbm [shape: f32[2,10], index: 5, kind: output, shape index: {}]
  %s6 = sld [smem:[#allocation0]]
  $region42: #{convnet_forward.3} parent=0
    _
  %s8 = ssub.s32 1, %s6
  %s9 = scalar_select 0, %s8, %s6
  $region1: #{convnet_forward.3} parent=0
    #allocation2 [shape = 'u8[4096000]{0}', space=vmem, size = 0x3e8000, scoped, tag = 'input window, operand 1, single buffered']
    #allocation3 [shape = 's32[1]{0}', space=sflag, size = 0x4, scoped, tag = 'scoped memory for convnet_forward.3']
    #allocation4 [shape = 's32[1]{0}', space=sflag, size = 0x4, scoped, tag = 'scoped memory for convnet_forward.3']
    #allocation5 [shape = 'u8[2048]{0}', space=vmem, size = 0x800, scoped, tag = 'input window, operand 2, single buffered']
    #allocation6 [shape = 's32[1]{0}', space=sflag, size = 0x4, scoped, tag = 'scoped memory for convnet_forward.3']
    #allocation7 [shape = 'u8[512]{0}', space=vmem, size = 0x400, scoped, tag = 'input window, operand 4, single buffered']
    #allocation8 [shape = 'u8[1024]{0}', space=vmem, size = 0x400, scoped, tag = 'output window, operand 0, single buffered']
    %10 = vsyncpa [#allocation3], 0
    %11 = vsyncpa [#allocation6], 0
    %12 = vsyncpa [#allocation4], 0
    // Predicated region
    $region2: #{convnet_forward.3} parent=1 // pred_check
      _
    $region3: #{convnet_forward.3} parent=1 // pred_check_branch
      %14 = sbr.rel (0) target = $region5
    $region4: #{convnet_forward.3} parent=1 // pred_region
      _
    $region5: #{convnet_forward.3} parent=1 // pred_fallthru
      _
    // Predicated region
    $region6: #{convnet_forward.3} parent=1 // pred_check
      _
    $region7: #{convnet_forward.3} parent=1 // pred_check_branch
      %16 = sbr.rel (0) target = $region9
    $region8: #{convnet_forward.3} parent=1 // pred_region
      %18 = vsyncadd [#allocation3], 0
      %s19 = sshll.u32 %s1, 4
      %s20 = int_to_ptr.hbm [resolvable:$true] %s19
      %s21 = sshll.u32 [#allocation2], 4
      %s22 = int_to_ptr.vmem [resolvable:$true] %s21
      %27 = dma.hbm_to_vmem [thread:$0]  %s20, 128000, %s22, [#allocation3], 512, 512, 32
    $region9: #{convnet_forward.3} parent=1 // pred_fallthru
      _
    // Predicated region
    $region10: #{convnet_forward.3} parent=1 // pred_check
      _
    $region11: #{convnet_forward.3} parent=1 // pred_check_branch
      %29 = sbr.rel (0) target = $region13
    $region12: #{convnet_forward.3} parent=1 // pred_region
      %31 = vsyncadd [#allocation6], 0
      %s33 = sshll.u32 %s2, 4
      %s34 = int_to_ptr.hbm [resolvable:$true] %s33
      %s35 = sshll.u32 [#allocation5], 4
      %s36 = int_to_ptr.vmem [resolvable:$true] %s35
      %38 = dma.hbm_to_vmem [thread:$0]  %s34, 64, %s36, [#allocation6]
    $region13: #{convnet_forward.3} parent=1 // pred_fallthru
      _
    // Predicated region
    $region14: #{convnet_forward.3} parent=1 // pred_check
      _
    $region15: #{convnet_forward.3} parent=1 // pred_check_branch
      %40 = sbr.rel (0) target = $region17
    $region16: #{convnet_forward.3} parent=1 // pred_region
      _
    $region17: #{convnet_forward.3} parent=1 // pred_fallthru
      _
    // Predicated region
    $region18: #{convnet_forward.3} parent=1 // pred_check
      _
    $region19: #{convnet_forward.3} parent=1 // pred_check_branch
      %42 = sbr.rel (0) target = $region21
    $region20: #{convnet_forward.3} parent=1 // pred_region
      %44 = vsyncadd [#allocation6], 0
      %s46 = sshll.u32 %s4, 4
      %s47 = int_to_ptr.hbm [resolvable:$true] %s46
      %s48 = sshll.u32 [#allocation7], 4
      %s49 = int_to_ptr.vmem [resolvable:$true] %s48
      %51 = dma.hbm_to_vmem [thread:$0]  %s47, 16, %s49, [#allocation6]
    $region21: #{convnet_forward.3} parent=1 // pred_fallthru
      _
    // Predicated region
    $region22: #{convnet_forward.3} parent=1 // pred_check
      _
    $region23: #{convnet_forward.3} parent=1 // pred_check_branch
      %53 = sbr.rel (0) target = $region25
    $region24: #{convnet_forward.3} parent=1 // pred_region
      %55 = dma.done [#allocation3], 128000
    $region25: #{convnet_forward.3} parent=1 // pred_fallthru
      _
    // Predicated region
    $region26: #{convnet_forward.3} parent=1 // pred_check
      _
    $region27: #{convnet_forward.3} parent=1 // pred_check_branch
      %57 = sbr.rel (0) target = $region29
    $region28: #{convnet_forward.3} parent=1 // pred_region
      %59 = dma.done [#allocation6], 64
    $region29: #{convnet_forward.3} parent=1 // pred_fallthru
      _
    // Predicated region
    $region30: #{convnet_forward.3} parent=1 // pred_check
      _
    $region31: #{convnet_forward.3} parent=1 // pred_check_branch
      %61 = sbr.rel (0) target = $region33
    $region32: #{convnet_forward.3} parent=1 // pred_region
      %63 = dma.done [#allocation6], 16
    $region33: #{convnet_forward.3} parent=1 // pred_fallthru
      _
    %v64 = vld [vmem:[%s0] sm:$0xff]
    %v65 = vld [vmem:[%s0 + $0x8] sm:$0xff]
    %v66 = vld [vmem:[%s0 + $0x10] sm:$0xff]
    %v67 = vld [vmem:[%s0 + $0x18] sm:$0xff]
    %v68 = vld [vmem:[#allocation2] sm:$0xff]
    %v69 = vld [vmem:[#allocation2 + $0x8] sm:$0xff]
    %v70 = vld [vmem:[#allocation2 + $0x10] sm:$0xff]
    %v71 = vld [vmem:[#allocation2 + $0x18] sm:$0xff]
    %v72 = vld [vmem:[#allocation2 + $0x20] sm:$0xff]
    %v73 = vld [vmem:[#allocation2 + $0x28] sm:$0xff]
    %v74 = vld [vmem:[#allocation2 + $0x30] sm:$0xff]
    %v75 = vld [vmem:[#allocation2 + $0x38] sm:$0xff]
    %v76 = vld [vmem:[#allocation2 + $0x40] sm:$0xff]
    %v77 = vld [vmem:[#allocation2 + $0x48] sm:$0xff]
    %v78 = vld [vmem:[#allocation2 + $0x50] sm:$0xff]
    %v79 = vld [vmem:[#allocation2 + $0x58] sm:$0xff]
    %v80 = vld [vmem:[#allocation2 + $0x60] sm:$0xff]
    %v81 = vld [vmem:[#allocation2 + $0x68] sm:$0xff]
    %v82 = vld [vmem:[#allocation2 + $0x70] sm:$0xff]
    %v83 = vld [vmem:[#allocation2 + $0x78] sm:$0xff]
    %v84 = vld [vmem:[#allocation2 + $0x80] sm:$0xff]
    %v85 = vld [vmem:[#allocation2 + $0x88] sm:$0xff]
    %v86 = vld [vmem:[#allocation2 + $0x90] sm:$0xff]
    %v87 = vld [vmem:[#allocation2 + $0x98] sm:$0xff]
    %v88 = vld [vmem:[#allocation2 + $0xa0] sm:$0xff]
    %v89 = vld [vmem:[#allocation2 + $0xa8] sm:$0xff]
    %v90 = vld [vmem:[#allocation2 + $0xb0] sm:$0xff]
    %v91 = vld [vmem:[#allocation2 + $0xb8] sm:$0xff]
    %v92 = vld [vmem:[#allocation2 + $0xc0] sm:$0xff]
    %v93 = vld [vmem:[#allocation2 + $0xc8] sm:$0xff]
    %v94 = vld [vmem:[#allocation2 + $0xd0] sm:$0xff]
    %v95 = vld [vmem:[#allocation2 + $0xd8] sm:$0xff]
    %v96 = vld [vmem:[#allocation2 + $0xe0] sm:$0xff]
    %v97 = vld [vmem:[#allocation2 + $0xe8] sm:$0xff]
    %v98 = vld [vmem:[#allocation2 + $0xf0] sm:$0xff]
    %v99 = vld [vmem:[#allocation2 + $0xf8] sm:$0xff]
    %v100 = vld [vmem:[#allocation2 + $0x100] sm:$0xff]
    %v101 = vld [vmem:[#allocation2 + $0x108] sm:$0xff]
    %v102 = vld [vmem:[#allocation2 + $0x110] sm:$0xff]
    %v103 = vld [vmem:[#allocation2 + $0x118] sm:$0xff]
    %v104 = vld [vmem:[#allocation2 + $0x120] sm:$0xff]
    %v105 = vld [vmem:[#allocation2 + $0x128] sm:$0xff]
    %v106 = vld [vmem:[#allocation2 + $0x130] sm:$0xff]
    %v107 = vld [vmem:[#allocation2 + $0x138] sm:$0xff]
    %v108 = vld [vmem:[#allocation2 + $0x140] sm:$0xff]
    %v109 = vld [vmem:[#allocation2 + $0x148] sm:$0xff]
    %v110 = vld [vmem:[#allocation2 + $0x150] sm:$0xff]
    %v111 = vld [vmem:[#allocation2 + $0x158] sm:$0xff]
    %v112 = vld [vmem:[#allocation2 + $0x160] sm:$0xff]
    %v113 = vld [vmem:[#allocation2 + $0x168] sm:$0xff]
    %v114 = vld [vmem:[#allocation2 + $0x170] sm:$0xff]
    %v115 = vld [vmem:[#allocation2 + $0x178] sm:$0xff]
    %v116 = vld [vmem:[#allocation2 + $0x180] sm:$0xff]
    %v117 = vld [vmem:[#allocation2 + $0x188] sm:$0xff]
    %v118 = vld [vmem:[#allocation2 + $0x190] sm:$0xff]
    %v119 = vld [vmem:[#allocation2 + $0x198] sm:$0xff]
    %v120 = vld [vmem:[#allocation2 + $0x1a0] sm:$0xff]
    %v121 = vld [vmem:[#allocation2 + $0x1a8] sm:$0xff]
    %v122 = vld [vmem:[#allocation2 + $0x1b0] sm:$0xff]
    %v123 = vld [vmem:[#allocation2 + $0x1b8] sm:$0xff]
    %v124 = vld [vmem:[#allocation2 + $0x1c0] sm:$0xff]
    %v125 = vld [vmem:[#allocation2 + $0x1c8] sm:$0xff]
    %v126 = vld [vmem:[#allocation2 + $0x1d0] sm:$0xff]
    %v127 = vld [vmem:[#allocation2 + $0x1d8] sm:$0xff]
    %v128 = vld [vmem:[#allocation2 + $0x1e0] sm:$0xff]
    %v129 = vld [vmem:[#allocation2 + $0x1e8] sm:$0xff]
    %v130 = vld [vmem:[#allocation2 + $0x1f0] sm:$0xff]
    %v131 = vld [vmem:[#allocation2 + $0x1f8] sm:$0xff]
    %v132 = vld [vmem:[#allocation2 + $0x200] sm:$0xff]
    %v133 = vld [vmem:[#allocation2 + $0x208] sm:$0xff]
    %v134 = vld [vmem:[#allocation2 + $0x210] sm:$0xff]
    %v135 = vld [vmem:[#allocation2 + $0x218] sm:$0xff]
    %v136 = vld [vmem:[#allocation2 + $0x220] sm:$0xff]
    %v137 = vld [vmem:[#allocation2 + $0x228] sm:$0xff]
    %v138 = vld [vmem:[#allocation2 + $0x230] sm:$0xff]
    %v139 = vld [vmem:[#allocation2 + $0x238] sm:$0xff]
    %v140 = vld [vmem:[#allocation2 + $0x240] sm:$0xff]
    %v141 = vld [vmem:[#allocation2 + $0x248] sm:$0xff]
    %v142 = vld [vmem:[#allocation2 + $0x250] sm:$0xff]
    %v143 = vld [vmem:[#allocation2 + $0x258] sm:$0xff]
    %v144 = vld [vmem:[#allocation2 + $0x260] sm:$0xff]
    %v145 = vld [vmem:[#allocation2 + $0x268] sm:$0xff]
    %v146 = vld [vmem:[#allocation2 + $0x270] sm:$0xff]
    %v147 = vld [vmem:[#allocation2 + $0x278] sm:$0xff]
    %v148 = vld [vmem:[#allocation2 + $0x280] sm:$0xff]
    %v149 = vld [vmem:[#allocation2 + $0x288] sm:$0xff]
    %v150 = vld [vmem:[#allocation2 + $0x290] sm:$0xff]
    %v151 = vld [vmem:[#allocation2 + $0x298] sm:$0xff]
    %v152 = vld [vmem:[#allocation2 + $0x2a0] sm:$0xff]
    %v153 = vld [vmem:[#allocation2 + $0x2a8] sm:$0xff]
    %v154 = vld [vmem:[#allocation2 + $0x2b0] sm:$0xff]
    %v155 = vld [vmem:[#allocation2 + $0x2b8] sm:$0xff]
    %v156 = vld [vmem:[#allocation2 + $0x2c0] sm:$0xff]
    %v157 = vld [vmem:[#allocation2 + $0x2c8] sm:$0xff]
    %v158 = vld [vmem:[#allocation2 + $0x2d0] sm:$0xff]
    %v159 = vld [vmem:[#allocation2 + $0x2d8] sm:$0xff]
    %v160 = vld [vmem:[#allocation2 + $0x2e0] sm:$0xff]
    %v161 = vld [vmem:[#allocation2 + $0x2e8] sm:$0xff]
    %v162 = vld [vmem:[#allocation2 + $0x2f0] sm:$0xff]
    %v163 = vld [vmem:[#allocation2 + $0x2f8] sm:$0xff]
    %v164 = vld [vmem:[#allocation2 + $0x300] sm:$0xff]
    %v165 = vld [vmem:[#allocation2 + $0x308] sm:$0xff]
    %v166 = vld [vmem:[#allocation2 + $0x310] sm:$0xff]
    %v167 = vld [vmem:[#allocation2 + $0x318] sm:$0xff]
    %v168 = vld [vmem:[#allocation2 + $0x320] sm:$0xff]
    %v169 = vld [vmem:[#allocation2 + $0x328] sm:$0xff]
    %v170 = vld [vmem:[#allocation2 + $0x330] sm:$0xff]
    %v171 = vld [vmem:[#allocation2 + $0x338] sm:$0xff]
    %v172 = vld [vmem:[#allocation2 + $0x340] sm:$0xff]
    %v173 = vld [vmem:[#allocation2 + $0x348] sm:$0xff]
    %v174 = vld [vmem:[#allocation2 + $0x350] sm:$0xff]
    %v175 = vld [vmem:[#allocation2 + $0x358] sm:$0xff]
    %v176 = vld [vmem:[#allocation2 + $0x360] sm:$0xff]
    %v177 = vld [vmem:[#allocation2 + $0x368] sm:$0xff]
    %v178 = vld [vmem:[#allocation2 + $0x370] sm:$0xff]
    %v179 = vld [vmem:[#allocation2 + $0x378] sm:$0xff]
    %v180 = vld [vmem:[#allocation2 + $0x380] sm:$0xff]
    %v181 = vld [vmem:[#allocation2 + $0x388] sm:$0xff]
    %v182 = vld [vmem:[#allocation2 + $0x390] sm:$0xff]
    %v183 = vld [vmem:[#allocation2 + $0x398] sm:$0xff]
    %v184 = vld [vmem:[#allocation2 + $0x3a0] sm:$0xff]
    %v185 = vld [vmem:[#allocation2 + $0x3a8] sm:$0xff]
    %v186 = vld [vmem:[#allocation2 + $0x3b0] sm:$0xff]
    %v187 = vld [vmem:[#allocation2 + $0x3b8] sm:$0xff]
    %v188 = vld [vmem:[#allocation2 + $0x3c0] sm:$0xff]
    %v189 = vld [vmem:[#allocation2 + $0x3c8] sm:$0xff]
    %v190 = vld [vmem:[#allocation2 + $0x3d0] sm:$0xff]
    %v191 = vld [vmem:[#allocation2 + $0x3d8] sm:$0xff]
    %v192 = vld [vmem:[#allocation2 + $0x3e0] sm:$0xff]
    %v193 = vld [vmem:[#allocation2 + $0x3e8] sm:$0xff]
    %v194 = vld [vmem:[#allocation2 + $0x3f0] sm:$0xff]
    %v195 = vld [vmem:[#allocation2 + $0x3f8] sm:$0xff]
    %v196 = vld [vmem:[#allocation2 + $0x400] sm:$0xff]
    %v197 = vld [vmem:[#allocation2 + $0x408] sm:$0xff]
    %v198 = vld [vmem:[#allocation2 + $0x410] sm:$0xff]
    %v199 = vld [vmem:[#allocation2 + $0x418] sm:$0xff]
    %v200 = vld [vmem:[#allocation2 + $0x420] sm:$0xff]
    %v201 = vld [vmem:[#allocation2 + $0x428] sm:$0xff]
    %v202 = vld [vmem:[#allocation2 + $0x430] sm:$0xff]
    %v203 = vld [vmem:[#allocation2 + $0x438] sm:$0xff]
    %v204 = vld [vmem:[#allocation2 + $0x440] sm:$0xff]
    %v205 = vld [vmem:[#allocation2 + $0x448] sm:$0xff]
    %v206 = vld [vmem:[#allocation2 + $0x450] sm:$0xff]
    %v207 = vld [vmem:[#allocation2 + $0x458] sm:$0xff]
    %v208 = vld [vmem:[#allocation2 + $0x460] sm:$0xff]
    %v209 = vld [vmem:[#allocation2 + $0x468] sm:$0xff]
    %v210 = vld [vmem:[#allocation2 + $0x470] sm:$0xff]
    %v211 = vld [vmem:[#allocation2 + $0x478] sm:$0xff]
    %v212 = vld [vmem:[#allocation2 + $0x480] sm:$0xff]
    %v213 = vld [vmem:[#allocation2 + $0x488] sm:$0xff]
    %v214 = vld [vmem:[#allocation2 + $0x490] sm:$0xff]
    %v215 = vld [vmem:[#allocation2 + $0x498] sm:$0xff]
    %v216 = vld [vmem:[#allocation2 + $0x4a0] sm:$0xff]
    %v217 = vld [vmem:[#allocation2 + $0x4a8] sm:$0xff]
    %v218 = vld [vmem:[#allocation2 + $0x4b0] sm:$0xff]
    %v219 = vld [vmem:[#allocation2 + $0x4b8] sm:$0xff]
    %v220 = vld [vmem:[#allocation2 + $0x4c0] sm:$0xff]
    %v221 = vld [vmem:[#allocation2 + $0x4c8] sm:$0xff]
    %v222 = vld [vmem:[#allocation2 + $0x4d0] sm:$0xff]
    %v223 = vld [vmem:[#allocation2 + $0x4d8] sm:$0xff]
    %v224 = vld [vmem:[#allocation2 + $0x4e0] sm:$0xff]
    %v225 = vld [vmem:[#allocation2 + $0x4e8] sm:$0xff]
    %v226 = vld [vmem:[#allocation2 + $0x4f0] sm:$0xff]
    %v227 = vld [vmem:[#allocation2 + $0x4f8] sm:$0xff]
    %v228 = vld [vmem:[#allocation2 + $0x500] sm:$0xff]
    %v229 = vld [vmem:[#allocation2 + $0x508] sm:$0xff]
    %v230 = vld [vmem:[#allocation2 + $0x510] sm:$0xff]
    %v231 = vld [vmem:[#allocation2 + $0x518] sm:$0xff]
    %v232 = vld [vmem:[#allocation2 + $0x520] sm:$0xff]
    %v233 = vld [vmem:[#allocation2 + $0x528] sm:$0xff]
    %v234 = vld [vmem:[#allocation2 + $0x530] sm:$0xff]
    %v235 = vld [vmem:[#allocation2 + $0x538] sm:$0xff]
    %v236 = vld [vmem:[#allocation2 + $0x540] sm:$0xff]
    %v237 = vld [vmem:[#allocation2 + $0x548] sm:$0xff]
    %v238 = vld [vmem:[#allocation2 + $0x550] sm:$0xff]
    %v239 = vld [vmem:[#allocation2 + $0x558] sm:$0xff]
    %v240 = vld [vmem:[#allocation2 + $0x560] sm:$0xff]
    %v241 = vld [vmem:[#allocation2 + $0x568] sm:$0xff]
    %v242 = vld [vmem:[#allocation2 + $0x570] sm:$0xff]
    %v243 = vld [vmem:[#allocation2 + $0x578] sm:$0xff]
    %v244 = vld [vmem:[#allocation2 + $0x580] sm:$0xff]
    %v245 = vld [vmem:[#allocation2 + $0x588] sm:$0xff]
    %v246 = vld [vmem:[#allocation2 + $0x590] sm:$0xff]
    %v247 = vld [vmem:[#allocation2 + $0x598] sm:$0xff]
    %v248 = vld [vmem:[#allocation2 + $0x5a0] sm:$0xff]
    %v249 = vld [vmem:[#allocation2 + $0x5a8] sm:$0xff]
    %v250 = vld [vmem:[#allocation2 + $0x5b0] sm:$0xff]
    %v251 = vld [vmem:[#allocation2 + $0x5b8] sm:$0xff]
    %v252 = vld [vmem:[#allocation2 + $0x5c0] sm:$0xff]
    %v253 = vld [vmem:[#allocation2 + $0x5c8] sm:$0xff]
    %v254 = vld [vmem:[#allocation2 + $0x5d0] sm:$0xff]
    %v255 = vld [vmem:[#allocation2 + $0x5d8] sm:$0xff]
    %v256 = vld [vmem:[#allocation2 + $0x5e0] sm:$0xff]
    %v257 = vld [vmem:[#allocation2 + $0x5e8] sm:$0xff]
    %v258 = vld [vmem:[#allocation2 + $0x5f0] sm:$0xff]
    %v259 = vld [vmem:[#allocation2 + $0x5f8] sm:$0xff]
    %v260 = vld [vmem:[#allocation2 + $0x600] sm:$0xff]
    %v261 = vld [vmem:[#allocation2 + $0x608] sm:$0xff]
    %v262 = vld [vmem:[#allocation2 + $0x610] sm:$0xff]
    %v263 = vld [vmem:[#allocation2 + $0x618] sm:$0xff]
    %v264 = vld [vmem:[#allocation2 + $0x620] sm:$0xff]
    %v265 = vld [vmem:[#allocation2 + $0x628] sm:$0xff]
    %v266 = vld [vmem:[#allocation2 + $0x630] sm:$0xff]
    %v267 = vld [vmem:[#allocation2 + $0x638] sm:$0xff]
    %v268 = vld [vmem:[#allocation2 + $0x640] sm:$0xff]
    %v269 = vld [vmem:[#allocation2 + $0x648] sm:$0xff]
    %v270 = vld [vmem:[#allocation2 + $0x650] sm:$0xff]
    %v271 = vld [vmem:[#allocation2 + $0x658] sm:$0xff]
    %v272 = vld [vmem:[#allocation2 + $0x660] sm:$0xff]
    %v273 = vld [vmem:[#allocation2 + $0x668] sm:$0xff]
    %v274 = vld [vmem:[#allocation2 + $0x670] sm:$0xff]
    %v275 = vld [vmem:[#allocation2 + $0x678] sm:$0xff]
    %v276 = vld [vmem:[#allocation2 + $0x680] sm:$0xff]
    %v277 = vld [vmem:[#allocation2 + $0x688] sm:$0xff]
    %v278 = vld [vmem:[#allocation2 + $0x690] sm:$0xff]
    %v279 = vld [vmem:[#allocation2 + $0x698] sm:$0xff]
    %v280 = vld [vmem:[#allocation2 + $0x6a0] sm:$0xff]
    %v281 = vld [vmem:[#allocation2 + $0x6a8] sm:$0xff]
    %v282 = vld [vmem:[#allocation2 + $0x6b0] sm:$0xff]
    %v283 = vld [vmem:[#allocation2 + $0x6b8] sm:$0xff]
    %v284 = vld [vmem:[#allocation2 + $0x6c0] sm:$0xff]
    %v285 = vld [vmem:[#allocation2 + $0x6c8] sm:$0xff]
    %v286 = vld [vmem:[#allocation2 + $0x6d0] sm:$0xff]
    %v287 = vld [vmem:[#allocation2 + $0x6d8] sm:$0xff]
    %v288 = vld [vmem:[#allocation2 + $0x6e0] sm:$0xff]
    %v289 = vld [vmem:[#allocation2 + $0x6e8] sm:$0xff]
    %v290 = vld [vmem:[#allocation2 + $0x6f0] sm:$0xff]
    %v291 = vld [vmem:[#allocation2 + $0x6f8] sm:$0xff]
    %v292 = vld [vmem:[#allocation2 + $0x700] sm:$0xff]
    %v293 = vld [vmem:[#allocation2 + $0x708] sm:$0xff]
    %v294 = vld [vmem:[#allocation2 + $0x710] sm:$0xff]
    %v295 = vld [vmem:[#allocation2 + $0x718] sm:$0xff]
    %v296 = vld [vmem:[#allocation2 + $0x720] sm:$0xff]
    %v297 = vld [vmem:[#allocation2 + $0x728] sm:$0xff]
    %v298 = vld [vmem:[#allocation2 + $0x730] sm:$0xff]
    %v299 = vld [vmem:[#allocation2 + $0x738] sm:$0xff]
    %v300 = vld [vmem:[#allocation2 + $0x740] sm:$0xff]
    %v301 = vld [vmem:[#allocation2 + $0x748] sm:$0xff]
    %v302 = vld [vmem:[#allocation2 + $0x750] sm:$0xff]
    %v303 = vld [vmem:[#allocation2 + $0x758] sm:$0xff]
    %v304 = vld [vmem:[#allocation2 + $0x760] sm:$0xff]
    %v305 = vld [vmem:[#allocation2 + $0x768] sm:$0xff]
    %v306 = vld [vmem:[#allocation2 + $0x770] sm:$0xff]
    %v307 = vld [vmem:[#allocation2 + $0x778] sm:$0xff]
    %v308 = vld [vmem:[#allocation2 + $0x780] sm:$0xff]
    %v309 = vld [vmem:[#allocation2 + $0x788] sm:$0xff]
    %v310 = vld [vmem:[#allocation2 + $0x790] sm:$0xff]
    %v311 = vld [vmem:[#allocation2 + $0x798] sm:$0xff]
    %v312 = vld [vmem:[#allocation2 + $0x7a0] sm:$0xff]
    %v313 = vld [vmem:[#allocation2 + $0x7a8] sm:$0xff]
    %v314 = vld [vmem:[#allocation2 + $0x7b0] sm:$0xff]
    %v315 = vld [vmem:[#allocation2 + $0x7b8] sm:$0xff]
    %v316 = vld [vmem:[#allocation2 + $0x7c0] sm:$0xff]
    %v317 = vld [vmem:[#allocation2 + $0x7c8] sm:$0xff]
    %v318 = vld [vmem:[#allocation2 + $0x7d0] sm:$0xff]
    %v319 = vld [vmem:[#allocation2 + $0x7d8] sm:$0xff]
    %v320 = vld [vmem:[#allocation2 + $0x7e0] sm:$0xff]
    %v321 = vld [vmem:[#allocation2 + $0x7e8] sm:$0xff]
    %v322 = vld [vmem:[#allocation2 + $0x7f0] sm:$0xff]
    %v323 = vld [vmem:[#allocation2 + $0x7f8] sm:$0xff]
    %v324 = vld [vmem:[#allocation2 + $0x800] sm:$0xff]
    %v325 = vld [vmem:[#allocation2 + $0x808] sm:$0xff]
    %v326 = vld [vmem:[#allocation2 + $0x810] sm:$0xff]
    %v327 = vld [vmem:[#allocation2 + $0x818] sm:$0xff]
    %v328 = vld [vmem:[#allocation2 + $0x820] sm:$0xff]
    %v329 = vld [vmem:[#allocation2 + $0x828] sm:$0xff]
    %v330 = vld [vmem:[#allocation2 + $0x830] sm:$0xff]
    %v331 = vld [vmem:[#allocation2 + $0x838] sm:$0xff]
    %v332 = vld [vmem:[#allocation2 + $0x840] sm:$0xff]
    %v333 = vld [vmem:[#allocation2 + $0x848] sm:$0xff]
    %v334 = vld [vmem:[#allocation2 + $0x850] sm:$0xff]
    %v335 = vld [vmem:[#allocation2 + $0x858] sm:$0xff]
    %v336 = vld [vmem:[#allocation2 + $0x860] sm:$0xff]
    %v337 = vld [vmem:[#allocation2 + $0x868] sm:$0xff]
    %v338 = vld [vmem:[#allocation2 + $0x870] sm:$0xff]
    %v339 = vld [vmem:[#allocation2 + $0x878] sm:$0xff]
    %v340 = vld [vmem:[#allocation2 + $0x880] sm:$0xff]
    %v341 = vld [vmem:[#allocation2 + $0x888] sm:$0xff]
    %v342 = vld [vmem:[#allocation2 + $0x890] sm:$0xff]
    %v343 = vld [vmem:[#allocation2 + $0x898] sm:$0xff]
    %v344 = vld [vmem:[#allocation2 + $0x8a0] sm:$0xff]
    %v345 = vld [vmem:[#allocation2 + $0x8a8] sm:$0xff]
    %v346 = vld [vmem:[#allocation2 + $0x8b0] sm:$0xff]
    %v347 = vld [vmem:[#allocation2 + $0x8b8] sm:$0xff]
    %v348 = vld [vmem:[#allocation2 + $0x8c0] sm:$0xff]
    %v349 = vld [vmem:[#allocation2 + $0x8c8] sm:$0xff]
    %v350 = vld [vmem:[#allocation2 + $0x8d0] sm:$0xff]
    %v351 = vld [vmem:[#allocation2 + $0x8d8] sm:$0xff]
    %v352 = vld [vmem:[#allocation2 + $0x8e0] sm:$0xff]
    %v353 = vld [vmem:[#allocation2 + $0x8e8] sm:$0xff]
    %v354 = vld [vmem:[#allocation2 + $0x8f0] sm:$0xff]
    %v355 = vld [vmem:[#allocation2 + $0x8f8] sm:$0xff]
    %v356 = vld [vmem:[#allocation2 + $0x900] sm:$0xff]
    %v357 = vld [vmem:[#allocation2 + $0x908] sm:$0xff]
    %v358 = vld [vmem:[#allocation2 + $0x910] sm:$0xff]
    %v359 = vld [vmem:[#allocation2 + $0x918] sm:$0xff]
    %v360 = vld [vmem:[#allocation2 + $0x920] sm:$0xff]
    %v361 = vld [vmem:[#allocation2 + $0x928] sm:$0xff]
    %v362 = vld [vmem:[#allocation2 + $0x930] sm:$0xff]
    %v363 = vld [vmem:[#allocation2 + $0x938] sm:$0xff]
    %v364 = vld [vmem:[#allocation2 + $0x940] sm:$0xff]
    %v365 = vld [vmem:[#allocation2 + $0x948] sm:$0xff]
    %v366 = vld [vmem:[#allocation2 + $0x950] sm:$0xff]
    %v367 = vld [vmem:[#allocation2 + $0x958] sm:$0xff]
    %v368 = vld [vmem:[#allocation2 + $0x960] sm:$0xff]
    %v369 = vld [vmem:[#allocation2 + $0x968] sm:$0xff]
    %v370 = vld [vmem:[#allocation2 + $0x970] sm:$0xff]
    %v371 = vld [vmem:[#allocation2 + $0x978] sm:$0xff]
    %v372 = vld [vmem:[#allocation2 + $0x980] sm:$0xff]
    %v373 = vld [vmem:[#allocation2 + $0x988] sm:$0xff]
    %v374 = vld [vmem:[#allocation2 + $0x990] sm:$0xff]
    %v375 = vld [vmem:[#allocation2 + $0x998] sm:$0xff]
    %v376 = vld [vmem:[#allocation2 + $0x9a0] sm:$0xff]
    %v377 = vld [vmem:[#allocation2 + $0x9a8] sm:$0xff]
    %v378 = vld [vmem:[#allocation2 + $0x9b0] sm:$0xff]
    %v379 = vld [vmem:[#allocation2 + $0x9b8] sm:$0xff]
    %v380 = vld [vmem:[#allocation2 + $0x9c0] sm:$0xff]
    %v381 = vld [vmem:[#allocation2 + $0x9c8] sm:$0xff]
    %v382 = vld [vmem:[#allocation2 + $0x9d0] sm:$0xff]
    %v383 = vld [vmem:[#allocation2 + $0x9d8] sm:$0xff]
    %v384 = vld [vmem:[#allocation2 + $0x9e0] sm:$0xff]
    %v385 = vld [vmem:[#allocation2 + $0x9e8] sm:$0xff]
    %v386 = vld [vmem:[#allocation2 + $0x9f0] sm:$0xff]
    %v387 = vld [vmem:[#allocation2 + $0x9f8] sm:$0xff]
    %v388 = vld [vmem:[#allocation2 + $0xa00] sm:$0xff]
    %v389 = vld [vmem:[#allocation2 + $0xa08] sm:$0xff]
    %v390 = vld [vmem:[#allocation2 + $0xa10] sm:$0xff]
    %v391 = vld [vmem:[#allocation2 + $0xa18] sm:$0xff]
    %v392 = vld [vmem:[#allocation2 + $0xa20] sm:$0xff]
    %v393 = vld [vmem:[#allocation2 + $0xa28] sm:$0xff]
    %v394 = vld [vmem:[#allocation2 + $0xa30] sm:$0xff]
    %v395 = vld [vmem:[#allocation2 + $0xa38] sm:$0xff]
    %v396 = vld [vmem:[#allocation2 + $0xa40] sm:$0xff]
    %v397 = vld [vmem:[#allocation2 + $0xa48] sm:$0xff]
    %v398 = vld [vmem:[#allocation2 + $0xa50] sm:$0xff]
    %v399 = vld [vmem:[#allocation2 + $0xa58] sm:$0xff]
    %v400 = vld [vmem:[#allocation2 + $0xa60] sm:$0xff]
    %v401 = vld [vmem:[#allocation2 + $0xa68] sm:$0xff]
    %v402 = vld [vmem:[#allocation2 + $0xa70] sm:$0xff]
    %v403 = vld [vmem:[#allocation2 + $0xa78] sm:$0xff]
    %v404 = vld [vmem:[#allocation2 + $0xa80] sm:$0xff]
    %v405 = vld [vmem:[#allocation2 + $0xa88] sm:$0xff]
    %v406 = vld [vmem:[#allocation2 + $0xa90] sm:$0xff]
    %v407 = vld [vmem:[#allocation2 + $0xa98] sm:$0xff]
    %v408 = vld [vmem:[#allocation2 + $0xaa0] sm:$0xff]
    %v409 = vld [vmem:[#allocation2 + $0xaa8] sm:$0xff]
    %v410 = vld [vmem:[#allocation2 + $0xab0] sm:$0xff]
    %v411 = vld [vmem:[#allocation2 + $0xab8] sm:$0xff]
    %v412 = vld [vmem:[#allocation2 + $0xac0] sm:$0xff]
    %v413 = vld [vmem:[#allocation2 + $0xac8] sm:$0xff]
    %v414 = vld [vmem:[#allocation2 + $0xad0] sm:$0xff]
    %v415 = vld [vmem:[#allocation2 + $0xad8] sm:$0xff]
    %v416 = vld [vmem:[#allocation2 + $0xae0] sm:$0xff]
    %v417 = vld [vmem:[#allocation2 + $0xae8] sm:$0xff]
    %v418 = vld [vmem:[#allocation2 + $0xaf0] sm:$0xff]
    %v419 = vld [vmem:[#allocation2 + $0xaf8] sm:$0xff]
    %v420 = vld [vmem:[#allocation2 + $0xb00] sm:$0xff]
    %v421 = vld [vmem:[#allocation2 + $0xb08] sm:$0xff]
    %v422 = vld [vmem:[#allocation2 + $0xb10] sm:$0xff]
    %v423 = vld [vmem:[#allocation2 + $0xb18] sm:$0xff]
    %v424 = vld [vmem:[#allocation2 + $0xb20] sm:$0xff]
    %v425 = vld [vmem:[#allocation2 + $0xb28] sm:$0xff]
    %v426 = vld [vmem:[#allocation2 + $0xb30] sm:$0xff]
    %v427 = vld [vmem:[#allocation2 + $0xb38] sm:$0xff]
    %v428 = vld [vmem:[#allocation2 + $0xb40] sm:$0xff]
    %v429 = vld [vmem:[#allocation2 + $0xb48] sm:$0xff]
    %v430 = vld [vmem:[#allocation2 + $0xb50] sm:$0xff]
    %v431 = vld [vmem:[#allocation2 + $0xb58] sm:$0xff]
    %v432 = vld [vmem:[#allocation2 + $0xb60] sm:$0xff]
    %v433 = vld [vmem:[#allocation2 + $0xb68] sm:$0xff]
    %v434 = vld [vmem:[#allocation2 + $0xb70] sm:$0xff]
    %v435 = vld [vmem:[#allocation2 + $0xb78] sm:$0xff]
    %v436 = vld [vmem:[#allocation2 + $0xb80] sm:$0xff]
    %v437 = vld [vmem:[#allocation2 + $0xb88] sm:$0xff]
    %v438 = vld [vmem:[#allocation2 + $0xb90] sm:$0xff]
    %v439 = vld [vmem:[#allocation2 + $0xb98] sm:$0xff]
    %v440 = vld [vmem:[#allocation2 + $0xba0] sm:$0xff]
    %v441 = vld [vmem:[#allocation2 + $0xba8] sm:$0xff]
    %v442 = vld [vmem:[#allocation2 + $0xbb0] sm:$0xff]
    %v443 = vld [vmem:[#allocation2 + $0xbb8] sm:$0xff]
    %v444 = vld [vmem:[#allocation2 + $0xbc0] sm:$0xff]
    %v445 = vld [vmem:[#allocation2 + $0xbc8] sm:$0xff]
    %v446 = vld [vmem:[#allocation2 + $0xbd0] sm:$0xff]
    %v447 = vld [vmem:[#allocation2 + $0xbd8] sm:$0xff]
    %v448 = vld [vmem:[#allocation2 + $0xbe0] sm:$0xff]
    %v449 = vld [vmem:[#allocation2 + $0xbe8] sm:$0xff]
    %v450 = vld [vmem:[#allocation2 + $0xbf0] sm:$0xff]
    %v451 = vld [vmem:[#allocation2 + $0xbf8] sm:$0xff]
    %v452 = vld [vmem:[#allocation2 + $0xc00] sm:$0xff]
    %v453 = vld [vmem:[#allocation2 + $0xc08] sm:$0xff]
    %v454 = vld [vmem:[#allocation2 + $0xc10] sm:$0xff]
    %v455 = vld [vmem:[#allocation2 + $0xc18] sm:$0xff]
    %v456 = vld [vmem:[#allocation2 + $0xc20] sm:$0xff]
    %v457 = vld [vmem:[#allocation2 + $0xc28] sm:$0xff]
    %v458 = vld [vmem:[#allocation2 + $0xc30] sm:$0xff]
    %v459 = vld [vmem:[#allocation2 + $0xc38] sm:$0xff]
    %v460 = vld [vmem:[#allocation2 + $0xc40] sm:$0xff]
    %v461 = vld [vmem:[#allocation2 + $0xc48] sm:$0xff]
    %v462 = vld [vmem:[#allocation2 + $0xc50] sm:$0xff]
    %v463 = vld [vmem:[#allocation2 + $0xc58] sm:$0xff]
    %v464 = vld [vmem:[#allocation2 + $0xc60] sm:$0xff]
    %v465 = vld [vmem:[#allocation2 + $0xc68] sm:$0xff]
    %v466 = vld [vmem:[#allocation2 + $0xc70] sm:$0xff]
    %v467 = vld [vmem:[#allocation2 + $0xc78] sm:$0xff]
    %v468 = vld [vmem:[#allocation2 + $0xc80] sm:$0xff]
    %v469 = vld [vmem:[#allocation2 + $0xc88] sm:$0xff]
    %v470 = vld [vmem:[#allocation2 + $0xc90] sm:$0xff]
    %v471 = vld [vmem:[#allocation2 + $0xc98] sm:$0xff]
    %v472 = vld [vmem:[#allocation2 + $0xca0] sm:$0xff]
    %v473 = vld [vmem:[#allocation2 + $0xca8] sm:$0xff]
    %v474 = vld [vmem:[#allocation2 + $0xcb0] sm:$0xff]
    %v475 = vld [vmem:[#allocation2 + $0xcb8] sm:$0xff]
    %v476 = vld [vmem:[#allocation2 + $0xcc0] sm:$0xff]
    %v477 = vld [vmem:[#allocation2 + $0xcc8] sm:$0xff]
    %v478 = vld [vmem:[#allocation2 + $0xcd0] sm:$0xff]
    %v479 = vld [vmem:[#allocation2 + $0xcd8] sm:$0xff]
    %v480 = vld [vmem:[#allocation2 + $0xce0] sm:$0xff]
    %v481 = vld [vmem:[#allocation2 + $0xce8] sm:$0xff]
    %v482 = vld [vmem:[#allocation2 + $0xcf0] sm:$0xff]
    %v483 = vld [vmem:[#allocation2 + $0xcf8] sm:$0xff]
    %v484 = vld [vmem:[#allocation2 + $0xd00] sm:$0xff]
    %v485 = vld [vmem:[#allocation2 + $0xd08] sm:$0xff]
    %v486 = vld [vmem:[#allocation2 + $0xd10] sm:$0xff]
    %v487 = vld [vmem:[#allocation2 + $0xd18] sm:$0xff]
    %v488 = vld [vmem:[#allocation2 + $0xd20] sm:$0xff]
    %v489 = vld [vmem:[#allocation2 + $0xd28] sm:$0xff]
    %v490 = vld [vmem:[#allocation2 + $0xd30] sm:$0xff]
    %v491 = vld [vmem:[#allocation2 + $0xd38] sm:$0xff]
    %v492 = vld [vmem:[#allocation2 + $0xd40] sm:$0xff]
    %v493 = vld [vmem:[#allocation2 + $0xd48] sm:$0xff]
    %v494 = vld [vmem:[#allocation2 + $0xd50] sm:$0xff]
    %v495 = vld [vmem:[#allocation2 + $0xd58] sm:$0xff]
    %v496 = vld [vmem:[#allocation2 + $0xd60] sm:$0xff]
    %v497 = vld [vmem:[#allocation2 + $0xd68] sm:$0xff]
    %v498 = vld [vmem:[#allocation2 + $0xd70] sm:$0xff]
    %v499 = vld [vmem:[#allocation2 + $0xd78] sm:$0xff]
    %v500 = vld [vmem:[#allocation2 + $0xd80] sm:$0xff]
    %v501 = vld [vmem:[#allocation2 + $0xd88] sm:$0xff]
    %v502 = vld [vmem:[#allocation2 + $0xd90] sm:$0xff]
    %v503 = vld [vmem:[#allocation2 + $0xd98] sm:$0xff]
    %v504 = vld [vmem:[#allocation2 + $0xda0] sm:$0xff]
    %v505 = vld [vmem:[#allocation2 + $0xda8] sm:$0xff]
    %v506 = vld [vmem:[#allocation2 + $0xdb0] sm:$0xff]
    %v507 = vld [vmem:[#allocation2 + $0xdb8] sm:$0xff]
    %v508 = vld [vmem:[#allocation2 + $0xdc0] sm:$0xff]
    %v509 = vld [vmem:[#allocation2 + $0xdc8] sm:$0xff]
    %v510 = vld [vmem:[#allocation2 + $0xdd0] sm:$0xff]
    %v511 = vld [vmem:[#allocation2 + $0xdd8] sm:$0xff]
    %v512 = vld [vmem:[#allocation2 + $0xde0] sm:$0xff]
    %v513 = vld [vmem:[#allocation2 + $0xde8] sm:$0xff]
    %v514 = vld [vmem:[#allocation2 + $0xdf0] sm:$0xff]
    %v515 = vld [vmem:[#allocation2 + $0xdf8] sm:$0xff]
    %v516 = vld [vmem:[#allocation2 + $0xe00] sm:$0xff]
    %v517 = vld [vmem:[#allocation2 + $0xe08] sm:$0xff]
    %v518 = vld [vmem:[#allocation2 + $0xe10] sm:$0xff]
    %v519 = vld [vmem:[#allocation2 + $0xe18] sm:$0xff]
    %v520 = vld [vmem:[#allocation2 + $0xe20] sm:$0xff]
    %v521 = vld [vmem:[#allocation2 + $0xe28] sm:$0xff]
    %v522 = vld [vmem:[#allocation2 + $0xe30] sm:$0xff]
    %v523 = vld [vmem:[#allocation2 + $0xe38] sm:$0xff]
    %v524 = vld [vmem:[#allocation2 + $0xe40] sm:$0xff]
    %v525 = vld [vmem:[#allocation2 + $0xe48] sm:$0xff]
    %v526 = vld [vmem:[#allocation2 + $0xe50] sm:$0xff]
    %v527 = vld [vmem:[#allocation2 + $0xe58] sm:$0xff]
    %v528 = vld [vmem:[#allocation2 + $0xe60] sm:$0xff]
    %v529 = vld [vmem:[#allocation2 + $0xe68] sm:$0xff]
    %v530 = vld [vmem:[#allocation2 + $0xe70] sm:$0xff]
    %v531 = vld [vmem:[#allocation2 + $0xe78] sm:$0xff]
    %v532 = vld [vmem:[#allocation2 + $0xe80] sm:$0xff]
    %v533 = vld [vmem:[#allocation2 + $0xe88] sm:$0xff]
    %v534 = vld [vmem:[#allocation2 + $0xe90] sm:$0xff]
    %v535 = vld [vmem:[#allocation2 + $0xe98] sm:$0xff]
    %v536 = vld [vmem:[#allocation2 + $0xea0] sm:$0xff]
    %v537 = vld [vmem:[#allocation2 + $0xea8] sm:$0xff]
    %v538 = vld [vmem:[#allocation2 + $0xeb0] sm:$0xff]
    %v539 = vld [vmem:[#allocation2 + $0xeb8] sm:$0xff]
    %v540 = vld [vmem:[#allocation2 + $0xec0] sm:$0xff]
    %v541 = vld [vmem:[#allocation2 + $0xec8] sm:$0xff]
    %v542 = vld [vmem:[#allocation2 + $0xed0] sm:$0xff]
    %v543 = vld [vmem:[#allocation2 + $0xed8] sm:$0xff]
    %v544 = vld [vmem:[#allocation2 + $0xee0] sm:$0xff]
    %v545 = vld [vmem:[#allocation2 + $0xee8] sm:$0xff]
    %v546 = vld [vmem:[#allocation2 + $0xef0] sm:$0xff]
    %v547 = vld [vmem:[#allocation2 + $0xef8] sm:$0xff]
    %v548 = vld [vmem:[#allocation2 + $0xf00] sm:$0xff]
    %v549 = vld [vmem:[#allocation2 + $0xf08] sm:$0xff]
    %v550 = vld [vmem:[#allocation2 + $0xf10] sm:$0xff]
    %v551 = vld [vmem:[#allocation2 + $0xf18] sm:$0xff]
    %v552 = vld [vmem:[#allocation2 + $0xf20] sm:$0xff]
    %v553 = vld [vmem:[#allocation2 + $0xf28] sm:$0xff]
    %v554 = vld [vmem:[#allocation2 + $0xf30] sm:$0xff]
    %v555 = vld [vmem:[#allocation2 + $0xf38] sm:$0xff]
    %v556 = vld [vmem:[#allocation2 + $0xf40] sm:$0xff]
    %v557 = vld [vmem:[#allocation2 + $0xf48] sm:$0xff]
    %v558 = vld [vmem:[#allocation2 + $0xf50] sm:$0xff]
    %v559 = vld [vmem:[#allocation2 + $0xf58] sm:$0xff]
    %v560 = vld [vmem:[#allocation2 + $0xf60] sm:$0xff]
    %v561 = vld [vmem:[#allocation2 + $0xf68] sm:$0xff]
    %v562 = vld [vmem:[#allocation2 + $0xf70] sm:$0xff]
    %v563 = vld [vmem:[#allocation2 + $0xf78] sm:$0xff]
    %v564 = vld [vmem:[#allocation2 + $0xf80] sm:$0xff]
    %v565 = vld [vmem:[#allocation2 + $0xf88] sm:$0xff]
    %v566 = vld [vmem:[#allocation2 + $0xf90] sm:$0xff]
    %v567 = vld [vmem:[#allocation2 + $0xf98] sm:$0xff]
    %v568 = vld [vmem:[#allocation2 + $0xfa0] sm:$0xff]
    %v569 = vld [vmem:[#allocation2 + $0xfa8] sm:$0xff]
    %v570 = vld [vmem:[#allocation2 + $0xfb0] sm:$0xff]
    %v571 = vld [vmem:[#allocation2 + $0xfb8] sm:$0xff]
    %v572 = vld [vmem:[#allocation2 + $0xfc0] sm:$0xff]
    %v573 = vld [vmem:[#allocation2 + $0xfc8] sm:$0xff]
    %v574 = vld [vmem:[#allocation2 + $0xfd0] sm:$0xff]
    %v575 = vld [vmem:[#allocation2 + $0xfd8] sm:$0xff]
    %v576 = vld [vmem:[#allocation2 + $0xfe0] sm:$0xff]
    %v577 = vld [vmem:[#allocation2 + $0xfe8] sm:$0xff]
    %v578 = vld [vmem:[#allocation2 + $0xff0] sm:$0xff]
    %v579 = vld [vmem:[#allocation2 + $0xff8] sm:$0xff]
    %v580 = vld [vmem:[#allocation2 + $0x1000] sm:$0xff]
    %v581 = vld [vmem:[#allocation2 + $0x1008] sm:$0xff]
    %v582 = vld [vmem:[#allocation2 + $0x1010] sm:$0xff]
    %v583 = vld [vmem:[#allocation2 + $0x1018] sm:$0xff]
    %v584 = vld [vmem:[#allocation2 + $0x1020] sm:$0xff]
    %v585 = vld [vmem:[#allocation2 + $0x1028] sm:$0xff]
    %v586 = vld [vmem:[#allocation2 + $0x1030] sm:$0xff]
    %v587 = vld [vmem:[#allocation2 + $0x1038] sm:$0xff]
    %v588 = vld [vmem:[#allocation2 + $0x1040] sm:$0xff]
    %v589 = vld [vmem:[#allocation2 + $0x1048] sm:$0xff]
    %v590 = vld [vmem:[#allocation2 + $0x1050] sm:$0xff]
    %v591 = vld [vmem:[#allocation2 + $0x1058] sm:$0xff]
    %v592 = vld [vmem:[#allocation2 + $0x1060] sm:$0xff]
    %v593 = vld [vmem:[#allocation2 + $0x1068] sm:$0xff]
    %v594 = vld [vmem:[#allocation2 + $0x1070] sm:$0xff]
    %v595 = vld [vmem:[#allocation2 + $0x1078] sm:$0xff]
    %v596 = vld [vmem:[#allocation2 + $0x1080] sm:$0xff]
    %v597 = vld [vmem:[#allocation2 + $0x1088] sm:$0xff]
    %v598 = vld [vmem:[#allocation2 + $0x1090] sm:$0xff]
    %v599 = vld [vmem:[#allocation2 + $0x1098] sm:$0xff]
    %v600 = vld [vmem:[#allocation2 + $0x10a0] sm:$0xff]
    %v601 = vld [vmem:[#allocation2 + $0x10a8] sm:$0xff]
    %v602 = vld [vmem:[#allocation2 + $0x10b0] sm:$0xff]
    %v603 = vld [vmem:[#allocation2 + $0x10b8] sm:$0xff]
    %v604 = vld [vmem:[#allocation2 + $0x10c0] sm:$0xff]
    %v605 = vld [vmem:[#allocation2 + $0x10c8] sm:$0xff]
    %v606 = vld [vmem:[#allocation2 + $0x10d0] sm:$0xff]
    %v607 = vld [vmem:[#allocation2 + $0x10d8] sm:$0xff]
    %v608 = vld [vmem:[#allocation2 + $0x10e0] sm:$0xff]
    %v609 = vld [vmem:[#allocation2 + $0x10e8] sm:$0xff]
    %v610 = vld [vmem:[#allocation2 + $0x10f0] sm:$0xff]
    %v611 = vld [vmem:[#allocation2 + $0x10f8] sm:$0xff]
    %v612 = vld [vmem:[#allocation2 + $0x1100] sm:$0xff]
    %v613 = vld [vmem:[#allocation2 + $0x1108] sm:$0xff]
    %v614 = vld [vmem:[#allocation2 + $0x1110] sm:$0xff]
    %v615 = vld [vmem:[#allocation2 + $0x1118] sm:$0xff]
    %v616 = vld [vmem:[#allocation2 + $0x1120] sm:$0xff]
    %v617 = vld [vmem:[#allocation2 + $0x1128] sm:$0xff]
    %v618 = vld [vmem:[#allocation2 + $0x1130] sm:$0xff]
    %v619 = vld [vmem:[#allocation2 + $0x1138] sm:$0xff]
    %v620 = vld [vmem:[#allocation2 + $0x1140] sm:$0xff]
    %v621 = vld [vmem:[#allocation2 + $0x1148] sm:$0xff]
    %v622 = vld [vmem:[#allocation2 + $0x1150] sm:$0xff]
    %v623 = vld [vmem:[#allocation2 + $0x1158] sm:$0xff]
    %v624 = vld [vmem:[#allocation2 + $0x1160] sm:$0xff]
    %v625 = vld [vmem:[#allocation2 + $0x1168] sm:$0xff]
    %v626 = vld [vmem:[#allocation2 + $0x1170] sm:$0xff]
    %v627 = vld [vmem:[#allocation2 + $0x1178] sm:$0xff]
    %v628 = vld [vmem:[#allocation2 + $0x1180] sm:$0xff]
    %v629 = vld [vmem:[#allocation2 + $0x1188] sm:$0xff]
    %v630 = vld [vmem:[#allocation2 + $0x1190] sm:$0xff]
    %v631 = vld [vmem:[#allocation2 + $0x1198] sm:$0xff]
    %v632 = vld [vmem:[#allocation2 + $0x11a0] sm:$0xff]
    %v633 = vld [vmem:[#allocation2 + $0x11a8] sm:$0xff]
    %v634 = vld [vmem:[#allocation2 + $0x11b0] sm:$0xff]
    %v635 = vld [vmem:[#allocation2 + $0x11b8] sm:$0xff]
    %v636 = vld [vmem:[#allocation2 + $0x11c0] sm:$0xff]
    %v637 = vld [vmem:[#allocation2 + $0x11c8] sm:$0xff]
    %v638 = vld [vmem:[#allocation2 + $0x11d0] sm:$0xff]
    %v639 = vld [vmem:[#allocation2 + $0x11d8] sm:$0xff]
    %v640 = vld [vmem:[#allocation2 + $0x11e0] sm:$0xff]
    %v641 = vld [vmem:[#allocation2 + $0x11e8] sm:$0xff]
    %v642 = vld [vmem:[#allocation2 + $0x11f0] sm:$0xff]
    %v643 = vld [vmem:[#allocation2 + $0x11f8] sm:$0xff]
    %v644 = vld [vmem:[#allocation2 + $0x1200] sm:$0xff]
    %v645 = vld [vmem:[#allocation2 + $0x1208] sm:$0xff]
    %v646 = vld [vmem:[#allocation2 + $0x1210] sm:$0xff]
    %v647 = vld [vmem:[#allocation2 + $0x1218] sm:$0xff]
    %v648 = vld [vmem:[#allocation2 + $0x1220] sm:$0xff]
    %v649 = vld [vmem:[#allocation2 + $0x1228] sm:$0xff]
    %v650 = vld [vmem:[#allocation2 + $0x1230] sm:$0xff]
    %v651 = vld [vmem:[#allocation2 + $0x1238] sm:$0xff]
    %v652 = vld [vmem:[#allocation2 + $0x1240] sm:$0xff]
    %v653 = vld [vmem:[#allocation2 + $0x1248] sm:$0xff]
    %v654 = vld [vmem:[#allocation2 + $0x1250] sm:$0xff]
    %v655 = vld [vmem:[#allocation2 + $0x1258] sm:$0xff]
    %v656 = vld [vmem:[#allocation2 + $0x1260] sm:$0xff]
    %v657 = vld [vmem:[#allocation2 + $0x1268] sm:$0xff]
    %v658 = vld [vmem:[#allocation2 + $0x1270] sm:$0xff]
    %v659 = vld [vmem:[#allocation2 + $0x1278] sm:$0xff]
    %v660 = vld [vmem:[#allocation2 + $0x1280] sm:$0xff]
    %v661 = vld [vmem:[#allocation2 + $0x1288] sm:$0xff]
    %v662 = vld [vmem:[#allocation2 + $0x1290] sm:$0xff]
    %v663 = vld [vmem:[#allocation2 + $0x1298] sm:$0xff]
    %v664 = vld [vmem:[#allocation2 + $0x12a0] sm:$0xff]
    %v665 = vld [vmem:[#allocation2 + $0x12a8] sm:$0xff]
    %v666 = vld [vmem:[#allocation2 + $0x12b0] sm:$0xff]
    %v667 = vld [vmem:[#allocation2 + $0x12b8] sm:$0xff]
    %v668 = vld [vmem:[#allocation2 + $0x12c0] sm:$0xff]
    %v669 = vld [vmem:[#allocation2 + $0x12c8] sm:$0xff]
    %v670 = vld [vmem:[#allocation2 + $0x12d0] sm:$0xff]
    %v671 = vld [vmem:[#allocation2 + $0x12d8] sm:$0xff]
    %v672 = vld [vmem:[#allocation2 + $0x12e0] sm:$0xff]
    %v673 = vld [vmem:[#allocation2 + $0x12e8] sm:$0xff]
    %v674 = vld [vmem:[#allocation2 + $0x12f0] sm:$0xff]
    %v675 = vld [vmem:[#allocation2 + $0x12f8] sm:$0xff]
    %v676 = vld [vmem:[#allocation2 + $0x1300] sm:$0xff]
    %v677 = vld [vmem:[#allocation2 + $0x1308] sm:$0xff]
    %v678 = vld [vmem:[#allocation2 + $0x1310] sm:$0xff]
    %v679 = vld [vmem:[#allocation2 + $0x1318] sm:$0xff]
    %v680 = vld [vmem:[#allocation2 + $0x1320] sm:$0xff]
    %v681 = vld [vmem:[#allocation2 + $0x1328] sm:$0xff]
    %v682 = vld [vmem:[#allocation2 + $0x1330] sm:$0xff]
    %v683 = vld [vmem:[#allocation2 + $0x1338] sm:$0xff]
    %v684 = vld [vmem:[#allocation2 + $0x1340] sm:$0xff]
    %v685 = vld [vmem:[#allocation2 + $0x1348] sm:$0xff]
    %v686 = vld [vmem:[#allocation2 + $0x1350] sm:$0xff]
    %v687 = vld [vmem:[#allocation2 + $0x1358] sm:$0xff]
    %v688 = vld [vmem:[#allocation2 + $0x1360] sm:$0xff]
    %v689 = vld [vmem:[#allocation2 + $0x1368] sm:$0xff]
    %v690 = vld [vmem:[#allocation2 + $0x1370] sm:$0xff]
    %v691 = vld [vmem:[#allocation2 + $0x1378] sm:$0xff]
    %v692 = vld [vmem:[#allocation2 + $0x1380] sm:$0xff]
    %v693 = vld [vmem:[#allocation2 + $0x1388] sm:$0xff]
    %v694 = vld [vmem:[#allocation2 + $0x1390] sm:$0xff]
    %v695 = vld [vmem:[#allocation2 + $0x1398] sm:$0xff]
    %v696 = vld [vmem:[#allocation2 + $0x13a0] sm:$0xff]
    %v697 = vld [vmem:[#allocation2 + $0x13a8] sm:$0xff]
    %v698 = vld [vmem:[#allocation2 + $0x13b0] sm:$0xff]
    %v699 = vld [vmem:[#allocation2 + $0x13b8] sm:$0xff]
    %v700 = vld [vmem:[#allocation2 + $0x13c0] sm:$0xff]
    %v701 = vld [vmem:[#allocation2 + $0x13c8] sm:$0xff]
    %v702 = vld [vmem:[#allocation2 + $0x13d0] sm:$0xff]
    %v703 = vld [vmem:[#allocation2 + $0x13d8] sm:$0xff]
    %v704 = vld [vmem:[#allocation2 + $0x13e0] sm:$0xff]
    %v705 = vld [vmem:[#allocation2 + $0x13e8] sm:$0xff]
    %v706 = vld [vmem:[#allocation2 + $0x13f0] sm:$0xff]
    %v707 = vld [vmem:[#allocation2 + $0x13f8] sm:$0xff]
    %v708 = vld [vmem:[#allocation2 + $0x1400] sm:$0xff]
    %v709 = vld [vmem:[#allocation2 + $0x1408] sm:$0xff]
    %v710 = vld [vmem:[#allocation2 + $0x1410] sm:$0xff]
    %v711 = vld [vmem:[#allocation2 + $0x1418] sm:$0xff]
    %v712 = vld [vmem:[#allocation2 + $0x1420] sm:$0xff]
    %v713 = vld [vmem:[#allocation2 + $0x1428] sm:$0xff]
    %v714 = vld [vmem:[#allocation2 + $0x1430] sm:$0xff]
    %v715 = vld [vmem:[#allocation2 + $0x1438] sm:$0xff]
    %v716 = vld [vmem:[#allocation2 + $0x1440] sm:$0xff]
    %v717 = vld [vmem:[#allocation2 + $0x1448] sm:$0xff]
    %v718 = vld [vmem:[#allocation2 + $0x1450] sm:$0xff]
    %v719 = vld [vmem:[#allocation2 + $0x1458] sm:$0xff]
    %v720 = vld [vmem:[#allocation2 + $0x1460] sm:$0xff]
    %v721 = vld [vmem:[#allocation2 + $0x1468] sm:$0xff]
    %v722 = vld [vmem:[#allocation2 + $0x1470] sm:$0xff]
    %v723 = vld [vmem:[#allocation2 + $0x1478] sm:$0xff]
    %v724 = vld [vmem:[#allocation2 + $0x1480] sm:$0xff]
    %v725 = vld [vmem:[#allocation2 + $0x1488] sm:$0xff]
    %v726 = vld [vmem:[#allocation2 + $0x1490] sm:$0xff]
    %v727 = vld [vmem:[#allocation2 + $0x1498] sm:$0xff]
    %v728 = vld [vmem:[#allocation2 + $0x14a0] sm:$0xff]
    %v729 = vld [vmem:[#allocation2 + $0x14a8] sm:$0xff]
    %v730 = vld [vmem:[#allocation2 + $0x14b0] sm:$0xff]
    %v731 = vld [vmem:[#allocation2 + $0x14b8] sm:$0xff]
    %v732 = vld [vmem:[#allocation2 + $0x14c0] sm:$0xff]
    %v733 = vld [vmem:[#allocation2 + $0x14c8] sm:$0xff]
    %v734 = vld [vmem:[#allocation2 + $0x14d0] sm:$0xff]
    %v735 = vld [vmem:[#allocation2 + $0x14d8] sm:$0xff]
    %v736 = vld [vmem:[#allocation2 + $0x14e0] sm:$0xff]
    %v737 = vld [vmem:[#allocation2 + $0x14e8] sm:$0xff]
    %v738 = vld [vmem:[#allocation2 + $0x14f0] sm:$0xff]
    %v739 = vld [vmem:[#allocation2 + $0x14f8] sm:$0xff]
    %v740 = vld [vmem:[#allocation2 + $0x1500] sm:$0xff]
    %v741 = vld [vmem:[#allocation2 + $0x1508] sm:$0xff]
    %v742 = vld [vmem:[#allocation2 + $0x1510] sm:$0xff]
    %v743 = vld [vmem:[#allocation2 + $0x1518] sm:$0xff]
    %v744 = vld [vmem:[#allocation2 + $0x1520] sm:$0xff]
    %v745 = vld [vmem:[#allocation2 + $0x1528] sm:$0xff]
    %v746 = vld [vmem:[#allocation2 + $0x1530] sm:$0xff]
    %v747 = vld [vmem:[#allocation2 + $0x1538] sm:$0xff]
    %v748 = vld [vmem:[#allocation2 + $0x1540] sm:$0xff]
    %v749 = vld [vmem:[#allocation2 + $0x1548] sm:$0xff]
    %v750 = vld [vmem:[#allocation2 + $0x1550] sm:$0xff]
    %v751 = vld [vmem:[#allocation2 + $0x1558] sm:$0xff]
    %v752 = vld [vmem:[#allocation2 + $0x1560] sm:$0xff]
    %v753 = vld [vmem:[#allocation2 + $0x1568] sm:$0xff]
    %v754 = vld [vmem:[#allocation2 + $0x1570] sm:$0xff]
    %v755 = vld [vmem:[#allocation2 + $0x1578] sm:$0xff]
    %v756 = vld [vmem:[#allocation2 + $0x1580] sm:$0xff]
    %v757 = vld [vmem:[#allocation2 + $0x1588] sm:$0xff]
    %v758 = vld [vmem:[#allocation2 + $0x1590] sm:$0xff]
    %v759 = vld [vmem:[#allocation2 + $0x1598] sm:$0xff]
    %v760 = vld [vmem:[#allocation2 + $0x15a0] sm:$0xff]
    %v761 = vld [vmem:[#allocation2 + $0x15a8] sm:$0xff]
    %v762 = vld [vmem:[#allocation2 + $0x15b0] sm:$0xff]
    %v763 = vld [vmem:[#allocation2 + $0x15b8] sm:$0xff]
    %v764 = vld [vmem:[#allocation2 + $0x15c0] sm:$0xff]
    %v765 = vld [vmem:[#allocation2 + $0x15c8] sm:$0xff]
    %v766 = vld [vmem:[#allocation2 + $0x15d0] sm:$0xff]
    %v767 = vld [vmem:[#allocation2 + $0x15d8] sm:$0xff]
    %v768 = vld [vmem:[#allocation2 + $0x15e0] sm:$0xff]
    %v769 = vld [vmem:[#allocation2 + $0x15e8] sm:$0xff]
    %v770 = vld [vmem:[#allocation2 + $0x15f0] sm:$0xff]
    %v771 = vld [vmem:[#allocation2 + $0x15f8] sm:$0xff]
    %v772 = vld [vmem:[#allocation2 + $0x1600] sm:$0xff]
    %v773 = vld [vmem:[#allocation2 + $0x1608] sm:$0xff]
    %v774 = vld [vmem:[#allocation2 + $0x1610] sm:$0xff]
    %v775 = vld [vmem:[#allocation2 + $0x1618] sm:$0xff]
    %v776 = vld [vmem:[#allocation2 + $0x1620] sm:$0xff]
    %v777 = vld [vmem:[#allocation2 + $0x1628] sm:$0xff]
    %v778 = vld [vmem:[#allocation2 + $0x1630] sm:$0xff]
    %v779 = vld [vmem:[#allocation2 + $0x1638] sm:$0xff]
    %v780 = vld [vmem:[#allocation2 + $0x1640] sm:$0xff]
    %v781 = vld [vmem:[#allocation2 + $0x1648] sm:$0xff]
    %v782 = vld [vmem:[#allocation2 + $0x1650] sm:$0xff]
    %v783 = vld [vmem:[#allocation2 + $0x1658] sm:$0xff]
    %v784 = vld [vmem:[#allocation2 + $0x1660] sm:$0xff]
    %v785 = vld [vmem:[#allocation2 + $0x1668] sm:$0xff]
    %v786 = vld [vmem:[#allocation2 + $0x1670] sm:$0xff]
    %v787 = vld [vmem:[#allocation2 + $0x1678] sm:$0xff]
    %v788 = vld [vmem:[#allocation2 + $0x1680] sm:$0xff]
    %v789 = vld [vmem:[#allocation2 + $0x1688] sm:$0xff]
    %v790 = vld [vmem:[#allocation2 + $0x1690] sm:$0xff]
    %v791 = vld [vmem:[#allocation2 + $0x1698] sm:$0xff]
    %v792 = vld [vmem:[#allocation2 + $0x16a0] sm:$0xff]
    %v793 = vld [vmem:[#allocation2 + $0x16a8] sm:$0xff]
    %v794 = vld [vmem:[#allocation2 + $0x16b0] sm:$0xff]
    %v795 = vld [vmem:[#allocation2 + $0x16b8] sm:$0xff]
    %v796 = vld [vmem:[#allocation2 + $0x16c0] sm:$0xff]
    %v797 = vld [vmem:[#allocation2 + $0x16c8] sm:$0xff]
    %v798 = vld [vmem:[#allocation2 + $0x16d0] sm:$0xff]
    %v799 = vld [vmem:[#allocation2 + $0x16d8] sm:$0xff]
    %v800 = vld [vmem:[#allocation2 + $0x16e0] sm:$0xff]
    %v801 = vld [vmem:[#allocation2 + $0x16e8] sm:$0xff]
    %v802 = vld [vmem:[#allocation2 + $0x16f0] sm:$0xff]
    %v803 = vld [vmem:[#allocation2 + $0x16f8] sm:$0xff]
    %v804 = vld [vmem:[#allocation2 + $0x1700] sm:$0xff]
    %v805 = vld [vmem:[#allocation2 + $0x1708] sm:$0xff]
    %v806 = vld [vmem:[#allocation2 + $0x1710] sm:$0xff]
    %v807 = vld [vmem:[#allocation2 + $0x1718] sm:$0xff]
    %v808 = vld [vmem:[#allocation2 + $0x1720] sm:$0xff]
    %v809 = vld [vmem:[#allocation2 + $0x1728] sm:$0xff]
    %v810 = vld [vmem:[#allocation2 + $0x1730] sm:$0xff]
    %v811 = vld [vmem:[#allocation2 + $0x1738] sm:$0xff]
    %v812 = vld [vmem:[#allocation2 + $0x1740] sm:$0xff]
    %v813 = vld [vmem:[#allocation2 + $0x1748] sm:$0xff]
    %v814 = vld [vmem:[#allocation2 + $0x1750] sm:$0xff]
    %v815 = vld [vmem:[#allocation2 + $0x1758] sm:$0xff]
    %v816 = vld [vmem:[#allocation2 + $0x1760] sm:$0xff]
    %v817 = vld [vmem:[#allocation2 + $0x1768] sm:$0xff]
    %v818 = vld [vmem:[#allocation2 + $0x1770] sm:$0xff]
    %v819 = vld [vmem:[#allocation2 + $0x1778] sm:$0xff]
    %v820 = vld [vmem:[#allocation2 + $0x1780] sm:$0xff]
    %v821 = vld [vmem:[#allocation2 + $0x1788] sm:$0xff]
    %v822 = vld [vmem:[#allocation2 + $0x1790] sm:$0xff]
    %v823 = vld [vmem:[#allocation2 + $0x1798] sm:$0xff]
    %v824 = vld [vmem:[#allocation2 + $0x17a0] sm:$0xff]
    %v825 = vld [vmem:[#allocation2 + $0x17a8] sm:$0xff]
    %v826 = vld [vmem:[#allocation2 + $0x17b0] sm:$0xff]
    %v827 = vld [vmem:[#allocation2 + $0x17b8] sm:$0xff]
    %v828 = vld [vmem:[#allocation2 + $0x17c0] sm:$0xff]
    %v829 = vld [vmem:[#allocation2 + $0x17c8] sm:$0xff]
    %v830 = vld [vmem:[#allocation2 + $0x17d0] sm:$0xff]
    %v831 = vld [vmem:[#allocation2 + $0x17d8] sm:$0xff]
    %v832 = vld [vmem:[#allocation2 + $0x17e0] sm:$0xff]
    %v833 = vld [vmem:[#allocation2 + $0x17e8] sm:$0xff]
    %v834 = vld [vmem:[#allocation2 + $0x17f0] sm:$0xff]
    %v835 = vld [vmem:[#allocation2 + $0x17f8] sm:$0xff]
    %v836 = vld [vmem:[#allocation2 + $0x1800] sm:$0xff]
    %v837 = vld [vmem:[#allocation2 + $0x1808] sm:$0xff]
    %v838 = vld [vmem:[#allocation2 + $0x1810] sm:$0xff]
    %v839 = vld [vmem:[#allocation2 + $0x1818] sm:$0xff]
    %v840 = vld [vmem:[#allocation2 + $0x1820] sm:$0xff]
    %v841 = vld [vmem:[#allocation2 + $0x1828] sm:$0xff]
    %v842 = vld [vmem:[#allocation2 + $0x1830] sm:$0xff]
    %v843 = vld [vmem:[#allocation2 + $0x1838] sm:$0xff]
    %v844 = vld [vmem:[#allocation2 + $0x1840] sm:$0xff]
    %v845 = vld [vmem:[#allocation2 + $0x1848] sm:$0xff]
    %v846 = vld [vmem:[#allocation2 + $0x1850] sm:$0xff]
    %v847 = vld [vmem:[#allocation2 + $0x1858] sm:$0xff]
    %v848 = vld [vmem:[#allocation2 + $0x1860] sm:$0xff]
    %v849 = vld [vmem:[#allocation2 + $0x1868] sm:$0xff]
    %v850 = vld [vmem:[#allocation2 + $0x1870] sm:$0xff]
    %v851 = vld [vmem:[#allocation2 + $0x1878] sm:$0xff]
    %v852 = vld [vmem:[#allocation2 + $0x1880] sm:$0xff]
    %v853 = vld [vmem:[#allocation2 + $0x1888] sm:$0xff]
    %v854 = vld [vmem:[#allocation2 + $0x1890] sm:$0xff]
    %v855 = vld [vmem:[#allocation2 + $0x1898] sm:$0xff]
    %v856 = vld [vmem:[#allocation2 + $0x18a0] sm:$0xff]
    %v857 = vld [vmem:[#allocation2 + $0x18a8] sm:$0xff]
    %v858 = vld [vmem:[#allocation2 + $0x18b0] sm:$0xff]
    %v859 = vld [vmem:[#allocation2 + $0x18b8] sm:$0xff]
    %v860 = vld [vmem:[#allocation2 + $0x18c0] sm:$0xff]
    %v861 = vld [vmem:[#allocation2 + $0x18c8] sm:$0xff]
    %v862 = vld [vmem:[#allocation2 + $0x18d0] sm:$0xff]
    %v863 = vld [vmem:[#allocation2 + $0x18d8] sm:$0xff]
    %v864 = vld [vmem:[#allocation2 + $0x18e0] sm:$0xff]
    %v865 = vld [vmem:[#allocation2 + $0x18e8] sm:$0xff]
    %v866 = vld [vmem:[#allocation2 + $0x18f0] sm:$0xff]
    %v867 = vld [vmem:[#allocation2 + $0x18f8] sm:$0xff]
    %v868 = vld [vmem:[#allocation2 + $0x1900] sm:$0xff]
    %v869 = vld [vmem:[#allocation2 + $0x1908] sm:$0xff]
    %v870 = vld [vmem:[#allocation2 + $0x1910] sm:$0xff]
    %v871 = vld [vmem:[#allocation2 + $0x1918] sm:$0xff]
    %v872 = vld [vmem:[#allocation2 + $0x1920] sm:$0xff]
    %v873 = vld [vmem:[#allocation2 + $0x1928] sm:$0xff]
    %v874 = vld [vmem:[#allocation2 + $0x1930] sm:$0xff]
    %v875 = vld [vmem:[#allocation2 + $0x1938] sm:$0xff]
    %v876 = vld [vmem:[#allocation2 + $0x1940] sm:$0xff]
    %v877 = vld [vmem:[#allocation2 + $0x1948] sm:$0xff]
    %v878 = vld [vmem:[#allocation2 + $0x1950] sm:$0xff]
    %v879 = vld [vmem:[#allocation2 + $0x1958] sm:$0xff]
    %v880 = vld [vmem:[#allocation2 + $0x1960] sm:$0xff]
    %v881 = vld [vmem:[#allocation2 + $0x1968] sm:$0xff]
    %v882 = vld [vmem:[#allocation2 + $0x1970] sm:$0xff]
    %v883 = vld [vmem:[#allocation2 + $0x1978] sm:$0xff]
    %v884 = vld [vmem:[#allocation2 + $0x1980] sm:$0xff]
    %v885 = vld [vmem:[#allocation2 + $0x1988] sm:$0xff]
    %v886 = vld [vmem:[#allocation2 + $0x1990] sm:$0xff]
    %v887 = vld [vmem:[#allocation2 + $0x1998] sm:$0xff]
    %v888 = vld [vmem:[#allocation2 + $0x19a0] sm:$0xff]
    %v889 = vld [vmem:[#allocation2 + $0x19a8] sm:$0xff]
    %v890 = vld [vmem:[#allocation2 + $0x19b0] sm:$0xff]
    %v891 = vld [vmem:[#allocation2 + $0x19b8] sm:$0xff]
    %v892 = vld [vmem:[#allocation2 + $0x19c0] sm:$0xff]
    %v893 = vld [vmem:[#allocation2 + $0x19c8] sm:$0xff]
    %v894 = vld [vmem:[#allocation2 + $0x19d0] sm:$0xff]
    %v895 = vld [vmem:[#allocation2 + $0x19d8] sm:$0xff]
    %v896 = vld [vmem:[#allocation2 + $0x19e0] sm:$0xff]
    %v897 = vld [vmem:[#allocation2 + $0x19e8] sm:$0xff]
    %v898 = vld [vmem:[#allocation2 + $0x19f0] sm:$0xff]
    %v899 = vld [vmem:[#allocation2 + $0x19f8] sm:$0xff]
    %v900 = vld [vmem:[#allocation2 + $0x1a00] sm:$0xff]
    %v901 = vld [vmem:[#allocation2 + $0x1a08] sm:$0xff]
    %v902 = vld [vmem:[#allocation2 + $0x1a10] sm:$0xff]
    %v903 = vld [vmem:[#allocation2 + $0x1a18] sm:$0xff]
    %v904 = vld [vmem:[#allocation2 + $0x1a20] sm:$0xff]
    %v905 = vld [vmem:[#allocation2 + $0x1a28] sm:$0xff]
    %v906 = vld [vmem:[#allocation2 + $0x1a30] sm:$0xff]
    %v907 = vld [vmem:[#allocation2 + $0x1a38] sm:$0xff]
    %v908 = vld [vmem:[#allocation2 + $0x1a40] sm:$0xff]
    %v909 = vld [vmem:[#allocation2 + $0x1a48] sm:$0xff]
    %v910 = vld [vmem:[#allocation2 + $0x1a50] sm:$0xff]
    %v911 = vld [vmem:[#allocation2 + $0x1a58] sm:$0xff]
    %v912 = vld [vmem:[#allocation2 + $0x1a60] sm:$0xff]
    %v913 = vld [vmem:[#allocation2 + $0x1a68] sm:$0xff]
    %v914 = vld [vmem:[#allocation2 + $0x1a70] sm:$0xff]
    %v915 = vld [vmem:[#allocation2 + $0x1a78] sm:$0xff]
    %v916 = vld [vmem:[#allocation2 + $0x1a80] sm:$0xff]
    %v917 = vld [vmem:[#allocation2 + $0x1a88] sm:$0xff]
    %v918 = vld [vmem:[#allocation2 + $0x1a90] sm:$0xff]
    %v919 = vld [vmem:[#allocation2 + $0x1a98] sm:$0xff]
    %v920 = vld [vmem:[#allocation2 + $0x1aa0] sm:$0xff]
    %v921 = vld [vmem:[#allocation2 + $0x1aa8] sm:$0xff]
    %v922 = vld [vmem:[#allocation2 + $0x1ab0] sm:$0xff]
    %v923 = vld [vmem:[#allocation2 + $0x1ab8] sm:$0xff]
    %v924 = vld [vmem:[#allocation2 + $0x1ac0] sm:$0xff]
    %v925 = vld [vmem:[#allocation2 + $0x1ac8] sm:$0xff]
    %v926 = vld [vmem:[#allocation2 + $0x1ad0] sm:$0xff]
    %v927 = vld [vmem:[#allocation2 + $0x1ad8] sm:$0xff]
    %v928 = vld [vmem:[#allocation2 + $0x1ae0] sm:$0xff]
    %v929 = vld [vmem:[#allocation2 + $0x1ae8] sm:$0xff]
    %v930 = vld [vmem:[#allocation2 + $0x1af0] sm:$0xff]
    %v931 = vld [vmem:[#allocation2 + $0x1af8] sm:$0xff]
    %v932 = vld [vmem:[#allocation2 + $0x1b00] sm:$0xff]
    %v933 = vld [vmem:[#allocation2 + $0x1b08] sm:$0xff]
    %v934 = vld [vmem:[#allocation2 + $0x1b10] sm:$0xff]
    %v935 = vld [vmem:[#allocation2 + $0x1b18] sm:$0xff]
    %v936 = vld [vmem:[#allocation2 + $0x1b20] sm:$0xff]
    %v937 = vld [vmem:[#allocation2 + $0x1b28] sm:$0xff]
    %v938 = vld [vmem:[#allocation2 + $0x1b30] sm:$0xff]
    %v939 = vld [vmem:[#allocation2 + $0x1b38] sm:$0xff]
    %v940 = vld [vmem:[#allocation2 + $0x1b40] sm:$0xff]
    %v941 = vld [vmem:[#allocation2 + $0x1b48] sm:$0xff]
    %v942 = vld [vmem:[#allocation2 + $0x1b50] sm:$0xff]
    %v943 = vld [vmem:[#allocation2 + $0x1b58] sm:$0xff]
    %v944 = vld [vmem:[#allocation2 + $0x1b60] sm:$0xff]
    %v945 = vld [vmem:[#allocation2 + $0x1b68] sm:$0xff]
    %v946 = vld [vmem:[#allocation2 + $0x1b70] sm:$0xff]
    %v947 = vld [vmem:[#allocation2 + $0x1b78] sm:$0xff]
    %v948 = vld [vmem:[#allocation2 + $0x1b80] sm:$0xff]
    %v949 = vld [vmem:[#allocation2 + $0x1b88] sm:$0xff]
    %v950 = vld [vmem:[#allocation2 + $0x1b90] sm:$0xff]
    %v951 = vld [vmem:[#allocation2 + $0x1b98] sm:$0xff]
    %v952 = vld [vmem:[#allocation2 + $0x1ba0] sm:$0xff]
    %v953 = vld [vmem:[#allocation2 + $0x1ba8] sm:$0xff]
    %v954 = vld [vmem:[#allocation2 + $0x1bb0] sm:$0xff]
    %v955 = vld [vmem:[#allocation2 + $0x1bb8] sm:$0xff]
    %v956 = vld [vmem:[#allocation2 + $0x1bc0] sm:$0xff]
    %v957 = vld [vmem:[#allocation2 + $0x1bc8] sm:$0xff]
    %v958 = vld [vmem:[#allocation2 + $0x1bd0] sm:$0xff]
    %v959 = vld [vmem:[#allocation2 + $0x1bd8] sm:$0xff]
    %v960 = vld [vmem:[#allocation2 + $0x1be0] sm:$0xff]
    %v961 = vld [vmem:[#allocation2 + $0x1be8] sm:$0xff]
    %v962 = vld [vmem:[#allocation2 + $0x1bf0] sm:$0xff]
    %v963 = vld [vmem:[#allocation2 + $0x1bf8] sm:$0xff]
    %v964 = vld [vmem:[#allocation2 + $0x1c00] sm:$0xff]
    %v965 = vld [vmem:[#allocation2 + $0x1c08] sm:$0xff]
    %v966 = vld [vmem:[#allocation2 + $0x1c10] sm:$0xff]
    %v967 = vld [vmem:[#allocation2 + $0x1c18] sm:$0xff]
    %v968 = vld [vmem:[#allocation2 + $0x1c20] sm:$0xff]
    %v969 = vld [vmem:[#allocation2 + $0x1c28] sm:$0xff]
    %v970 = vld [vmem:[#allocation2 + $0x1c30] sm:$0xff]
    %v971 = vld [vmem:[#allocation2 + $0x1c38] sm:$0xff]
    %v972 = vld [vmem:[#allocation2 + $0x1c40] sm:$0xff]
    %v973 = vld [vmem:[#allocation2 + $0x1c48] sm:$0xff]
    %v974 = vld [vmem:[#allocation2 + $0x1c50] sm:$0xff]
    %v975 = vld [vmem:[#allocation2 + $0x1c58] sm:$0xff]
    %v976 = vld [vmem:[#allocation2 + $0x1c60] sm:$0xff]
    %v977 = vld [vmem:[#allocation2 + $0x1c68] sm:$0xff]
    %v978 = vld [vmem:[#allocation2 + $0x1c70] sm:$0xff]
    %v979 = vld [vmem:[#allocation2 + $0x1c78] sm:$0xff]
    %v980 = vld [vmem:[#allocation2 + $0x1c80] sm:$0xff]
    %v981 = vld [vmem:[#allocation2 + $0x1c88] sm:$0xff]
    %v982 = vld [vmem:[#allocation2 + $0x1c90] sm:$0xff]
    %v983 = vld [vmem:[#allocation2 + $0x1c98] sm:$0xff]
    %v984 = vld [vmem:[#allocation2 + $0x1ca0] sm:$0xff]
    %v985 = vld [vmem:[#allocation2 + $0x1ca8] sm:$0xff]
    %v986 = vld [vmem:[#allocation2 + $0x1cb0] sm:$0xff]
    %v987 = vld [vmem:[#allocation2 + $0x1cb8] sm:$0xff]
    %v988 = vld [vmem:[#allocation2 + $0x1cc0] sm:$0xff]
    %v989 = vld [vmem:[#allocation2 + $0x1cc8] sm:$0xff]
    %v990 = vld [vmem:[#allocation2 + $0x1cd0] sm:$0xff]
    %v991 = vld [vmem:[#allocation2 + $0x1cd8] sm:$0xff]
    %v992 = vld [vmem:[#allocation2 + $0x1ce0] sm:$0xff]
    %v993 = vld [vmem:[#allocation2 + $0x1ce8] sm:$0xff]
    %v994 = vld [vmem:[#allocation2 + $0x1cf0] sm:$0xff]
    %v995 = vld [vmem:[#allocation2 + $0x1cf8] sm:$0xff]
    %v996 = vld [vmem:[#allocation2 + $0x1d00] sm:$0xff]
    %v997 = vld [vmem:[#allocation2 + $0x1d08] sm:$0xff]
    %v998 = vld [vmem:[#allocation2 + $0x1d10] sm:$0xff]
    %v999 = vld [vmem:[#allocation2 + $0x1d18] sm:$0xff]
    %v1000 = vld [vmem:[#allocation2 + $0x1d20] sm:$0xff]
    %v1001 = vld [vmem:[#allocation2 + $0x1d28] sm:$0xff]
    %v1002 = vld [vmem:[#allocation2 + $0x1d30] sm:$0xff]
    %v1003 = vld [vmem:[#allocation2 + $0x1d38] sm:$0xff]
    %v1004 = vld [vmem:[#allocation2 + $0x1d40] sm:$0xff]
    %v1005 = vld [vmem:[#allocation2 + $0x1d48] sm:$0xff]
    %v1006 = vld [vmem:[#allocation2 + $0x1d50] sm:$0xff]
    %v1007 = vld [vmem:[#allocation2 + $0x1d58] sm:$0xff]
    %v1008 = vld [vmem:[#allocation2 + $0x1d60] sm:$0xff]
    %v1009 = vld [vmem:[#allocation2 + $0x1d68] sm:$0xff]
    %v1010 = vld [vmem:[#allocation2 + $0x1d70] sm:$0xff]
    %v1011 = vld [vmem:[#allocation2 + $0x1d78] sm:$0xff]
    %v1012 = vld [vmem:[#allocation2 + $0x1d80] sm:$0xff]
    %v1013 = vld [vmem:[#allocation2 + $0x1d88] sm:$0xff]
    %v1014 = vld [vmem:[#allocation2 + $0x1d90] sm:$0xff]
    %v1015 = vld [vmem:[#allocation2 + $0x1d98] sm:$0xff]
    %v1016 = vld [vmem:[#allocation2 + $0x1da0] sm:$0xff]
    %v1017 = vld [vmem:[#allocation2 + $0x1da8] sm:$0xff]
    %v1018 = vld [vmem:[#allocation2 + $0x1db0] sm:$0xff]
    %v1019 = vld [vmem:[#allocation2 + $0x1db8] sm:$0xff]
    %v1020 = vld [vmem:[#allocation2 + $0x1dc0] sm:$0xff]
    %v1021 = vld [vmem:[#allocation2 + $0x1dc8] sm:$0xff]
    %v1022 = vld [vmem:[#allocation2 + $0x1dd0] sm:$0xff]
    %v1023 = vld [vmem:[#allocation2 + $0x1dd8] sm:$0xff]
    %v1024 = vld [vmem:[#allocation2 + $0x1de0] sm:$0xff]
    %v1025 = vld [vmem:[#allocation2 + $0x1de8] sm:$0xff]
    %v1026 = vld [vmem:[#allocation2 + $0x1df0] sm:$0xff]
    %v1027 = vld [vmem:[#allocation2 + $0x1df8] sm:$0xff]
    %v1028 = vld [vmem:[#allocation2 + $0x1e00] sm:$0xff]
    %v1029 = vld [vmem:[#allocation2 + $0x1e08] sm:$0xff]
    %v1030 = vld [vmem:[#allocation2 + $0x1e10] sm:$0xff]
    %v1031 = vld [vmem:[#allocation2 + $0x1e18] sm:$0xff]
    %v1032 = vld [vmem:[#allocation2 + $0x1e20] sm:$0xff]
    %v1033 = vld [vmem:[#allocation2 + $0x1e28] sm:$0xff]
    %v1034 = vld [vmem:[#allocation2 + $0x1e30] sm:$0xff]
    %v1035 = vld [vmem:[#allocation2 + $0x1e38] sm:$0xff]
    %v1036 = vld [vmem:[#allocation2 + $0x1e40] sm:$0xff]
    %v1037 = vld [vmem:[#allocation2 + $0x1e48] sm:$0xff]
    %v1038 = vld [vmem:[#allocation2 + $0x1e50] sm:$0xff]
    %v1039 = vld [vmem:[#allocation2 + $0x1e58] sm:$0xff]
    %v1040 = vld [vmem:[#allocation2 + $0x1e60] sm:$0xff]
    %v1041 = vld [vmem:[#allocation2 + $0x1e68] sm:$0xff]
    %v1042 = vld [vmem:[#allocation2 + $0x1e70] sm:$0xff]
    %v1043 = vld [vmem:[#allocation2 + $0x1e78] sm:$0xff]
    %v1044 = vld [vmem:[#allocation2 + $0x1e80] sm:$0xff]
    %v1045 = vld [vmem:[#allocation2 + $0x1e88] sm:$0xff]
    %v1046 = vld [vmem:[#allocation2 + $0x1e90] sm:$0xff]
    %v1047 = vld [vmem:[#allocation2 + $0x1e98] sm:$0xff]
    %v1048 = vld [vmem:[#allocation2 + $0x1ea0] sm:$0xff]
    %v1049 = vld [vmem:[#allocation2 + $0x1ea8] sm:$0xff]
    %v1050 = vld [vmem:[#allocation2 + $0x1eb0] sm:$0xff]
    %v1051 = vld [vmem:[#allocation2 + $0x1eb8] sm:$0xff]
    %v1052 = vld [vmem:[#allocation2 + $0x1ec0] sm:$0xff]
    %v1053 = vld [vmem:[#allocation2 + $0x1ec8] sm:$0xff]
    %v1054 = vld [vmem:[#allocation2 + $0x1ed0] sm:$0xff]
    %v1055 = vld [vmem:[#allocation2 + $0x1ed8] sm:$0xff]
    %v1056 = vld [vmem:[#allocation2 + $0x1ee0] sm:$0xff]
    %v1057 = vld [vmem:[#allocation2 + $0x1ee8] sm:$0xff]
    %v1058 = vld [vmem:[#allocation2 + $0x1ef0] sm:$0xff]
    %v1059 = vld [vmem:[#allocation2 + $0x1ef8] sm:$0xff]
    %v1060 = vld [vmem:[#allocation2 + $0x1f00] sm:$0xff]
    %v1061 = vld [vmem:[#allocation2 + $0x1f08] sm:$0xff]
    %v1062 = vld [vmem:[#allocation2 + $0x1f10] sm:$0xff]
    %v1063 = vld [vmem:[#allocation2 + $0x1f18] sm:$0xff]
    %v1064 = vld [vmem:[#allocation2 + $0x1f20] sm:$0xff]
    %v1065 = vld [vmem:[#allocation2 + $0x1f28] sm:$0xff]
    %v1066 = vld [vmem:[#allocation2 + $0x1f30] sm:$0xff]
    %v1067 = vld [vmem:[#allocation2 + $0x1f38] sm:$0xff]
    %v1068 = vld [vmem:[#allocation5] sm:$0xf]
    %v1070 = vperm.slane %v1068, 0
    %v1071 = vperm.slane %v1068, 1
    %v1072 = vperm.slane %v1068, 2
    %v1073 = vperm.slane %v1068, 3
    %1082 = vst [vmem:[#allocation1] ss:$4 sm:$0xff] %v64
    %s1083 = scalar_lea.vmem [#allocation1], 32
    %1084 = vst [vmem:[%s1083] ss:$4 sm:$0xff] %v65
    %v1085 = vld.sshfl [vmem:[#allocation1] sm:$0xff pattern:$0x73625140]
    %v1086 = vld.sshfl [vmem:[#allocation1 + $0x8] sm:$0xff pattern:$0x73625140]
    %v1087 = vld.sshfl [vmem:[#allocation1 + $0x10] sm:$0xff pattern:$0x73625140]
    %v1088 = vld.sshfl [vmem:[#allocation1 + $0x18] sm:$0xff pattern:$0x73625140]
    %v1089 = vld.sshfl [vmem:[#allocation1 + $0x20] sm:$0xff pattern:$0x73625140]
    %v1090 = vld.sshfl [vmem:[#allocation1 + $0x28] sm:$0xff pattern:$0x73625140]
    %v1091 = vld.sshfl [vmem:[#allocation1 + $0x30] sm:$0xff pattern:$0x73625140]
    %v1092 = vld.sshfl [vmem:[#allocation1 + $0x38] sm:$0xff pattern:$0x73625140]
    %1093 = vst [vmem:[#allocation1] ss:$4 sm:$0xff] %v66
    %1094 = vst [vmem:[%s1083] ss:$4 sm:$0xff] %v67
    %v1095 = vld.sshfl [vmem:[#allocation1] sm:$0xff pattern:$0x73625140]
    %v1096 = vld.sshfl [vmem:[#allocation1 + $0x8] sm:$0xff pattern:$0x73625140]
    %v1097 = vld.sshfl [vmem:[#allocation1 + $0x10] sm:$0xff pattern:$0x73625140]
    %v1098 = vld.sshfl [vmem:[#allocation1 + $0x18] sm:$0xff pattern:$0x73625140]
    %v1099 = vld.sshfl [vmem:[#allocation1 + $0x20] sm:$0xff pattern:$0x73625140]
    %v1100 = vld.sshfl [vmem:[#allocation1 + $0x28] sm:$0xff pattern:$0x73625140]
    %v1101 = vld.sshfl [vmem:[#allocation1 + $0x30] sm:$0xff pattern:$0x73625140]
    %v1102 = vld.sshfl [vmem:[#allocation1 + $0x38] sm:$0xff pattern:$0x73625140]
    %vm1118 = vcmask 654336
    %v1119 = vsel %vm1118, %v1102, 0
    %1121 = vmatpush.msra.mxu0 %v128
    %1122 = vmatpush.msra.mxu0 %v124
    %1123 = vmatpush.msra.mxu0 %v120
    %1124 = vmatpush.msra.mxu0 %v116
    %1125 = vmatpush.msra.mxu0 %v112
    %1126 = vmatpush.msra.mxu0 %v108
    %1127 = vmatpush.msra.mxu0 %v104
    %1128 = vmatpush.msra.mxu0 %v100
    %1129 = vmatpush.msra.mxu0 %v96
    %1130 = vmatpush.msra.mxu0 %v92
    %1131 = vmatpush.msra.mxu0 %v88
    %1132 = vmatpush.msra.mxu0 %v84
    %1133 = vmatpush.msra.mxu0 %v80
    %1134 = vmatpush.msra.mxu0 %v76
    %1135 = vmatpush.msra.mxu0 %v72
    %1136 = vmatpush.msra.mxu0 %v68
    %1137 = vmatmul.f32.gmra.mxu0 %v1085
    %v1138 = vpop.f32.mrf.mxu0
    %v1139 = vadd.f32 %v1070, %v1138
    %1140 = vdwg.mxu0
    %1141 = vmatpush.msra.mxu0 %v192
    %1142 = vmatpush.msra.mxu0 %v188
    %1143 = vmatpush.msra.mxu0 %v184
    %1144 = vmatpush.msra.mxu0 %v180
    %1145 = vmatpush.msra.mxu0 %v176
    %1146 = vmatpush.msra.mxu0 %v172
    %1147 = vmatpush.msra.mxu0 %v168
    %1148 = vmatpush.msra.mxu0 %v164
    %1149 = vmatpush.msra.mxu0 %v160
    %1150 = vmatpush.msra.mxu0 %v156
    %1151 = vmatpush.msra.mxu0 %v152
    %1152 = vmatpush.msra.mxu0 %v148
    %1153 = vmatpush.msra.mxu0 %v144
    %1154 = vmatpush.msra.mxu0 %v140
    %1155 = vmatpush.msra.mxu0 %v136
    %1156 = vmatpush.msra.mxu0 %v132
    %1157 = vmatmul.f32.gmra.mxu0 %v1086
    %v1158 = vpop.f32.mrf.mxu0
    %v1159 = vadd.f32 %v1139, %v1158
    %1160 = vdwg.mxu0
    %1161 = vmatpush.msra.mxu0 %v256
    %1162 = vmatpush.msra.mxu0 %v252
    %1163 = vmatpush.msra.mxu0 %v248
    %1164 = vmatpush.msra.mxu0 %v244
    %1165 = vmatpush.msra.mxu0 %v240
    %1166 = vmatpush.msra.mxu0 %v236
    %1167 = vmatpush.msra.mxu0 %v232
    %1168 = vmatpush.msra.mxu0 %v228
    %1169 = vmatpush.msra.mxu0 %v224
    %1170 = vmatpush.msra.mxu0 %v220
    %1171 = vmatpush.msra.mxu0 %v216
    %1172 = vmatpush.msra.mxu0 %v212
    %1173 = vmatpush.msra.mxu0 %v208
    %1174 = vmatpush.msra.mxu0 %v204
    %1175 = vmatpush.msra.mxu0 %v200
    %1176 = vmatpush.msra.mxu0 %v196
    %1177 = vmatmul.f32.gmra.mxu0 %v1087
    %v1178 = vpop.f32.mrf.mxu0
    %v1179 = vadd.f32 %v1159, %v1178
    %1180 = vdwg.mxu0
    %1181 = vmatpush.msra.mxu0 %v320
    %1182 = vmatpush.msra.mxu0 %v316
    %1183 = vmatpush.msra.mxu0 %v312
    %1184 = vmatpush.msra.mxu0 %v308
    %1185 = vmatpush.msra.mxu0 %v304
    %1186 = vmatpush.msra.mxu0 %v300
    %1187 = vmatpush.msra.mxu0 %v296
    %1188 = vmatpush.msra.mxu0 %v292
    %1189 = vmatpush.msra.mxu0 %v288
    %1190 = vmatpush.msra.mxu0 %v284
    %1191 = vmatpush.msra.mxu0 %v280
    %1192 = vmatpush.msra.mxu0 %v276
    %1193 = vmatpush.msra.mxu0 %v272
    %1194 = vmatpush.msra.mxu0 %v268
    %1195 = vmatpush.msra.mxu0 %v264
    %1196 = vmatpush.msra.mxu0 %v260
    %1197 = vmatmul.f32.gmra.mxu0 %v1088
    %v1198 = vpop.f32.mrf.mxu0
    %v1199 = vadd.f32 %v1179, %v1198
    %1200 = vdwg.mxu0
    %1201 = vmatpush.msra.mxu0 %v384
    %1202 = vmatpush.msra.mxu0 %v380
    %1203 = vmatpush.msra.mxu0 %v376
    %1204 = vmatpush.msra.mxu0 %v372
    %1205 = vmatpush.msra.mxu0 %v368
    %1206 = vmatpush.msra.mxu0 %v364
    %1207 = vmatpush.msra.mxu0 %v360
    %1208 = vmatpush.msra.mxu0 %v356
    %1209 = vmatpush.msra.mxu0 %v352
    %1210 = vmatpush.msra.mxu0 %v348
    %1211 = vmatpush.msra.mxu0 %v344
    %1212 = vmatpush.msra.mxu0 %v340
    %1213 = vmatpush.msra.mxu0 %v336
    %1214 = vmatpush.msra.mxu0 %v332
    %1215 = vmatpush.msra.mxu0 %v328
    %1216 = vmatpush.msra.mxu0 %v324
    %1217 = vmatmul.f32.gmra.mxu0 %v1089
    %v1218 = vpop.f32.mrf.mxu0
    %v1219 = vadd.f32 %v1199, %v1218
    %1220 = vdwg.mxu0
    %1221 = vmatpush.msra.mxu0 %v448
    %1222 = vmatpush.msra.mxu0 %v444
    %1223 = vmatpush.msra.mxu0 %v440
    %1224 = vmatpush.msra.mxu0 %v436
    %1225 = vmatpush.msra.mxu0 %v432
    %1226 = vmatpush.msra.mxu0 %v428
    %1227 = vmatpush.msra.mxu0 %v424
    %1228 = vmatpush.msra.mxu0 %v420
    %1229 = vmatpush.msra.mxu0 %v416
    %1230 = vmatpush.msra.mxu0 %v412
    %1231 = vmatpush.msra.mxu0 %v408
    %1232 = vmatpush.msra.mxu0 %v404
    %1233 = vmatpush.msra.mxu0 %v400
    %1234 = vmatpush.msra.mxu0 %v396
    %1235 = vmatpush.msra.mxu0 %v392
    %1236 = vmatpush.msra.mxu0 %v388
    %1237 = vmatmul.f32.gmra.mxu0 %v1090
    %v1238 = vpop.f32.mrf.mxu0
    %v1239 = vadd.f32 %v1219, %v1238
    %1240 = vdwg.mxu0
    %1241 = vmatpush.msra.mxu0 %v512
    %1242 = vmatpush.msra.mxu0 %v508
    %1243 = vmatpush.msra.mxu0 %v504
    %1244 = vmatpush.msra.mxu0 %v500
    %1245 = vmatpush.msra.mxu0 %v496
    %1246 = vmatpush.msra.mxu0 %v492
    %1247 = vmatpush.msra.mxu0 %v488
    %1248 = vmatpush.msra.mxu0 %v484
    %1249 = vmatpush.msra.mxu0 %v480
    %1250 = vmatpush.msra.mxu0 %v476
    %1251 = vmatpush.msra.mxu0 %v472
    %1252 = vmatpush.msra.mxu0 %v468
    %1253 = vmatpush.msra.mxu0 %v464
    %1254 = vmatpush.msra.mxu0 %v460
    %1255 = vmatpush.msra.mxu0 %v456
    %1256 = vmatpush.msra.mxu0 %v452
    %1257 = vmatmul.f32.gmra.mxu0 %v1091
    %v1258 = vpop.f32.mrf.mxu0
    %v1259 = vadd.f32 %v1239, %v1258
    %1260 = vdwg.mxu0
    %1261 = vmatpush.msra.mxu0 %v576
    %1262 = vmatpush.msra.mxu0 %v572
    %1263 = vmatpush.msra.mxu0 %v568
    %1264 = vmatpush.msra.mxu0 %v564
    %1265 = vmatpush.msra.mxu0 %v560
    %1266 = vmatpush.msra.mxu0 %v556
    %1267 = vmatpush.msra.mxu0 %v552
    %1268 = vmatpush.msra.mxu0 %v548
    %1269 = vmatpush.msra.mxu0 %v544
    %1270 = vmatpush.msra.mxu0 %v540
    %1271 = vmatpush.msra.mxu0 %v536
    %1272 = vmatpush.msra.mxu0 %v532
    %1273 = vmatpush.msra.mxu0 %v528
    %1274 = vmatpush.msra.mxu0 %v524
    %1275 = vmatpush.msra.mxu0 %v520
    %1276 = vmatpush.msra.mxu0 %v516
    %1277 = vmatmul.f32.gmra.mxu0 %v1092
    %v1278 = vpop.f32.mrf.mxu0
    %v1279 = vadd.f32 %v1259, %v1278
    %1280 = vdwg.mxu0
    %1281 = vmatpush.msra.mxu0 %v640
    %1282 = vmatpush.msra.mxu0 %v636
    %1283 = vmatpush.msra.mxu0 %v632
    %1284 = vmatpush.msra.mxu0 %v628
    %1285 = vmatpush.msra.mxu0 %v624
    %1286 = vmatpush.msra.mxu0 %v620
    %1287 = vmatpush.msra.mxu0 %v616
    %1288 = vmatpush.msra.mxu0 %v612
    %1289 = vmatpush.msra.mxu0 %v608
    %1290 = vmatpush.msra.mxu0 %v604
    %1291 = vmatpush.msra.mxu0 %v600
    %1292 = vmatpush.msra.mxu0 %v596
    %1293 = vmatpush.msra.mxu0 %v592
    %1294 = vmatpush.msra.mxu0 %v588
    %1295 = vmatpush.msra.mxu0 %v584
    %1296 = vmatpush.msra.mxu0 %v580
    %1297 = vmatmul.f32.gmra.mxu0 %v1095
    %v1298 = vpop.f32.mrf.mxu0
    %v1299 = vadd.f32 %v1279, %v1298
    %1300 = vdwg.mxu0
    %1301 = vmatpush.msra.mxu0 %v704
    %1302 = vmatpush.msra.mxu0 %v700
    %1303 = vmatpush.msra.mxu0 %v696
    %1304 = vmatpush.msra.mxu0 %v692
    %1305 = vmatpush.msra.mxu0 %v688
    %1306 = vmatpush.msra.mxu0 %v684
    %1307 = vmatpush.msra.mxu0 %v680
    %1308 = vmatpush.msra.mxu0 %v676
    %1309 = vmatpush.msra.mxu0 %v672
    %1310 = vmatpush.msra.mxu0 %v668
    %1311 = vmatpush.msra.mxu0 %v664
    %1312 = vmatpush.msra.mxu0 %v660
    %1313 = vmatpush.msra.mxu0 %v656
    %1314 = vmatpush.msra.mxu0 %v652
    %1315 = vmatpush.msra.mxu0 %v648
    %1316 = vmatpush.msra.mxu0 %v644
    %1317 = vmatmul.f32.gmra.mxu0 %v1096
    %v1318 = vpop.f32.mrf.mxu0
    %v1319 = vadd.f32 %v1299, %v1318
    %1320 = vdwg.mxu0
    %1321 = vmatpush.msra.mxu0 %v768
    %1322 = vmatpush.msra.mxu0 %v764
    %1323 = vmatpush.msra.mxu0 %v760
    %1324 = vmatpush.msra.mxu0 %v756
    %1325 = vmatpush.msra.mxu0 %v752
    %1326 = vmatpush.msra.mxu0 %v748
    %1327 = vmatpush.msra.mxu0 %v744
    %1328 = vmatpush.msra.mxu0 %v740
    %1329 = vmatpush.msra.mxu0 %v736
    %1330 = vmatpush.msra.mxu0 %v732
    %1331 = vmatpush.msra.mxu0 %v728
    %1332 = vmatpush.msra.mxu0 %v724
    %1333 = vmatpush.msra.mxu0 %v720
    %1334 = vmatpush.msra.mxu0 %v716
    %1335 = vmatpush.msra.mxu0 %v712
    %1336 = vmatpush.msra.mxu0 %v708
    %1337 = vmatmul.f32.gmra.mxu0 %v1097
    %v1338 = vpop.f32.mrf.mxu0
    %v1339 = vadd.f32 %v1319, %v1338
    %1340 = vdwg.mxu0
    %1341 = vmatpush.msra.mxu0 %v832
    %1342 = vmatpush.msra.mxu0 %v828
    %1343 = vmatpush.msra.mxu0 %v824
    %1344 = vmatpush.msra.mxu0 %v820
    %1345 = vmatpush.msra.mxu0 %v816
    %1346 = vmatpush.msra.mxu0 %v812
    %1347 = vmatpush.msra.mxu0 %v808
    %1348 = vmatpush.msra.mxu0 %v804
    %1349 = vmatpush.msra.mxu0 %v800
    %1350 = vmatpush.msra.mxu0 %v796
    %1351 = vmatpush.msra.mxu0 %v792
    %1352 = vmatpush.msra.mxu0 %v788
    %1353 = vmatpush.msra.mxu0 %v784
    %1354 = vmatpush.msra.mxu0 %v780
    %1355 = vmatpush.msra.mxu0 %v776
    %1356 = vmatpush.msra.mxu0 %v772
    %1357 = vmatmul.f32.gmra.mxu0 %v1098
    %v1358 = vpop.f32.mrf.mxu0
    %v1359 = vadd.f32 %v1339, %v1358
    %1360 = vdwg.mxu0
    %1361 = vmatpush.msra.mxu0 %v896
    %1362 = vmatpush.msra.mxu0 %v892
    %1363 = vmatpush.msra.mxu0 %v888
    %1364 = vmatpush.msra.mxu0 %v884
    %1365 = vmatpush.msra.mxu0 %v880
    %1366 = vmatpush.msra.mxu0 %v876
    %1367 = vmatpush.msra.mxu0 %v872
    %1368 = vmatpush.msra.mxu0 %v868
    %1369 = vmatpush.msra.mxu0 %v864
    %1370 = vmatpush.msra.mxu0 %v860
    %1371 = vmatpush.msra.mxu0 %v856
    %1372 = vmatpush.msra.mxu0 %v852
    %1373 = vmatpush.msra.mxu0 %v848
    %1374 = vmatpush.msra.mxu0 %v844
    %1375 = vmatpush.msra.mxu0 %v840
    %1376 = vmatpush.msra.mxu0 %v836
    %1377 = vmatmul.f32.gmra.mxu0 %v1099
    %v1378 = vpop.f32.mrf.mxu0
    %v1379 = vadd.f32 %v1359, %v1378
    %1380 = vdwg.mxu0
    %1381 = vmatpush.msra.mxu0 %v960
    %1382 = vmatpush.msra.mxu0 %v956
    %1383 = vmatpush.msra.mxu0 %v952
    %1384 = vmatpush.msra.mxu0 %v948
    %1385 = vmatpush.msra.mxu0 %v944
    %1386 = vmatpush.msra.mxu0 %v940
    %1387 = vmatpush.msra.mxu0 %v936
    %1388 = vmatpush.msra.mxu0 %v932
    %1389 = vmatpush.msra.mxu0 %v928
    %1390 = vmatpush.msra.mxu0 %v924
    %1391 = vmatpush.msra.mxu0 %v920
    %1392 = vmatpush.msra.mxu0 %v916
    %1393 = vmatpush.msra.mxu0 %v912
    %1394 = vmatpush.msra.mxu0 %v908
    %1395 = vmatpush.msra.mxu0 %v904
    %1396 = vmatpush.msra.mxu0 %v900
    %1397 = vmatmul.f32.gmra.mxu0 %v1100
    %v1398 = vpop.f32.mrf.mxu0
    %v1399 = vadd.f32 %v1379, %v1398
    %1400 = vdwg.mxu0
    %1401 = vmatpush.msra.mxu0 %v1024
    %1402 = vmatpush.msra.mxu0 %v1020
    %1403 = vmatpush.msra.mxu0 %v1016
    %1404 = vmatpush.msra.mxu0 %v1012
    %1405 = vmatpush.msra.mxu0 %v1008
    %1406 = vmatpush.msra.mxu0 %v1004
    %1407 = vmatpush.msra.mxu0 %v1000
    %1408 = vmatpush.msra.mxu0 %v996
    %1409 = vmatpush.msra.mxu0 %v992
    %1410 = vmatpush.msra.mxu0 %v988
    %1411 = vmatpush.msra.mxu0 %v984
    %1412 = vmatpush.msra.mxu0 %v980
    %1413 = vmatpush.msra.mxu0 %v976
    %1414 = vmatpush.msra.mxu0 %v972
    %1415 = vmatpush.msra.mxu0 %v968
    %1416 = vmatpush.msra.mxu0 %v964
    %1417 = vmatmul.f32.gmra.mxu0 %v1101
    %v1418 = vpop.f32.mrf.mxu0
    %v1419 = vadd.f32 %v1399, %v1418
    %1420 = vdwg.mxu0
    %1421 = vmatpush.msra.mxu0 0.0
    %1422 = vmatpush.msra.mxu0 0.0
    %1423 = vmatpush.msra.mxu0 0.0
    %1424 = vmatpush.msra.mxu0 0.0
    %1425 = vmatpush.msra.mxu0 0.0
    %1426 = vmatpush.msra.mxu0 0.0
    %1427 = vmatpush.msra.mxu0 %v1064
    %1428 = vmatpush.msra.mxu0 %v1060
    %1429 = vmatpush.msra.mxu0 %v1056
    %1430 = vmatpush.msra.mxu0 %v1052
    %1431 = vmatpush.msra.mxu0 %v1048
    %1432 = vmatpush.msra.mxu0 %v1044
    %1433 = vmatpush.msra.mxu0 %v1040
    %1434 = vmatpush.msra.mxu0 %v1036
    %1435 = vmatpush.msra.mxu0 %v1032
    %1436 = vmatpush.msra.mxu0 %v1028
    %1437 = vmatmul.f32.gmra.mxu0 %v1119
    %v1438 = vpop.f32.mrf.mxu0
    %v1439 = vadd.f32 %v1419, %v1438
    %1440 = vdwg.mxu0
    %1441 = vmatpush.msra.mxu0 %v129
    %1442 = vmatpush.msra.mxu0 %v125
    %1443 = vmatpush.msra.mxu0 %v121
    %1444 = vmatpush.msra.mxu0 %v117
    %1445 = vmatpush.msra.mxu0 %v113
    %1446 = vmatpush.msra.mxu0 %v109
    %1447 = vmatpush.msra.mxu0 %v105
    %1448 = vmatpush.msra.mxu0 %v101
    %1449 = vmatpush.msra.mxu0 %v97
    %1450 = vmatpush.msra.mxu0 %v93
    %1451 = vmatpush.msra.mxu0 %v89
    %1452 = vmatpush.msra.mxu0 %v85
    %1453 = vmatpush.msra.mxu0 %v81
    %1454 = vmatpush.msra.mxu0 %v77
    %1455 = vmatpush.msra.mxu0 %v73
    %1456 = vmatpush.msra.mxu0 %v69
    %1457 = vmatmul.f32.gmra.mxu0 %v1085
    %v1458 = vpop.f32.mrf.mxu0
    %v1459 = vadd.f32 %v1071, %v1458
    %1460 = vdwg.mxu0
    %1461 = vmatpush.msra.mxu0 %v193
    %1462 = vmatpush.msra.mxu0 %v189
    %1463 = vmatpush.msra.mxu0 %v185
    %1464 = vmatpush.msra.mxu0 %v181
    %1465 = vmatpush.msra.mxu0 %v177
    %1466 = vmatpush.msra.mxu0 %v173
    %1467 = vmatpush.msra.mxu0 %v169
    %1468 = vmatpush.msra.mxu0 %v165
    %1469 = vmatpush.msra.mxu0 %v161
    %1470 = vmatpush.msra.mxu0 %v157
    %1471 = vmatpush.msra.mxu0 %v153
    %1472 = vmatpush.msra.mxu0 %v149
    %1473 = vmatpush.msra.mxu0 %v145
    %1474 = vmatpush.msra.mxu0 %v141
    %1475 = vmatpush.msra.mxu0 %v137
    %1476 = vmatpush.msra.mxu0 %v133
    %1477 = vmatmul.f32.gmra.mxu0 %v1086
    %v1478 = vpop.f32.mrf.mxu0
    %v1479 = vadd.f32 %v1459, %v1478
    %1480 = vdwg.mxu0
    %1481 = vmatpush.msra.mxu0 %v257
    %1482 = vmatpush.msra.mxu0 %v253
    %1483 = vmatpush.msra.mxu0 %v249
    %1484 = vmatpush.msra.mxu0 %v245
    %1485 = vmatpush.msra.mxu0 %v241
    %1486 = vmatpush.msra.mxu0 %v237
    %1487 = vmatpush.msra.mxu0 %v233
    %1488 = vmatpush.msra.mxu0 %v229
    %1489 = vmatpush.msra.mxu0 %v225
    %1490 = vmatpush.msra.mxu0 %v221
    %1491 = vmatpush.msra.mxu0 %v217
    %1492 = vmatpush.msra.mxu0 %v213
    %1493 = vmatpush.msra.mxu0 %v209
    %1494 = vmatpush.msra.mxu0 %v205
    %1495 = vmatpush.msra.mxu0 %v201
    %1496 = vmatpush.msra.mxu0 %v197
    %1497 = vmatmul.f32.gmra.mxu0 %v1087
    %v1498 = vpop.f32.mrf.mxu0
    %v1499 = vadd.f32 %v1479, %v1498
    %1500 = vdwg.mxu0
    %1501 = vmatpush.msra.mxu0 %v321
    %1502 = vmatpush.msra.mxu0 %v317
    %1503 = vmatpush.msra.mxu0 %v313
    %1504 = vmatpush.msra.mxu0 %v309
    %1505 = vmatpush.msra.mxu0 %v305
    %1506 = vmatpush.msra.mxu0 %v301
    %1507 = vmatpush.msra.mxu0 %v297
    %1508 = vmatpush.msra.mxu0 %v293
    %1509 = vmatpush.msra.mxu0 %v289
    %1510 = vmatpush.msra.mxu0 %v285
    %1511 = vmatpush.msra.mxu0 %v281
    %1512 = vmatpush.msra.mxu0 %v277
    %1513 = vmatpush.msra.mxu0 %v273
    %1514 = vmatpush.msra.mxu0 %v269
    %1515 = vmatpush.msra.mxu0 %v265
    %1516 = vmatpush.msra.mxu0 %v261
    %1517 = vmatmul.f32.gmra.mxu0 %v1088
    %v1518 = vpop.f32.mrf.mxu0
    %v1519 = vadd.f32 %v1499, %v1518
    %1520 = vdwg.mxu0
    %1521 = vmatpush.msra.mxu0 %v385
    %1522 = vmatpush.msra.mxu0 %v381
    %1523 = vmatpush.msra.mxu0 %v377
    %1524 = vmatpush.msra.mxu0 %v373
    %1525 = vmatpush.msra.mxu0 %v369
    %1526 = vmatpush.msra.mxu0 %v365
    %1527 = vmatpush.msra.mxu0 %v361
    %1528 = vmatpush.msra.mxu0 %v357
    %1529 = vmatpush.msra.mxu0 %v353
    %1530 = vmatpush.msra.mxu0 %v349
    %1531 = vmatpush.msra.mxu0 %v345
    %1532 = vmatpush.msra.mxu0 %v341
    %1533 = vmatpush.msra.mxu0 %v337
    %1534 = vmatpush.msra.mxu0 %v333
    %1535 = vmatpush.msra.mxu0 %v329
    %1536 = vmatpush.msra.mxu0 %v325
    %1537 = vmatmul.f32.gmra.mxu0 %v1089
    %v1538 = vpop.f32.mrf.mxu0
    %v1539 = vadd.f32 %v1519, %v1538
    %1540 = vdwg.mxu0
    %1541 = vmatpush.msra.mxu0 %v449
    %1542 = vmatpush.msra.mxu0 %v445
    %1543 = vmatpush.msra.mxu0 %v441
    %1544 = vmatpush.msra.mxu0 %v437
    %1545 = vmatpush.msra.mxu0 %v433
    %1546 = vmatpush.msra.mxu0 %v429
    %1547 = vmatpush.msra.mxu0 %v425
    %1548 = vmatpush.msra.mxu0 %v421
    %1549 = vmatpush.msra.mxu0 %v417
    %1550 = vmatpush.msra.mxu0 %v413
    %1551 = vmatpush.msra.mxu0 %v409
    %1552 = vmatpush.msra.mxu0 %v405
    %1553 = vmatpush.msra.mxu0 %v401
    %1554 = vmatpush.msra.mxu0 %v397
    %1555 = vmatpush.msra.mxu0 %v393
    %1556 = vmatpush.msra.mxu0 %v389
    %1557 = vmatmul.f32.gmra.mxu0 %v1090
    %v1558 = vpop.f32.mrf.mxu0
    %v1559 = vadd.f32 %v1539, %v1558
    %1560 = vdwg.mxu0
    %1561 = vmatpush.msra.mxu0 %v513
    %1562 = vmatpush.msra.mxu0 %v509
    %1563 = vmatpush.msra.mxu0 %v505
    %1564 = vmatpush.msra.mxu0 %v501
    %1565 = vmatpush.msra.mxu0 %v497
    %1566 = vmatpush.msra.mxu0 %v493
    %1567 = vmatpush.msra.mxu0 %v489
    %1568 = vmatpush.msra.mxu0 %v485
    %1569 = vmatpush.msra.mxu0 %v481
    %1570 = vmatpush.msra.mxu0 %v477
    %1571 = vmatpush.msra.mxu0 %v473
    %1572 = vmatpush.msra.mxu0 %v469
    %1573 = vmatpush.msra.mxu0 %v465
    %1574 = vmatpush.msra.mxu0 %v461
    %1575 = vmatpush.msra.mxu0 %v457
    %1576 = vmatpush.msra.mxu0 %v453
    %1577 = vmatmul.f32.gmra.mxu0 %v1091
    %v1578 = vpop.f32.mrf.mxu0
    %v1579 = vadd.f32 %v1559, %v1578
    %1580 = vdwg.mxu0
    %1581 = vmatpush.msra.mxu0 %v577
    %1582 = vmatpush.msra.mxu0 %v573
    %1583 = vmatpush.msra.mxu0 %v569
    %1584 = vmatpush.msra.mxu0 %v565
    %1585 = vmatpush.msra.mxu0 %v561
    %1586 = vmatpush.msra.mxu0 %v557
    %1587 = vmatpush.msra.mxu0 %v553
    %1588 = vmatpush.msra.mxu0 %v549
    %1589 = vmatpush.msra.mxu0 %v545
    %1590 = vmatpush.msra.mxu0 %v541
    %1591 = vmatpush.msra.mxu0 %v537
    %1592 = vmatpush.msra.mxu0 %v533
    %1593 = vmatpush.msra.mxu0 %v529
    %1594 = vmatpush.msra.mxu0 %v525
    %1595 = vmatpush.msra.mxu0 %v521
    %1596 = vmatpush.msra.mxu0 %v517
    %1597 = vmatmul.f32.gmra.mxu0 %v1092
    %v1598 = vpop.f32.mrf.mxu0
    %v1599 = vadd.f32 %v1579, %v1598
    %1600 = vdwg.mxu0
    %1601 = vmatpush.msra.mxu0 %v641
    %1602 = vmatpush.msra.mxu0 %v637
    %1603 = vmatpush.msra.mxu0 %v633
    %1604 = vmatpush.msra.mxu0 %v629
    %1605 = vmatpush.msra.mxu0 %v625
    %1606 = vmatpush.msra.mxu0 %v621
    %1607 = vmatpush.msra.mxu0 %v617
    %1608 = vmatpush.msra.mxu0 %v613
    %1609 = vmatpush.msra.mxu0 %v609
    %1610 = vmatpush.msra.mxu0 %v605
    %1611 = vmatpush.msra.mxu0 %v601
    %1612 = vmatpush.msra.mxu0 %v597
    %1613 = vmatpush.msra.mxu0 %v593
    %1614 = vmatpush.msra.mxu0 %v589
    %1615 = vmatpush.msra.mxu0 %v585
    %1616 = vmatpush.msra.mxu0 %v581
    %1617 = vmatmul.f32.gmra.mxu0 %v1095
    %v1618 = vpop.f32.mrf.mxu0
    %v1619 = vadd.f32 %v1599, %v1618
    %1620 = vdwg.mxu0
    %1621 = vmatpush.msra.mxu0 %v705
    %1622 = vmatpush.msra.mxu0 %v701
    %1623 = vmatpush.msra.mxu0 %v697
    %1624 = vmatpush.msra.mxu0 %v693
    %1625 = vmatpush.msra.mxu0 %v689
    %1626 = vmatpush.msra.mxu0 %v685
    %1627 = vmatpush.msra.mxu0 %v681
    %1628 = vmatpush.msra.mxu0 %v677
    %1629 = vmatpush.msra.mxu0 %v673
    %1630 = vmatpush.msra.mxu0 %v669
    %1631 = vmatpush.msra.mxu0 %v665
    %1632 = vmatpush.msra.mxu0 %v661
    %1633 = vmatpush.msra.mxu0 %v657
    %1634 = vmatpush.msra.mxu0 %v653
    %1635 = vmatpush.msra.mxu0 %v649
    %1636 = vmatpush.msra.mxu0 %v645
    %1637 = vmatmul.f32.gmra.mxu0 %v1096
    %v1638 = vpop.f32.mrf.mxu0
    %v1639 = vadd.f32 %v1619, %v1638
    %1640 = vdwg.mxu0
    %1641 = vmatpush.msra.mxu0 %v769
    %1642 = vmatpush.msra.mxu0 %v765
    %1643 = vmatpush.msra.mxu0 %v761
    %1644 = vmatpush.msra.mxu0 %v757
    %1645 = vmatpush.msra.mxu0 %v753
    %1646 = vmatpush.msra.mxu0 %v749
    %1647 = vmatpush.msra.mxu0 %v745
    %1648 = vmatpush.msra.mxu0 %v741
    %1649 = vmatpush.msra.mxu0 %v737
    %1650 = vmatpush.msra.mxu0 %v733
    %1651 = vmatpush.msra.mxu0 %v729
    %1652 = vmatpush.msra.mxu0 %v725
    %1653 = vmatpush.msra.mxu0 %v721
    %1654 = vmatpush.msra.mxu0 %v717
    %1655 = vmatpush.msra.mxu0 %v713
    %1656 = vmatpush.msra.mxu0 %v709
    %1657 = vmatmul.f32.gmra.mxu0 %v1097
    %v1658 = vpop.f32.mrf.mxu0
    %v1659 = vadd.f32 %v1639, %v1658
    %1660 = vdwg.mxu0
    %1661 = vmatpush.msra.mxu0 %v833
    %1662 = vmatpush.msra.mxu0 %v829
    %1663 = vmatpush.msra.mxu0 %v825
    %1664 = vmatpush.msra.mxu0 %v821
    %1665 = vmatpush.msra.mxu0 %v817
    %1666 = vmatpush.msra.mxu0 %v813
    %1667 = vmatpush.msra.mxu0 %v809
    %1668 = vmatpush.msra.mxu0 %v805
    %1669 = vmatpush.msra.mxu0 %v801
    %1670 = vmatpush.msra.mxu0 %v797
    %1671 = vmatpush.msra.mxu0 %v793
    %1672 = vmatpush.msra.mxu0 %v789
    %1673 = vmatpush.msra.mxu0 %v785
    %1674 = vmatpush.msra.mxu0 %v781
    %1675 = vmatpush.msra.mxu0 %v777
    %1676 = vmatpush.msra.mxu0 %v773
    %1677 = vmatmul.f32.gmra.mxu0 %v1098
    %v1678 = vpop.f32.mrf.mxu0
    %v1679 = vadd.f32 %v1659, %v1678
    %1680 = vdwg.mxu0
    %1681 = vmatpush.msra.mxu0 %v897
    %1682 = vmatpush.msra.mxu0 %v893
    %1683 = vmatpush.msra.mxu0 %v889
    %1684 = vmatpush.msra.mxu0 %v885
    %1685 = vmatpush.msra.mxu0 %v881
    %1686 = vmatpush.msra.mxu0 %v877
    %1687 = vmatpush.msra.mxu0 %v873
    %1688 = vmatpush.msra.mxu0 %v869
    %1689 = vmatpush.msra.mxu0 %v865
    %1690 = vmatpush.msra.mxu0 %v861
    %1691 = vmatpush.msra.mxu0 %v857
    %1692 = vmatpush.msra.mxu0 %v853
    %1693 = vmatpush.msra.mxu0 %v849
    %1694 = vmatpush.msra.mxu0 %v845
    %1695 = vmatpush.msra.mxu0 %v841
    %1696 = vmatpush.msra.mxu0 %v837
    %1697 = vmatmul.f32.gmra.mxu0 %v1099
    %v1698 = vpop.f32.mrf.mxu0
    %v1699 = vadd.f32 %v1679, %v1698
    %1700 = vdwg.mxu0
    %1701 = vmatpush.msra.mxu0 %v961
    %1702 = vmatpush.msra.mxu0 %v957
    %1703 = vmatpush.msra.mxu0 %v953
    %1704 = vmatpush.msra.mxu0 %v949
    %1705 = vmatpush.msra.mxu0 %v945
    %1706 = vmatpush.msra.mxu0 %v941
    %1707 = vmatpush.msra.mxu0 %v937
    %1708 = vmatpush.msra.mxu0 %v933
    %1709 = vmatpush.msra.mxu0 %v929
    %1710 = vmatpush.msra.mxu0 %v925
    %1711 = vmatpush.msra.mxu0 %v921
    %1712 = vmatpush.msra.mxu0 %v917
    %1713 = vmatpush.msra.mxu0 %v913
    %1714 = vmatpush.msra.mxu0 %v909
    %1715 = vmatpush.msra.mxu0 %v905
    %1716 = vmatpush.msra.mxu0 %v901
    %1717 = vmatmul.f32.gmra.mxu0 %v1100
    %v1718 = vpop.f32.mrf.mxu0
    %v1719 = vadd.f32 %v1699, %v1718
    %1720 = vdwg.mxu0
    %1721 = vmatpush.msra.mxu0 %v1025
    %1722 = vmatpush.msra.mxu0 %v1021
    %1723 = vmatpush.msra.mxu0 %v1017
    %1724 = vmatpush.msra.mxu0 %v1013
    %1725 = vmatpush.msra.mxu0 %v1009
    %1726 = vmatpush.msra.mxu0 %v1005
    %1727 = vmatpush.msra.mxu0 %v1001
    %1728 = vmatpush.msra.mxu0 %v997
    %1729 = vmatpush.msra.mxu0 %v993
    %1730 = vmatpush.msra.mxu0 %v989
    %1731 = vmatpush.msra.mxu0 %v985
    %1732 = vmatpush.msra.mxu0 %v981
    %1733 = vmatpush.msra.mxu0 %v977
    %1734 = vmatpush.msra.mxu0 %v973
    %1735 = vmatpush.msra.mxu0 %v969
    %1736 = vmatpush.msra.mxu0 %v965
    %1737 = vmatmul.f32.gmra.mxu0 %v1101
    %v1738 = vpop.f32.mrf.mxu0
    %v1739 = vadd.f32 %v1719, %v1738
    %1740 = vdwg.mxu0
    %1741 = vmatpush.msra.mxu0 0.0
    %1742 = vmatpush.msra.mxu0 0.0
    %1743 = vmatpush.msra.mxu0 0.0
    %1744 = vmatpush.msra.mxu0 0.0
    %1745 = vmatpush.msra.mxu0 0.0
    %1746 = vmatpush.msra.mxu0 0.0
    %1747 = vmatpush.msra.mxu0 %v1065
    %1748 = vmatpush.msra.mxu0 %v1061
    %1749 = vmatpush.msra.mxu0 %v1057
    %1750 = vmatpush.msra.mxu0 %v1053
    %1751 = vmatpush.msra.mxu0 %v1049
    %1752 = vmatpush.msra.mxu0 %v1045
    %1753 = vmatpush.msra.mxu0 %v1041
    %1754 = vmatpush.msra.mxu0 %v1037
    %1755 = vmatpush.msra.mxu0 %v1033
    %1756 = vmatpush.msra.mxu0 %v1029
    %1757 = vmatmul.f32.gmra.mxu0 %v1119
    %v1758 = vpop.f32.mrf.mxu0
    %v1759 = vadd.f32 %v1739, %v1758
    %1760 = vdwg.mxu0
    %1761 = vmatpush.msra.mxu0 %v130
    %1762 = vmatpush.msra.mxu0 %v126
    %1763 = vmatpush.msra.mxu0 %v122
    %1764 = vmatpush.msra.mxu0 %v118
    %1765 = vmatpush.msra.mxu0 %v114
    %1766 = vmatpush.msra.mxu0 %v110
    %1767 = vmatpush.msra.mxu0 %v106
    %1768 = vmatpush.msra.mxu0 %v102
    %1769 = vmatpush.msra.mxu0 %v98
    %1770 = vmatpush.msra.mxu0 %v94
    %1771 = vmatpush.msra.mxu0 %v90
    %1772 = vmatpush.msra.mxu0 %v86
    %1773 = vmatpush.msra.mxu0 %v82
    %1774 = vmatpush.msra.mxu0 %v78
    %1775 = vmatpush.msra.mxu0 %v74
    %1776 = vmatpush.msra.mxu0 %v70
    %1777 = vmatmul.f32.gmra.mxu0 %v1085
    %v1778 = vpop.f32.mrf.mxu0
    %v1779 = vadd.f32 %v1072, %v1778
    %1780 = vdwg.mxu0
    %1781 = vmatpush.msra.mxu0 %v194
    %1782 = vmatpush.msra.mxu0 %v190
    %1783 = vmatpush.msra.mxu0 %v186
    %1784 = vmatpush.msra.mxu0 %v182
    %1785 = vmatpush.msra.mxu0 %v178
    %1786 = vmatpush.msra.mxu0 %v174
    %1787 = vmatpush.msra.mxu0 %v170
    %1788 = vmatpush.msra.mxu0 %v166
    %1789 = vmatpush.msra.mxu0 %v162
    %1790 = vmatpush.msra.mxu0 %v158
    %1791 = vmatpush.msra.mxu0 %v154
    %1792 = vmatpush.msra.mxu0 %v150
    %1793 = vmatpush.msra.mxu0 %v146
    %1794 = vmatpush.msra.mxu0 %v142
    %1795 = vmatpush.msra.mxu0 %v138
    %1796 = vmatpush.msra.mxu0 %v134
    %1797 = vmatmul.f32.gmra.mxu0 %v1086
    %v1798 = vpop.f32.mrf.mxu0
    %v1799 = vadd.f32 %v1779, %v1798
    %1800 = vdwg.mxu0
    %1801 = vmatpush.msra.mxu0 %v258
    %1802 = vmatpush.msra.mxu0 %v254
    %1803 = vmatpush.msra.mxu0 %v250
    %1804 = vmatpush.msra.mxu0 %v246
    %1805 = vmatpush.msra.mxu0 %v242
    %1806 = vmatpush.msra.mxu0 %v238
    %1807 = vmatpush.msra.mxu0 %v234
    %1808 = vmatpush.msra.mxu0 %v230
    %1809 = vmatpush.msra.mxu0 %v226
    %1810 = vmatpush.msra.mxu0 %v222
    %1811 = vmatpush.msra.mxu0 %v218
    %1812 = vmatpush.msra.mxu0 %v214
    %1813 = vmatpush.msra.mxu0 %v210
    %1814 = vmatpush.msra.mxu0 %v206
    %1815 = vmatpush.msra.mxu0 %v202
    %1816 = vmatpush.msra.mxu0 %v198
    %1817 = vmatmul.f32.gmra.mxu0 %v1087
    %v1818 = vpop.f32.mrf.mxu0
    %v1819 = vadd.f32 %v1799, %v1818
    %1820 = vdwg.mxu0
    %1821 = vmatpush.msra.mxu0 %v322
    %1822 = vmatpush.msra.mxu0 %v318
    %1823 = vmatpush.msra.mxu0 %v314
    %1824 = vmatpush.msra.mxu0 %v310
    %1825 = vmatpush.msra.mxu0 %v306
    %1826 = vmatpush.msra.mxu0 %v302
    %1827 = vmatpush.msra.mxu0 %v298
    %1828 = vmatpush.msra.mxu0 %v294
    %1829 = vmatpush.msra.mxu0 %v290
    %1830 = vmatpush.msra.mxu0 %v286
    %1831 = vmatpush.msra.mxu0 %v282
    %1832 = vmatpush.msra.mxu0 %v278
    %1833 = vmatpush.msra.mxu0 %v274
    %1834 = vmatpush.msra.mxu0 %v270
    %1835 = vmatpush.msra.mxu0 %v266
    %1836 = vmatpush.msra.mxu0 %v262
    %1837 = vmatmul.f32.gmra.mxu0 %v1088
    %v1838 = vpop.f32.mrf.mxu0
    %v1839 = vadd.f32 %v1819, %v1838
    %1840 = vdwg.mxu0
    %1841 = vmatpush.msra.mxu0 %v386
    %1842 = vmatpush.msra.mxu0 %v382
    %1843 = vmatpush.msra.mxu0 %v378
    %1844 = vmatpush.msra.mxu0 %v374
    %1845 = vmatpush.msra.mxu0 %v370
    %1846 = vmatpush.msra.mxu0 %v366
    %1847 = vmatpush.msra.mxu0 %v362
    %1848 = vmatpush.msra.mxu0 %v358
    %1849 = vmatpush.msra.mxu0 %v354
    %1850 = vmatpush.msra.mxu0 %v350
    %1851 = vmatpush.msra.mxu0 %v346
    %1852 = vmatpush.msra.mxu0 %v342
    %1853 = vmatpush.msra.mxu0 %v338
    %1854 = vmatpush.msra.mxu0 %v334
    %1855 = vmatpush.msra.mxu0 %v330
    %1856 = vmatpush.msra.mxu0 %v326
    %1857 = vmatmul.f32.gmra.mxu0 %v1089
    %v1858 = vpop.f32.mrf.mxu0
    %v1859 = vadd.f32 %v1839, %v1858
    %1860 = vdwg.mxu0
    %1861 = vmatpush.msra.mxu0 %v450
    %1862 = vmatpush.msra.mxu0 %v446
    %1863 = vmatpush.msra.mxu0 %v442
    %1864 = vmatpush.msra.mxu0 %v438
    %1865 = vmatpush.msra.mxu0 %v434
    %1866 = vmatpush.msra.mxu0 %v430
    %1867 = vmatpush.msra.mxu0 %v426
    %1868 = vmatpush.msra.mxu0 %v422
    %1869 = vmatpush.msra.mxu0 %v418
    %1870 = vmatpush.msra.mxu0 %v414
    %1871 = vmatpush.msra.mxu0 %v410
    %1872 = vmatpush.msra.mxu0 %v406
    %1873 = vmatpush.msra.mxu0 %v402
    %1874 = vmatpush.msra.mxu0 %v398
    %1875 = vmatpush.msra.mxu0 %v394
    %1876 = vmatpush.msra.mxu0 %v390
    %1877 = vmatmul.f32.gmra.mxu0 %v1090
    %v1878 = vpop.f32.mrf.mxu0
    %v1879 = vadd.f32 %v1859, %v1878
    %1880 = vdwg.mxu0
    %1881 = vmatpush.msra.mxu0 %v514
    %1882 = vmatpush.msra.mxu0 %v510
    %1883 = vmatpush.msra.mxu0 %v506
    %1884 = vmatpush.msra.mxu0 %v502
    %1885 = vmatpush.msra.mxu0 %v498
    %1886 = vmatpush.msra.mxu0 %v494
    %1887 = vmatpush.msra.mxu0 %v490
    %1888 = vmatpush.msra.mxu0 %v486
    %1889 = vmatpush.msra.mxu0 %v482
    %1890 = vmatpush.msra.mxu0 %v478
    %1891 = vmatpush.msra.mxu0 %v474
    %1892 = vmatpush.msra.mxu0 %v470
    %1893 = vmatpush.msra.mxu0 %v466
    %1894 = vmatpush.msra.mxu0 %v462
    %1895 = vmatpush.msra.mxu0 %v458
    %1896 = vmatpush.msra.mxu0 %v454
    %1897 = vmatmul.f32.gmra.mxu0 %v1091
    %v1898 = vpop.f32.mrf.mxu0
    %v1899 = vadd.f32 %v1879, %v1898
    %1900 = vdwg.mxu0
    %1901 = vmatpush.msra.mxu0 %v578
    %1902 = vmatpush.msra.mxu0 %v574
    %1903 = vmatpush.msra.mxu0 %v570
    %1904 = vmatpush.msra.mxu0 %v566
    %1905 = vmatpush.msra.mxu0 %v562
    %1906 = vmatpush.msra.mxu0 %v558
    %1907 = vmatpush.msra.mxu0 %v554
    %1908 = vmatpush.msra.mxu0 %v550
    %1909 = vmatpush.msra.mxu0 %v546
    %1910 = vmatpush.msra.mxu0 %v542
    %1911 = vmatpush.msra.mxu0 %v538
    %1912 = vmatpush.msra.mxu0 %v534
    %1913 = vmatpush.msra.mxu0 %v530
    %1914 = vmatpush.msra.mxu0 %v526
    %1915 = vmatpush.msra.mxu0 %v522
    %1916 = vmatpush.msra.mxu0 %v518
    %1917 = vmatmul.f32.gmra.mxu0 %v1092
    %v1918 = vpop.f32.mrf.mxu0
    %v1919 = vadd.f32 %v1899, %v1918
    %1920 = vdwg.mxu0
    %1921 = vmatpush.msra.mxu0 %v642
    %1922 = vmatpush.msra.mxu0 %v638
    %1923 = vmatpush.msra.mxu0 %v634
    %1924 = vmatpush.msra.mxu0 %v630
    %1925 = vmatpush.msra.mxu0 %v626
    %1926 = vmatpush.msra.mxu0 %v622
    %1927 = vmatpush.msra.mxu0 %v618
    %1928 = vmatpush.msra.mxu0 %v614
    %1929 = vmatpush.msra.mxu0 %v610
    %1930 = vmatpush.msra.mxu0 %v606
    %1931 = vmatpush.msra.mxu0 %v602
    %1932 = vmatpush.msra.mxu0 %v598
    %1933 = vmatpush.msra.mxu0 %v594
    %1934 = vmatpush.msra.mxu0 %v590
    %1935 = vmatpush.msra.mxu0 %v586
    %1936 = vmatpush.msra.mxu0 %v582
    %1937 = vmatmul.f32.gmra.mxu0 %v1095
    %v1938 = vpop.f32.mrf.mxu0
    %v1939 = vadd.f32 %v1919, %v1938
    %1940 = vdwg.mxu0
    %1941 = vmatpush.msra.mxu0 %v706
    %1942 = vmatpush.msra.mxu0 %v702
    %1943 = vmatpush.msra.mxu0 %v698
    %1944 = vmatpush.msra.mxu0 %v694
    %1945 = vmatpush.msra.mxu0 %v690
    %1946 = vmatpush.msra.mxu0 %v686
    %1947 = vmatpush.msra.mxu0 %v682
    %1948 = vmatpush.msra.mxu0 %v678
    %1949 = vmatpush.msra.mxu0 %v674
    %1950 = vmatpush.msra.mxu0 %v670
    %1951 = vmatpush.msra.mxu0 %v666
    %1952 = vmatpush.msra.mxu0 %v662
    %1953 = vmatpush.msra.mxu0 %v658
    %1954 = vmatpush.msra.mxu0 %v654
    %1955 = vmatpush.msra.mxu0 %v650
    %1956 = vmatpush.msra.mxu0 %v646
    %1957 = vmatmul.f32.gmra.mxu0 %v1096
    %v1958 = vpop.f32.mrf.mxu0
    %v1959 = vadd.f32 %v1939, %v1958
    %1960 = vdwg.mxu0
    %1961 = vmatpush.msra.mxu0 %v770
    %1962 = vmatpush.msra.mxu0 %v766
    %1963 = vmatpush.msra.mxu0 %v762
    %1964 = vmatpush.msra.mxu0 %v758
    %1965 = vmatpush.msra.mxu0 %v754
    %1966 = vmatpush.msra.mxu0 %v750
    %1967 = vmatpush.msra.mxu0 %v746
    %1968 = vmatpush.msra.mxu0 %v742
    %1969 = vmatpush.msra.mxu0 %v738
    %1970 = vmatpush.msra.mxu0 %v734
    %1971 = vmatpush.msra.mxu0 %v730
    %1972 = vmatpush.msra.mxu0 %v726
    %1973 = vmatpush.msra.mxu0 %v722
    %1974 = vmatpush.msra.mxu0 %v718
    %1975 = vmatpush.msra.mxu0 %v714
    %1976 = vmatpush.msra.mxu0 %v710
    %1977 = vmatmul.f32.gmra.mxu0 %v1097
    %v1978 = vpop.f32.mrf.mxu0
    %v1979 = vadd.f32 %v1959, %v1978
    %1980 = vdwg.mxu0
    %1981 = vmatpush.msra.mxu0 %v834
    %1982 = vmatpush.msra.mxu0 %v830
    %1983 = vmatpush.msra.mxu0 %v826
    %1984 = vmatpush.msra.mxu0 %v822
    %1985 = vmatpush.msra.mxu0 %v818
    %1986 = vmatpush.msra.mxu0 %v814
    %1987 = vmatpush.msra.mxu0 %v810
    %1988 = vmatpush.msra.mxu0 %v806
    %1989 = vmatpush.msra.mxu0 %v802
    %1990 = vmatpush.msra.mxu0 %v798
    %1991 = vmatpush.msra.mxu0 %v794
    %1992 = vmatpush.msra.mxu0 %v790
    %1993 = vmatpush.msra.mxu0 %v786
    %1994 = vmatpush.msra.mxu0 %v782
    %1995 = vmatpush.msra.mxu0 %v778
    %1996 = vmatpush.msra.mxu0 %v774
    %1997 = vmatmul.f32.gmra.mxu0 %v1098
    %v1998 = vpop.f32.mrf.mxu0
    %v1999 = vadd.f32 %v1979, %v1998
    %2000 = vdwg.mxu0
    %2001 = vmatpush.msra.mxu0 %v898
    %2002 = vmatpush.msra.mxu0 %v894
    %2003 = vmatpush.msra.mxu0 %v890
    %2004 = vmatpush.msra.mxu0 %v886
    %2005 = vmatpush.msra.mxu0 %v882
    %2006 = vmatpush.msra.mxu0 %v878
    %2007 = vmatpush.msra.mxu0 %v874
    %2008 = vmatpush.msra.mxu0 %v870
    %2009 = vmatpush.msra.mxu0 %v866
    %2010 = vmatpush.msra.mxu0 %v862
    %2011 = vmatpush.msra.mxu0 %v858
    %2012 = vmatpush.msra.mxu0 %v854
    %2013 = vmatpush.msra.mxu0 %v850
    %2014 = vmatpush.msra.mxu0 %v846
    %2015 = vmatpush.msra.mxu0 %v842
    %2016 = vmatpush.msra.mxu0 %v838
    %2017 = vmatmul.f32.gmra.mxu0 %v1099
    %v2018 = vpop.f32.mrf.mxu0
    %v2019 = vadd.f32 %v1999, %v2018
    %2020 = vdwg.mxu0
    %2021 = vmatpush.msra.mxu0 %v962
    %2022 = vmatpush.msra.mxu0 %v958
    %2023 = vmatpush.msra.mxu0 %v954
    %2024 = vmatpush.msra.mxu0 %v950
    %2025 = vmatpush.msra.mxu0 %v946
    %2026 = vmatpush.msra.mxu0 %v942
    %2027 = vmatpush.msra.mxu0 %v938
    %2028 = vmatpush.msra.mxu0 %v934
    %2029 = vmatpush.msra.mxu0 %v930
    %2030 = vmatpush.msra.mxu0 %v926
    %2031 = vmatpush.msra.mxu0 %v922
    %2032 = vmatpush.msra.mxu0 %v918
    %2033 = vmatpush.msra.mxu0 %v914
    %2034 = vmatpush.msra.mxu0 %v910
    %2035 = vmatpush.msra.mxu0 %v906
    %2036 = vmatpush.msra.mxu0 %v902
    %2037 = vmatmul.f32.gmra.mxu0 %v1100
    %v2038 = vpop.f32.mrf.mxu0
    %v2039 = vadd.f32 %v2019, %v2038
    %2040 = vdwg.mxu0
    %2041 = vmatpush.msra.mxu0 %v1026
    %2042 = vmatpush.msra.mxu0 %v1022
    %2043 = vmatpush.msra.mxu0 %v1018
    %2044 = vmatpush.msra.mxu0 %v1014
    %2045 = vmatpush.msra.mxu0 %v1010
    %2046 = vmatpush.msra.mxu0 %v1006
    %2047 = vmatpush.msra.mxu0 %v1002
    %2048 = vmatpush.msra.mxu0 %v998
    %2049 = vmatpush.msra.mxu0 %v994
    %2050 = vmatpush.msra.mxu0 %v990
    %2051 = vmatpush.msra.mxu0 %v986
    %2052 = vmatpush.msra.mxu0 %v982
    %2053 = vmatpush.msra.mxu0 %v978
    %2054 = vmatpush.msra.mxu0 %v974
    %2055 = vmatpush.msra.mxu0 %v970
    %2056 = vmatpush.msra.mxu0 %v966
    %2057 = vmatmul.f32.gmra.mxu0 %v1101
    %v2058 = vpop.f32.mrf.mxu0
    %v2059 = vadd.f32 %v2039, %v2058
    %2060 = vdwg.mxu0
    %2061 = vmatpush.msra.mxu0 0.0
    %2062 = vmatpush.msra.mxu0 0.0
    %2063 = vmatpush.msra.mxu0 0.0
    %2064 = vmatpush.msra.mxu0 0.0
    %2065 = vmatpush.msra.mxu0 0.0
    %2066 = vmatpush.msra.mxu0 0.0
    %2067 = vmatpush.msra.mxu0 %v1066
    %2068 = vmatpush.msra.mxu0 %v1062
    %2069 = vmatpush.msra.mxu0 %v1058
    %2070 = vmatpush.msra.mxu0 %v1054
    %2071 = vmatpush.msra.mxu0 %v1050
    %2072 = vmatpush.msra.mxu0 %v1046
    %2073 = vmatpush.msra.mxu0 %v1042
    %2074 = vmatpush.msra.mxu0 %v1038
    %2075 = vmatpush.msra.mxu0 %v1034
    %2076 = vmatpush.msra.mxu0 %v1030
    %2077 = vmatmul.f32.gmra.mxu0 %v1119
    %v2078 = vpop.f32.mrf.mxu0
    %v2079 = vadd.f32 %v2059, %v2078
    %2080 = vdwg.mxu0
    %2081 = vmatpush.msra.mxu0 %v131
    %2082 = vmatpush.msra.mxu0 %v127
    %2083 = vmatpush.msra.mxu0 %v123
    %2084 = vmatpush.msra.mxu0 %v119
    %2085 = vmatpush.msra.mxu0 %v115
    %2086 = vmatpush.msra.mxu0 %v111
    %2087 = vmatpush.msra.mxu0 %v107
    %2088 = vmatpush.msra.mxu0 %v103
    %2089 = vmatpush.msra.mxu0 %v99
    %2090 = vmatpush.msra.mxu0 %v95
    %2091 = vmatpush.msra.mxu0 %v91
    %2092 = vmatpush.msra.mxu0 %v87
    %2093 = vmatpush.msra.mxu0 %v83
    %2094 = vmatpush.msra.mxu0 %v79
    %2095 = vmatpush.msra.mxu0 %v75
    %2096 = vmatpush.msra.mxu0 %v71
    %2097 = vmatmul.f32.gmra.mxu0 %v1085
    %v2098 = vpop.f32.mrf.mxu0
    %v2099 = vadd.f32 %v1073, %v2098
    %2100 = vdwg.mxu0
    %2101 = vmatpush.msra.mxu0 %v195
    %2102 = vmatpush.msra.mxu0 %v191
    %2103 = vmatpush.msra.mxu0 %v187
    %2104 = vmatpush.msra.mxu0 %v183
    %2105 = vmatpush.msra.mxu0 %v179
    %2106 = vmatpush.msra.mxu0 %v175
    %2107 = vmatpush.msra.mxu0 %v171
    %2108 = vmatpush.msra.mxu0 %v167
    %2109 = vmatpush.msra.mxu0 %v163
    %2110 = vmatpush.msra.mxu0 %v159
    %2111 = vmatpush.msra.mxu0 %v155
    %2112 = vmatpush.msra.mxu0 %v151
    %2113 = vmatpush.msra.mxu0 %v147
    %2114 = vmatpush.msra.mxu0 %v143
    %2115 = vmatpush.msra.mxu0 %v139
    %2116 = vmatpush.msra.mxu0 %v135
    %2117 = vmatmul.f32.gmra.mxu0 %v1086
    %v2118 = vpop.f32.mrf.mxu0
    %v2119 = vadd.f32 %v2099, %v2118
    %2120 = vdwg.mxu0
    %2121 = vmatpush.msra.mxu0 %v259
    %2122 = vmatpush.msra.mxu0 %v255
    %2123 = vmatpush.msra.mxu0 %v251
    %2124 = vmatpush.msra.mxu0 %v247
    %2125 = vmatpush.msra.mxu0 %v243
    %2126 = vmatpush.msra.mxu0 %v239
    %2127 = vmatpush.msra.mxu0 %v235
    %2128 = vmatpush.msra.mxu0 %v231
    %2129 = vmatpush.msra.mxu0 %v227
    %2130 = vmatpush.msra.mxu0 %v223
    %2131 = vmatpush.msra.mxu0 %v219
    %2132 = vmatpush.msra.mxu0 %v215
    %2133 = vmatpush.msra.mxu0 %v211
    %2134 = vmatpush.msra.mxu0 %v207
    %2135 = vmatpush.msra.mxu0 %v203
    %2136 = vmatpush.msra.mxu0 %v199
    %2137 = vmatmul.f32.gmra.mxu0 %v1087
    %v2138 = vpop.f32.mrf.mxu0
    %v2139 = vadd.f32 %v2119, %v2138
    %2140 = vdwg.mxu0
    %2141 = vmatpush.msra.mxu0 %v323
    %2142 = vmatpush.msra.mxu0 %v319
    %2143 = vmatpush.msra.mxu0 %v315
    %2144 = vmatpush.msra.mxu0 %v311
    %2145 = vmatpush.msra.mxu0 %v307
    %2146 = vmatpush.msra.mxu0 %v303
    %2147 = vmatpush.msra.mxu0 %v299
    %2148 = vmatpush.msra.mxu0 %v295
    %2149 = vmatpush.msra.mxu0 %v291
    %2150 = vmatpush.msra.mxu0 %v287
    %2151 = vmatpush.msra.mxu0 %v283
    %2152 = vmatpush.msra.mxu0 %v279
    %2153 = vmatpush.msra.mxu0 %v275
    %2154 = vmatpush.msra.mxu0 %v271
    %2155 = vmatpush.msra.mxu0 %v267
    %2156 = vmatpush.msra.mxu0 %v263
    %2157 = vmatmul.f32.gmra.mxu0 %v1088
    %v2158 = vpop.f32.mrf.mxu0
    %v2159 = vadd.f32 %v2139, %v2158
    %2160 = vdwg.mxu0
    %2161 = vmatpush.msra.mxu0 %v387
    %2162 = vmatpush.msra.mxu0 %v383
    %2163 = vmatpush.msra.mxu0 %v379
    %2164 = vmatpush.msra.mxu0 %v375
    %2165 = vmatpush.msra.mxu0 %v371
    %2166 = vmatpush.msra.mxu0 %v367
    %2167 = vmatpush.msra.mxu0 %v363
    %2168 = vmatpush.msra.mxu0 %v359
    %2169 = vmatpush.msra.mxu0 %v355
    %2170 = vmatpush.msra.mxu0 %v351
    %2171 = vmatpush.msra.mxu0 %v347
    %2172 = vmatpush.msra.mxu0 %v343
    %2173 = vmatpush.msra.mxu0 %v339
    %2174 = vmatpush.msra.mxu0 %v335
    %2175 = vmatpush.msra.mxu0 %v331
    %2176 = vmatpush.msra.mxu0 %v327
    %2177 = vmatmul.f32.gmra.mxu0 %v1089
    %v2178 = vpop.f32.mrf.mxu0
    %v2179 = vadd.f32 %v2159, %v2178
    %2180 = vdwg.mxu0
    %2181 = vmatpush.msra.mxu0 %v451
    %2182 = vmatpush.msra.mxu0 %v447
    %2183 = vmatpush.msra.mxu0 %v443
    %2184 = vmatpush.msra.mxu0 %v439
    %2185 = vmatpush.msra.mxu0 %v435
    %2186 = vmatpush.msra.mxu0 %v431
    %2187 = vmatpush.msra.mxu0 %v427
    %2188 = vmatpush.msra.mxu0 %v423
    %2189 = vmatpush.msra.mxu0 %v419
    %2190 = vmatpush.msra.mxu0 %v415
    %2191 = vmatpush.msra.mxu0 %v411
    %2192 = vmatpush.msra.mxu0 %v407
    %2193 = vmatpush.msra.mxu0 %v403
    %2194 = vmatpush.msra.mxu0 %v399
    %2195 = vmatpush.msra.mxu0 %v395
    %2196 = vmatpush.msra.mxu0 %v391
    %2197 = vmatmul.f32.gmra.mxu0 %v1090
    %v2198 = vpop.f32.mrf.mxu0
    %v2199 = vadd.f32 %v2179, %v2198
    %2200 = vdwg.mxu0
    %2201 = vmatpush.msra.mxu0 %v515
    %2202 = vmatpush.msra.mxu0 %v511
    %2203 = vmatpush.msra.mxu0 %v507
    %2204 = vmatpush.msra.mxu0 %v503
    %2205 = vmatpush.msra.mxu0 %v499
    %2206 = vmatpush.msra.mxu0 %v495
    %2207 = vmatpush.msra.mxu0 %v491
    %2208 = vmatpush.msra.mxu0 %v487
    %2209 = vmatpush.msra.mxu0 %v483
    %2210 = vmatpush.msra.mxu0 %v479
    %2211 = vmatpush.msra.mxu0 %v475
    %2212 = vmatpush.msra.mxu0 %v471
    %2213 = vmatpush.msra.mxu0 %v467
    %2214 = vmatpush.msra.mxu0 %v463
    %2215 = vmatpush.msra.mxu0 %v459
    %2216 = vmatpush.msra.mxu0 %v455
    %2217 = vmatmul.f32.gmra.mxu0 %v1091
    %v2218 = vpop.f32.mrf.mxu0
    %v2219 = vadd.f32 %v2199, %v2218
    %2220 = vdwg.mxu0
    %2221 = vmatpush.msra.mxu0 %v579
    %2222 = vmatpush.msra.mxu0 %v575
    %2223 = vmatpush.msra.mxu0 %v571
    %2224 = vmatpush.msra.mxu0 %v567
    %2225 = vmatpush.msra.mxu0 %v563
    %2226 = vmatpush.msra.mxu0 %v559
    %2227 = vmatpush.msra.mxu0 %v555
    %2228 = vmatpush.msra.mxu0 %v551
    %2229 = vmatpush.msra.mxu0 %v547
    %2230 = vmatpush.msra.mxu0 %v543
    %2231 = vmatpush.msra.mxu0 %v539
    %2232 = vmatpush.msra.mxu0 %v535
    %2233 = vmatpush.msra.mxu0 %v531
    %2234 = vmatpush.msra.mxu0 %v527
    %2235 = vmatpush.msra.mxu0 %v523
    %2236 = vmatpush.msra.mxu0 %v519
    %2237 = vmatmul.f32.gmra.mxu0 %v1092
    %v2238 = vpop.f32.mrf.mxu0
    %v2239 = vadd.f32 %v2219, %v2238
    %2240 = vdwg.mxu0
    %2241 = vmatpush.msra.mxu0 %v643
    %2242 = vmatpush.msra.mxu0 %v639
    %2243 = vmatpush.msra.mxu0 %v635
    %2244 = vmatpush.msra.mxu0 %v631
    %2245 = vmatpush.msra.mxu0 %v627
    %2246 = vmatpush.msra.mxu0 %v623
    %2247 = vmatpush.msra.mxu0 %v619
    %2248 = vmatpush.msra.mxu0 %v615
    %2249 = vmatpush.msra.mxu0 %v611
    %2250 = vmatpush.msra.mxu0 %v607
    %2251 = vmatpush.msra.mxu0 %v603
    %2252 = vmatpush.msra.mxu0 %v599
    %2253 = vmatpush.msra.mxu0 %v595
    %2254 = vmatpush.msra.mxu0 %v591
    %2255 = vmatpush.msra.mxu0 %v587
    %2256 = vmatpush.msra.mxu0 %v583
    %2257 = vmatmul.f32.gmra.mxu0 %v1095
    %v2258 = vpop.f32.mrf.mxu0
    %v2259 = vadd.f32 %v2239, %v2258
    %2260 = vdwg.mxu0
    %2261 = vmatpush.msra.mxu0 %v707
    %2262 = vmatpush.msra.mxu0 %v703
    %2263 = vmatpush.msra.mxu0 %v699
    %2264 = vmatpush.msra.mxu0 %v695
    %2265 = vmatpush.msra.mxu0 %v691
    %2266 = vmatpush.msra.mxu0 %v687
    %2267 = vmatpush.msra.mxu0 %v683
    %2268 = vmatpush.msra.mxu0 %v679
    %2269 = vmatpush.msra.mxu0 %v675
    %2270 = vmatpush.msra.mxu0 %v671
    %2271 = vmatpush.msra.mxu0 %v667
    %2272 = vmatpush.msra.mxu0 %v663
    %2273 = vmatpush.msra.mxu0 %v659
    %2274 = vmatpush.msra.mxu0 %v655
    %2275 = vmatpush.msra.mxu0 %v651
    %2276 = vmatpush.msra.mxu0 %v647
    %2277 = vmatmul.f32.gmra.mxu0 %v1096
    %v2278 = vpop.f32.mrf.mxu0
    %v2279 = vadd.f32 %v2259, %v2278
    %2280 = vdwg.mxu0
    %2281 = vmatpush.msra.mxu0 %v771
    %2282 = vmatpush.msra.mxu0 %v767
    %2283 = vmatpush.msra.mxu0 %v763
    %2284 = vmatpush.msra.mxu0 %v759
    %2285 = vmatpush.msra.mxu0 %v755
    %2286 = vmatpush.msra.mxu0 %v751
    %2287 = vmatpush.msra.mxu0 %v747
    %2288 = vmatpush.msra.mxu0 %v743
    %2289 = vmatpush.msra.mxu0 %v739
    %2290 = vmatpush.msra.mxu0 %v735
    %2291 = vmatpush.msra.mxu0 %v731
    %2292 = vmatpush.msra.mxu0 %v727
    %2293 = vmatpush.msra.mxu0 %v723
    %2294 = vmatpush.msra.mxu0 %v719
    %2295 = vmatpush.msra.mxu0 %v715
    %2296 = vmatpush.msra.mxu0 %v711
    %2297 = vmatmul.f32.gmra.mxu0 %v1097
    %v2298 = vpop.f32.mrf.mxu0
    %v2299 = vadd.f32 %v2279, %v2298
    %2300 = vdwg.mxu0
    %2301 = vmatpush.msra.mxu0 %v835
    %2302 = vmatpush.msra.mxu0 %v831
    %2303 = vmatpush.msra.mxu0 %v827
    %2304 = vmatpush.msra.mxu0 %v823
    %2305 = vmatpush.msra.mxu0 %v819
    %2306 = vmatpush.msra.mxu0 %v815
    %2307 = vmatpush.msra.mxu0 %v811
    %2308 = vmatpush.msra.mxu0 %v807
    %2309 = vmatpush.msra.mxu0 %v803
    %2310 = vmatpush.msra.mxu0 %v799
    %2311 = vmatpush.msra.mxu0 %v795
    %2312 = vmatpush.msra.mxu0 %v791
    %2313 = vmatpush.msra.mxu0 %v787
    %2314 = vmatpush.msra.mxu0 %v783
    %2315 = vmatpush.msra.mxu0 %v779
    %2316 = vmatpush.msra.mxu0 %v775
    %2317 = vmatmul.f32.gmra.mxu0 %v1098
    %v2318 = vpop.f32.mrf.mxu0
    %v2319 = vadd.f32 %v2299, %v2318
    %2320 = vdwg.mxu0
    %2321 = vmatpush.msra.mxu0 %v899
    %2322 = vmatpush.msra.mxu0 %v895
    %2323 = vmatpush.msra.mxu0 %v891
    %2324 = vmatpush.msra.mxu0 %v887
    %2325 = vmatpush.msra.mxu0 %v883
    %2326 = vmatpush.msra.mxu0 %v879
    %2327 = vmatpush.msra.mxu0 %v875
    %2328 = vmatpush.msra.mxu0 %v871
    %2329 = vmatpush.msra.mxu0 %v867
    %2330 = vmatpush.msra.mxu0 %v863
    %2331 = vmatpush.msra.mxu0 %v859
    %2332 = vmatpush.msra.mxu0 %v855
    %2333 = vmatpush.msra.mxu0 %v851
    %2334 = vmatpush.msra.mxu0 %v847
    %2335 = vmatpush.msra.mxu0 %v843
    %2336 = vmatpush.msra.mxu0 %v839
    %2337 = vmatmul.f32.gmra.mxu0 %v1099
    %v2338 = vpop.f32.mrf.mxu0
    %v2339 = vadd.f32 %v2319, %v2338
    %2340 = vdwg.mxu0
    %2341 = vmatpush.msra.mxu0 %v963
    %2342 = vmatpush.msra.mxu0 %v959
    %2343 = vmatpush.msra.mxu0 %v955
    %2344 = vmatpush.msra.mxu0 %v951
    %2345 = vmatpush.msra.mxu0 %v947
    %2346 = vmatpush.msra.mxu0 %v943
    %2347 = vmatpush.msra.mxu0 %v939
    %2348 = vmatpush.msra.mxu0 %v935
    %2349 = vmatpush.msra.mxu0 %v931
    %2350 = vmatpush.msra.mxu0 %v927
    %2351 = vmatpush.msra.mxu0 %v923
    %2352 = vmatpush.msra.mxu0 %v919
    %2353 = vmatpush.msra.mxu0 %v915
    %2354 = vmatpush.msra.mxu0 %v911
    %2355 = vmatpush.msra.mxu0 %v907
    %2356 = vmatpush.msra.mxu0 %v903
    %2357 = vmatmul.f32.gmra.mxu0 %v1100
    %v2358 = vpop.f32.mrf.mxu0
    %v2359 = vadd.f32 %v2339, %v2358
    %2360 = vdwg.mxu0
    %2361 = vmatpush.msra.mxu0 %v1027
    %2362 = vmatpush.msra.mxu0 %v1023
    %2363 = vmatpush.msra.mxu0 %v1019
    %2364 = vmatpush.msra.mxu0 %v1015
    %2365 = vmatpush.msra.mxu0 %v1011
    %2366 = vmatpush.msra.mxu0 %v1007
    %2367 = vmatpush.msra.mxu0 %v1003
    %2368 = vmatpush.msra.mxu0 %v999
    %2369 = vmatpush.msra.mxu0 %v995
    %2370 = vmatpush.msra.mxu0 %v991
    %2371 = vmatpush.msra.mxu0 %v987
    %2372 = vmatpush.msra.mxu0 %v983
    %2373 = vmatpush.msra.mxu0 %v979
    %2374 = vmatpush.msra.mxu0 %v975
    %2375 = vmatpush.msra.mxu0 %v971
    %2376 = vmatpush.msra.mxu0 %v967
    %2377 = vmatmul.f32.gmra.mxu0 %v1101
    %v2378 = vpop.f32.mrf.mxu0
    %v2379 = vadd.f32 %v2359, %v2378
    %2380 = vdwg.mxu0
    %2381 = vmatpush.msra.mxu0 0.0
    %2382 = vmatpush.msra.mxu0 0.0
    %2383 = vmatpush.msra.mxu0 0.0
    %2384 = vmatpush.msra.mxu0 0.0
    %2385 = vmatpush.msra.mxu0 0.0
    %2386 = vmatpush.msra.mxu0 0.0
    %2387 = vmatpush.msra.mxu0 %v1067
    %2388 = vmatpush.msra.mxu0 %v1063
    %2389 = vmatpush.msra.mxu0 %v1059
    %2390 = vmatpush.msra.mxu0 %v1055
    %2391 = vmatpush.msra.mxu0 %v1051
    %2392 = vmatpush.msra.mxu0 %v1047
    %2393 = vmatpush.msra.mxu0 %v1043
    %2394 = vmatpush.msra.mxu0 %v1039
    %2395 = vmatpush.msra.mxu0 %v1035
    %2396 = vmatpush.msra.mxu0 %v1031
    %2397 = vmatmul.f32.gmra.mxu0 %v1119
    %v2398 = vpop.f32.mrf.mxu0
    %v2399 = vadd.f32 %v2379, %v2398
    %2400 = vdwg.mxu0
    %v2401 = vmax.f32 %v1439, 0.0
    %v2402 = vmax.f32 %v1759, 0.0
    %v2403 = vmax.f32 %v2079, 0.0
    %v2404 = vmax.f32 %v2399, 0.0
    %v2405 = vld [vmem:[%s3] sm:$0xff]
    %v2406 = vld [vmem:[%s3 + $0x8] sm:$0xff]
    %v2407 = vld [vmem:[%s3 + $0x10] sm:$0xff]
    %v2408 = vld [vmem:[%s3 + $0x18] sm:$0xff]
    %v2409 = vld [vmem:[%s3 + $0x20] sm:$0xff]
    %v2410 = vld [vmem:[%s3 + $0x28] sm:$0xff]
    %v2411 = vld [vmem:[%s3 + $0x30] sm:$0xff]
    %v2412 = vld [vmem:[%s3 + $0x38] sm:$0xff]
    %v2413 = vld [vmem:[%s3 + $0x40] sm:$0xff]
    %v2414 = vld [vmem:[%s3 + $0x48] sm:$0xff]
    %v2415 = vld [vmem:[%s3 + $0x50] sm:$0xff]
    %v2416 = vld [vmem:[%s3 + $0x58] sm:$0xff]
    %v2417 = vld [vmem:[%s3 + $0x60] sm:$0xff]
    %v2418 = vld [vmem:[%s3 + $0x68] sm:$0xff]
    %v2419 = vld [vmem:[%s3 + $0x70] sm:$0xff]
    %v2420 = vld [vmem:[%s3 + $0x78] sm:$0xff]
    %v2421 = vld [vmem:[%s3 + $0x80] sm:$0xff]
    %v2422 = vld [vmem:[%s3 + $0x88] sm:$0xff]
    %v2423 = vld [vmem:[%s3 + $0x90] sm:$0xff]
    %v2424 = vld [vmem:[%s3 + $0x98] sm:$0xff]
    %v2425 = vld [vmem:[%s3 + $0xa0] sm:$0xff]
    %v2426 = vld [vmem:[%s3 + $0xa8] sm:$0xff]
    %v2427 = vld [vmem:[%s3 + $0xb0] sm:$0xff]
    %v2428 = vld [vmem:[%s3 + $0xb8] sm:$0xff]
    %v2429 = vld [vmem:[%s3 + $0xc0] sm:$0xff]
    %v2430 = vld [vmem:[%s3 + $0xc8] sm:$0xff]
    %v2431 = vld [vmem:[%s3 + $0xd0] sm:$0xff]
    %v2432 = vld [vmem:[%s3 + $0xd8] sm:$0xff]
    %v2433 = vld [vmem:[%s3 + $0xe0] sm:$0xff]
    %v2434 = vld [vmem:[%s3 + $0xe8] sm:$0xff]
    %v2435 = vld [vmem:[%s3 + $0xf0] sm:$0xff]
    %v2436 = vld [vmem:[%s3 + $0xf8] sm:$0xff]
    %v2437 = vld [vmem:[%s3 + $0x100] sm:$0xff]
    %v2438 = vld [vmem:[%s3 + $0x108] sm:$0xff]
    %v2439 = vld [vmem:[%s3 + $0x110] sm:$0xff]
    %v2440 = vld [vmem:[%s3 + $0x118] sm:$0xff]
    %v2441 = vld [vmem:[%s3 + $0x120] sm:$0xff]
    %v2442 = vld [vmem:[%s3 + $0x128] sm:$0xff]
    %v2443 = vld [vmem:[%s3 + $0x130] sm:$0xff]
    %v2444 = vld [vmem:[%s3 + $0x138] sm:$0xff]
    %v2445 = vld [vmem:[%s3 + $0x140] sm:$0xff]
    %v2446 = vld [vmem:[%s3 + $0x148] sm:$0xff]
    %v2447 = vld [vmem:[%s3 + $0x150] sm:$0xff]
    %v2448 = vld [vmem:[%s3 + $0x158] sm:$0xff]
    %v2449 = vld [vmem:[%s3 + $0x160] sm:$0xff]
    %v2450 = vld [vmem:[%s3 + $0x168] sm:$0xff]
    %v2451 = vld [vmem:[%s3 + $0x170] sm:$0xff]
    %v2452 = vld [vmem:[%s3 + $0x178] sm:$0xff]
    %v2453 = vld [vmem:[%s3 + $0x180] sm:$0xff]
    %v2454 = vld [vmem:[%s3 + $0x188] sm:$0xff]
    %v2455 = vld [vmem:[%s3 + $0x190] sm:$0xff]
    %v2456 = vld [vmem:[%s3 + $0x198] sm:$0xff]
    %v2457 = vld [vmem:[%s3 + $0x1a0] sm:$0xff]
    %v2458 = vld [vmem:[%s3 + $0x1a8] sm:$0xff]
    %v2459 = vld [vmem:[%s3 + $0x1b0] sm:$0xff]
    %v2460 = vld [vmem:[%s3 + $0x1b8] sm:$0xff]
    %v2461 = vld [vmem:[%s3 + $0x1c0] sm:$0xff]
    %v2462 = vld [vmem:[%s3 + $0x1c8] sm:$0xff]
    %v2463 = vld [vmem:[%s3 + $0x1d0] sm:$0xff]
    %v2464 = vld [vmem:[%s3 + $0x1d8] sm:$0xff]
    %v2465 = vld [vmem:[%s3 + $0x1e0] sm:$0xff]
    %v2466 = vld [vmem:[%s3 + $0x1e8] sm:$0xff]
    %v2467 = vld [vmem:[%s3 + $0x1f0] sm:$0xf]
    %v2468 = vld [vmem:[#allocation7] sm:$0x1]
    %v2470 = vperm.slane %v2468, 0
    %vm2472 = vcmask 949248
    %v2474 = vsel %vm2472, %v2404, 0
    %vm2476 = vcmask 1043456
    %v2478 = vsel %vm2476, %v2467, 0
    %2480 = vmatpush.msra.mxu0 %v2420
    %2481 = vmatpush.msra.mxu0 %v2419
    %2482 = vmatpush.msra.mxu0 %v2418
    %2483 = vmatpush.msra.mxu0 %v2417
    %2484 = vmatpush.msra.mxu0 %v2416
    %2485 = vmatpush.msra.mxu0 %v2415
    %2486 = vmatpush.msra.mxu0 %v2414
    %2487 = vmatpush.msra.mxu0 %v2413
    %2488 = vmatpush.msra.mxu0 %v2412
    %2489 = vmatpush.msra.mxu0 %v2411
    %2490 = vmatpush.msra.mxu0 %v2410
    %2491 = vmatpush.msra.mxu0 %v2409
    %2492 = vmatpush.msra.mxu0 %v2408
    %2493 = vmatpush.msra.mxu0 %v2407
    %2494 = vmatpush.msra.mxu0 %v2406
    %2495 = vmatpush.msra.mxu0 %v2405
    %2496 = vmatmul.f32.gmra.mxu0 %v2401
    %v2497 = vpop.f32.mrf.mxu0
    %v2498 = vadd.f32 %v2470, %v2497
    %2499 = vdwg.mxu0
    %2500 = vmatpush.msra.mxu0 %v2436
    %2501 = vmatpush.msra.mxu0 %v2435
    %2502 = vmatpush.msra.mxu0 %v2434
    %2503 = vmatpush.msra.mxu0 %v2433
    %2504 = vmatpush.msra.mxu0 %v2432
    %2505 = vmatpush.msra.mxu0 %v2431
    %2506 = vmatpush.msra.mxu0 %v2430
    %2507 = vmatpush.msra.mxu0 %v2429
    %2508 = vmatpush.msra.mxu0 %v2428
    %2509 = vmatpush.msra.mxu0 %v2427
    %2510 = vmatpush.msra.mxu0 %v2426
    %2511 = vmatpush.msra.mxu0 %v2425
    %2512 = vmatpush.msra.mxu0 %v2424
    %2513 = vmatpush.msra.mxu0 %v2423
    %2514 = vmatpush.msra.mxu0 %v2422
    %2515 = vmatpush.msra.mxu0 %v2421
    %2516 = vmatmul.f32.gmra.mxu0 %v2402
    %v2517 = vpop.f32.mrf.mxu0
    %v2518 = vadd.f32 %v2498, %v2517
    %2519 = vdwg.mxu0
    %2520 = vmatpush.msra.mxu0 %v2452
    %2521 = vmatpush.msra.mxu0 %v2451
    %2522 = vmatpush.msra.mxu0 %v2450
    %2523 = vmatpush.msra.mxu0 %v2449
    %2524 = vmatpush.msra.mxu0 %v2448
    %2525 = vmatpush.msra.mxu0 %v2447
    %2526 = vmatpush.msra.mxu0 %v2446
    %2527 = vmatpush.msra.mxu0 %v2445
    %2528 = vmatpush.msra.mxu0 %v2444
    %2529 = vmatpush.msra.mxu0 %v2443
    %2530 = vmatpush.msra.mxu0 %v2442
    %2531 = vmatpush.msra.mxu0 %v2441
    %2532 = vmatpush.msra.mxu0 %v2440
    %2533 = vmatpush.msra.mxu0 %v2439
    %2534 = vmatpush.msra.mxu0 %v2438
    %2535 = vmatpush.msra.mxu0 %v2437
    %2536 = vmatmul.f32.gmra.mxu0 %v2403
    %v2537 = vpop.f32.mrf.mxu0
    %v2538 = vadd.f32 %v2518, %v2537
    %2539 = vdwg.mxu0
    %2540 = vmatpush.msra.mxu0 0.0
    %2541 = vmatpush.msra.mxu0 %v2478
    %2542 = vmatpush.msra.mxu0 %v2466
    %2543 = vmatpush.msra.mxu0 %v2465
    %2544 = vmatpush.msra.mxu0 %v2464
    %2545 = vmatpush.msra.mxu0 %v2463
    %2546 = vmatpush.msra.mxu0 %v2462
    %2547 = vmatpush.msra.mxu0 %v2461
    %2548 = vmatpush.msra.mxu0 %v2460
    %2549 = vmatpush.msra.mxu0 %v2459
    %2550 = vmatpush.msra.mxu0 %v2458
    %2551 = vmatpush.msra.mxu0 %v2457
    %2552 = vmatpush.msra.mxu0 %v2456
    %2553 = vmatpush.msra.mxu0 %v2455
    %2554 = vmatpush.msra.mxu0 %v2454
    %2555 = vmatpush.msra.mxu0 %v2453
    %2556 = vmatmul.f32.gmra.mxu0 %v2474
    %v2557 = vpop.f32.mrf.mxu0
    %v2558 = vadd.f32 %v2538, %v2557
    %2559 = vdwg.mxu0
    %vm2560 = vcmask 74752
    %v2561 = vsel %vm2560, %v2558, -inf
    %2562 = vmax.xlane.f32.xlu0 %v2561
    %v2563 = vpop.xlane.xlu0 %2562
    %v2564 = vsub.f32 %v2558, %v2563
    %v2565 = vmul.f32 %v2564, 1.442695
    %v2566 = vpow.pop %v2565
    %v2567 = vsel %vm2560, %v2566, 0.0
    %2568 = vadd.xlane.f32.xlu0 %v2567
    %v2569 = vpop.xlane.xlu0 %2568
    %v2570 = vlog2.pop %v2569
    %v2571 = vmul.f32 %v2570, 0.6931472
    %v2572 = vadd.f32 %v2571, %v2563
    %v2573 = vsub.f32 %v2558, %v2572
    %2574 = vst.msk [vmem:[#allocation8] sm:$0x3] %vm2560, %v2573
    // Predicated region
    $region34: #{convnet_forward.3} parent=1 // pred_check
      _
    $region35: #{convnet_forward.3} parent=1 // pred_check_branch
      %2576 = sbr.rel (0) target = $region37
    $region36: #{convnet_forward.3} parent=1 // pred_region
      %2578 = vsyncadd [#allocation4], 0
      %s2580 = sshll.u32 [#allocation8], 4
      %s2581 = int_to_ptr.vmem [resolvable:$true] %s2580
      %s2582 = sshll.u32 %s5, 4
      %s2583 = int_to_ptr.hbm [resolvable:$true] %s2582
      %2585 = dma.vmem_to_hbm [thread:$0]  %s2581, 32, %s2583, [#allocation4]
    $region37: #{convnet_forward.3} parent=1 // pred_fallthru
      _
    // Predicated region
    $region38: #{convnet_forward.3} parent=1 // pred_check
      _
    $region39: #{convnet_forward.3} parent=1 // pred_check_branch
      %2587 = sbr.rel (0) target = $region41
    $region40: #{convnet_forward.3} parent=1 // pred_region
      %2589 = dma.done [#allocation4], 32
    $region41: #{convnet_forward.3} parent=1 // pred_fallthru
      _
    %2590 = vsyncpa [#allocation3], 1
    %2591 = vsyncpa [#allocation6], 1
    %2592 = vsyncpa [#allocation4], 1

</llo_original>
